<compile_context>
chip_gen: v6e
topology: v6e:2x2x1
jax: 0.10.0
libtpu: 0.0.40
codegen_flags: <defaults>
</compile_context>

<pallas_src>
import functools
import math

import jax
import jax.numpy as jnp
from jax import lax
from jax.experimental import pallas as pl
from jax.experimental.pallas import tpu as pltpu


# ----------------------------- fused Pallas kernel -----------------------------

def _fused_block_encoder_kernel(
        x_ref, wqk_ref, bqk_ref,
        w1_ref, b1_ref, w2_ref, b2_ref,
        g1_ref, be1_ref, g2_ref, be2_ref,
        t_out_ref, o_out_ref, tattn_ref, oattn_ref,
        *, T, M, S, D, H, activation, eps):
    dh = D // H
    TM = T * M
    N = TM + S
    Bt = x_ref.shape[0]

    x = x_ref[...].astype(jnp.float32)                      # (Bt, N, D)
    x2d = x.reshape(Bt * N, D)

    # ---- fused, pre-scaled Q/K projection: one bf16 MXU matmul over all rows ----
    proj = jnp.dot(x2d.astype(jnp.bfloat16), wqk_ref[...],
                   preferred_element_type=jnp.float32) + bqk_ref[...]   # (Bt*N, 2D)
    q3 = proj[:, :D].reshape(Bt, N, D)                       # pre-scaled by 1/sqrt(dh)
    k3 = proj[:, D:].reshape(Bt, N, D)

    # row groups (static slices; [t=0 ; others] concat done ONCE, not per head)
    q_t = q3[:, M:TM]                                        # (Bt, (T-1)*M, D) queries t>=1
    k_t = k3[:, M:TM]
    k_o = k3[:, TM:]                                         # (Bt, S, D)       others keys
    q_ss = jnp.concatenate([q3[:, :M], q3[:, TM:]], axis=1)  # (Bt, M+S, D)
    k_ss = jnp.concatenate([k3[:, :M], k3[:, TM:]], axis=1)

    # fold (Bt, T-1) into a single batch dim once (full lane width) for the
    # block-diagonal own-time contraction
    q_tz = q_t.reshape(Bt * (T - 1), M, D)
    k_tz = k_t.reshape(Bt * (T - 1), M, D)

    dn = (((2,), (2,)), ((0,), (0,)))     # batched over leading dim, contract last dim
    KW = M + S
    t_probs, o_probs = [], []
    for h in range(H):
        sl = slice(h * dh, (h + 1) * dh)

        # own-time logits: one dot batched over (Bt*(T-1)) timestep blocks
        l_tt = lax.dot_general(q_tz[:, :, sl], k_tz[:, :, sl], dn,
                               preferred_element_type=jnp.float32)   # (Bt*(T-1), M, M)
        l_tt = l_tt.reshape(Bt, (T - 1) * M, M)
        # shared "others" keys: computed once for ALL timesteps of this head
        l_to = lax.dot_general(q_t[:, :, sl], k_o[:, :, sl], dn,
                               preferred_element_type=jnp.float32)   # (Bt, (T-1)*M, S)
        lt = jnp.concatenate([l_tt, l_to], axis=-1)                  # (Bt, (T-1)*M, M+S)
        lt = lt - jnp.max(lt, axis=-1, keepdims=True)
        et = jnp.exp(lt)
        t_probs.append(et / jnp.sum(et, axis=-1, keepdims=True))     # exact softmax

        # [global temporal slot ; others] self-attention block
        ls = lax.dot_general(q_ss[:, :, sl], k_ss[:, :, sl], dn,
                             preferred_element_type=jnp.float32)     # (Bt, M+S, M+S)
        ls = ls - jnp.max(ls, axis=-1, keepdims=True)
        es = jnp.exp(ls)
        o_probs.append(es / jnp.sum(es, axis=-1, keepdims=True))

    # lane-dense, head-packed attention-weight stores (one wide store per output)
    tattn_ref[...] = jnp.concatenate(t_probs, axis=-1).astype(tattn_ref.dtype)  # (Bt, (T-1)*M, H*KW)
    oattn_ref[...] = jnp.concatenate(o_probs, axis=-1).astype(oattn_ref.dtype)  # (Bt, M+S, H*KW)

    # -------- residual path: norm1(x + x) -> FeedForward -> norm2 --------------
    hrow = x2d + x2d
    mu = jnp.mean(hrow, axis=-1, keepdims=True)
    xc = hrow - mu
    var = jnp.mean(xc * xc, axis=-1, keepdims=True)
    x1 = xc * lax.rsqrt(var + eps) * g1_ref[...] + be1_ref[...]

    ff = jnp.dot(x1.astype(jnp.bfloat16), w1_ref[...],
                 preferred_element_type=jnp.float32) + b1_ref[...]
    if activation == 'relu':
        ff = jnp.maximum(ff, 0.0)
    else:  # exact (erf-based) GELU, matching torch.nn.GELU() default
        ff = 0.5 * ff * (1.0 + lax.erf(ff * (1.0 / math.sqrt(2.0))))
    ff = jnp.dot(ff.astype(jnp.bfloat16), w2_ref[...],
                 preferred_element_type=jnp.float32) + b2_ref[...]

    y = x1 + ff
    mu2 = jnp.mean(y, axis=-1, keepdims=True)
    yc = y - mu2
    var2 = jnp.mean(yc * yc, axis=-1, keepdims=True)
    x2 = yc * lax.rsqrt(var2 + eps) * g2_ref[...] + be2_ref[...]
    x2 = x2.reshape(Bt, N, D)

    t_out_ref[...] = x2[:, :TM].astype(t_out_ref.dtype)
    o_out_ref[...] = x2[:, TM:].astype(o_out_ref.dtype)


# ----------------------------- wrapper -----------------------------

def _pick_block_b(B, per_row_bytes, fixed_bytes, budget=24 * 1024 * 1024):
    """Largest batch block fitting the VMEM budget while keeping >=2 grid steps
    (v7x has two TensorCores; a grid of 1 idles half the chip)."""
    best = 1
    for cand in range(1, B + 1):
        if B % cand:
            continue
        if B >= 2 and B // cand < 2:
            continue
        if fixed_bytes + 2 * cand * per_row_bytes <= budget:
            best = cand
    return best


def block_encoder_layer(temporal_concat, others_concat, params, *,
                        nhead, activation, block_b=None):
    B, T, M, D = temporal_concat.shape
    S = others_concat.shape[1]
    H = nhead
    dh = D // H
    TM = T * M
    N = TM + S
    KW = M + S
    d_ff = params['w1_t'].shape[1]
    scale = 1.0 / math.sqrt(dh)

    # one pre-concatenated activation slab -> single DMA / step, no in-kernel row concat
    x_combined = jnp.concatenate(
        [temporal_concat.reshape(B, TM, D), others_concat], axis=1)      # (B, N, D)

    # fused [Q | K] weights; 1/sqrt(dh) folded into the Q half; bf16 for the MXU
    wqk = jnp.concatenate([params['wq_t'] * scale, params['wk_t']],
                          axis=1).astype(jnp.bfloat16)                   # (D, 2D)
    bqk = jnp.concatenate([params['bq'] * scale, params['bk']]
                          ).reshape(1, 2 * D).astype(jnp.float32)
    w1 = params['w1_t'].astype(jnp.bfloat16)
    w2 = params['w2_t'].astype(jnp.bfloat16)

    # ---- VMEM budgeting (sized for v7x's 64 MiB; v5e/v6e have 128 MiB) ----
    f32b, bf16b = 4, 2
    per_row = (N * D + TM * D + S * D + (T - 1) * M * H * KW + KW * H * KW) * f32b
    per_row += N * (2 * D + d_ff + 2 * D) * f32b            # rough in-kernel intermediates
    weight_bytes = ((D * 2 * D + D * d_ff + d_ff * D) * bf16b
                    + (2 * D + d_ff + 5 * D) * f32b)

    if block_b is None:
        block_b = _pick_block_b(B, per_row, 2 * weight_bytes)
    assert B % block_b == 0
    grid_b = B // block_b
    vmem_limit = int(min(max(2 * block_b * per_row + 2 * weight_bytes + (4 << 20),
                             32 << 20), 64 << 20))

    kern = functools.partial(_fused_block_encoder_kernel,
                             T=T, M=M, S=S, D=D, H=H,
                             activation=activation, eps=1e-5)

    def row_spec(shp):
        return pl.BlockSpec((block_b,) + shp, lambda b: (b, 0, 0))

    def wgt_spec(shp):
        return pl.BlockSpec(shp, lambda b: (0, 0))   # constant index map -> re-DMA elided

    t_out, o_out, t_attn_p, o_attn_p = pl.pallas_call(
        kern,
        out_shape=(
            jax.ShapeDtypeStruct((B, TM, D), temporal_concat.dtype),
            jax.ShapeDtypeStruct((B, S, D), others_concat.dtype),
            jax.ShapeDtypeStruct((B, (T - 1) * M, H * KW), jnp.float32),
            jax.ShapeDtypeStruct((B, KW, H * KW), jnp.float32),
        ),
        grid=(grid_b,),
        in_specs=[
            row_spec((N, D)),
            wgt_spec((D, 2 * D)), wgt_spec((1, 2 * D)),
            wgt_spec((D, d_ff)), wgt_spec((1, d_ff)),
            wgt_spec((d_ff, D)), wgt_spec((1, D)),
            wgt_spec((1, D)), wgt_spec((1, D)),
            wgt_spec((1, D)), wgt_spec((1, D)),
        ],
        out_specs=(
            row_spec((TM, D)),
            row_spec((S, D)),
            row_spec(((T - 1) * M, H * KW)),
            row_spec((KW, H * KW)),
        ),
        compiler_params=pltpu.CompilerParams(
            dimension_semantics=("parallel",),
            vmem_limit_bytes=vmem_limit),
    )(x_combined, wqk, bqk,
      w1, params['b1'].reshape(1, d_ff).astype(jnp.float32),
      w2, params['b2'].reshape(1, D).astype(jnp.float32),
      params['g1'].reshape(1, D), params['be1'].reshape(1, D),
      params['g2'].reshape(1, D), params['be2'].reshape(1, D))

    # layout plumbing back to the torch shapes (pure reshape/transpose in the wrapper)
    temporal_output = t_out.reshape(B, T, M, D)
    temporal_attnweight = (t_attn_p.reshape(B, T - 1, M, H, KW)
                           .transpose(0, 3, 1, 2, 4))                    # (B,H,T-1,M,M+S)
    others_attnweight = (o_attn_p.reshape(B, KW, H, KW)
                         .transpose(0, 2, 1, 3)
                         .reshape(B, H, 1, KW, KW))                      # (B,H,1,M+S,M+S)
    return temporal_output, o_out, temporal_attnweight, others_attnweight


# ----------------------------- params -----------------------------

def init_params(key, d_model, d_ff):
    ks = jax.random.split(key, 8)

    def u(k, shape, fan_in):
        bound = 1.0 / math.sqrt(fan_in)
        return jax.random.uniform(k, shape, jnp.float32, -bound, bound)

    wq = u(ks[0], (d_model, d_model), d_model)   # torch Linear weight layout (out, in)
    bq = u(ks[1], (d_model,), d_model)
    wk = u(ks[2], (d_model, d_model), d_model)
    bk = u(ks[3], (d_model,), d_model)
    w1 = u(ks[4], (d_ff, d_model), d_model)
    b1 = u(ks[5], (d_ff,), d_model)
    w2 = u(ks[6], (d_model, d_ff), d_ff)
    b2 = u(ks[7], (d_model,), d_ff)
    return dict(
        wq_t=wq.T, bq=bq, wk_t=wk.T, bk=bk,
        w1_t=w1.T, b1=b1, w2_t=w2.T, b2=b2,
        g1=jnp.ones((d_model,), jnp.float32), be1=jnp.zeros((d_model,), jnp.float32),
        g2=jnp.ones((d_model,), jnp.float32), be2=jnp.zeros((d_model,), jnp.float32),
    )


if __name__ == "__main__":
    key = jax.random.PRNGKey(0)
    # batch, time (incl. global slot), modalities, others; lane/sublane friendly sizes
    B, T, M, S = 4, 5, 2, 6
    D, D_FF, NHEAD = 128, 256, 4

    k1, k2, k3 = jax.random.split(key, 3)
    temporal = jax.random.normal(k1, (B, T, M, D), jnp.float32)
    others = jax.random.normal(k2, (B, S, D), jnp.float32)
    params = init_params(k3, D, D_FF)

    fwd = jax.jit(functools.partial(block_encoder_layer, nhead=NHEAD, activation='relu'))
    t_out, o_out, t_attn, o_attn = fwd(temporal, others, params)
    jax.block_until_ready((t_out, o_out, t_attn, o_attn))

    assert t_out.shape == temporal.shape
    assert o_out.shape == others.shape
    assert t_attn.shape == (B, NHEAD, T - 1, M, M + S)
    assert o_attn.shape == (B, NHEAD, 1, M + S, M + S)
    # attention rows are exact softmax outputs -> rows sum to 1
    assert jnp.allclose(jnp.sum(t_attn, axis=-1), 1.0, atol=1e-3)
    assert jnp.allclose(jnp.sum(o_attn, axis=-1), 1.0, atol=1e-3)
    print("KERNEL_OK")
</pallas_src>

<mosaic_0001>
module attributes {stable_mosaic.version = 11 : i64} {
  func.func @_fused_block_encoder_kernel(%arg0: i32, %arg1: memref<2x16x128xf32, #tpu.memory_space<vmem>>, %arg2: memref<128x256xbf16, #tpu.memory_space<vmem>>, %arg3: memref<1x256xf32, #tpu.memory_space<vmem>>, %arg4: memref<128x256xbf16, #tpu.memory_space<vmem>>, %arg5: memref<1x256xf32, #tpu.memory_space<vmem>>, %arg6: memref<256x128xbf16, #tpu.memory_space<vmem>>, %arg7: memref<1x128xf32, #tpu.memory_space<vmem>>, %arg8: memref<1x128xf32, #tpu.memory_space<vmem>>, %arg9: memref<1x128xf32, #tpu.memory_space<vmem>>, %arg10: memref<1x128xf32, #tpu.memory_space<vmem>>, %arg11: memref<1x128xf32, #tpu.memory_space<vmem>>, %arg12: memref<2x10x128xf32, #tpu.memory_space<vmem>>, %arg13: memref<2x6x128xf32, #tpu.memory_space<vmem>>, %arg14: memref<2x8x32xf32, #tpu.memory_space<vmem>>, %arg15: memref<2x8x32xf32, #tpu.memory_space<vmem>>) attributes {dimension_semantics = [#tpu.dimension_semantics<parallel>], iteration_bounds = array<i64: 2>, scalar_prefetch = 0 : i64, scratch_operands = 0 : i64, tpu.core_type = #tpu.core_type<tc>, window_params = [{transform_indices = @transform_0, window_bounds = array<i64: 2, 16, 128>}, {pipeline_mode = #tpu.pipeline_mode<synchronous>, transform_indices = @transform_1, window_bounds = array<i64: 128, 256>}, {pipeline_mode = #tpu.pipeline_mode<synchronous>, transform_indices = @transform_2, window_bounds = array<i64: 1, 256>}, {pipeline_mode = #tpu.pipeline_mode<synchronous>, transform_indices = @transform_3, window_bounds = array<i64: 128, 256>}, {pipeline_mode = #tpu.pipeline_mode<synchronous>, transform_indices = @transform_4, window_bounds = array<i64: 1, 256>}, {pipeline_mode = #tpu.pipeline_mode<synchronous>, transform_indices = @transform_5, window_bounds = array<i64: 256, 128>}, {pipeline_mode = #tpu.pipeline_mode<synchronous>, transform_indices = @transform_6, window_bounds = array<i64: 1, 128>}, {pipeline_mode = #tpu.pipeline_mode<synchronous>, transform_indices = @transform_7, window_bounds = array<i64: 1, 128>}, {pipeline_mode = #tpu.pipeline_mode<synchronous>, transform_indices = @transform_8, window_bounds = array<i64: 1, 128>}, {pipeline_mode = #tpu.pipeline_mode<synchronous>, transform_indices = @transform_9, window_bounds = array<i64: 1, 128>}, {pipeline_mode = #tpu.pipeline_mode<synchronous>, transform_indices = @transform_10, window_bounds = array<i64: 1, 128>}, {transform_indices = @transform_11, window_bounds = array<i64: 2, 10, 128>}, {transform_indices = @transform_12, window_bounds = array<i64: 2, 6, 128>}, {transform_indices = @transform_13, window_bounds = array<i64: 2, 8, 32>}, {transform_indices = @transform_14, window_bounds = array<i64: 2, 8, 32>}]} {
    %c0 = arith.constant 0 : index
    %c0_0 = arith.constant 0 : index
    %c0_1 = arith.constant 0 : index
    %0 = vector.load %arg1[%c0, %c0_0, %c0_1] : memref<2x16x128xf32, #tpu.memory_space<vmem>>, vector<2x16x128xf32>
    %1 = vector.shape_cast %0 : vector<2x16x128xf32> to vector<32x128xf32>
    %2 = arith.truncf %1 : vector<32x128xf32> to vector<32x128xbf16>
    %c0_2 = arith.constant 0 : index
    %c0_3 = arith.constant 0 : index
    %3 = vector.load %arg2[%c0_2, %c0_3] : memref<128x256xbf16, #tpu.memory_space<vmem>>, vector<128x256xbf16>
    %cst = arith.constant dense<0.000000e+00> : vector<32x256xf32>
    %4 = tpu.matmul %2, %3, %cst {dimension_numbers = #tpu.dot_dimension_numbers<[1], [0], [0], [1], [0, 0, 1, 1], [], []>} : vector<32x128xbf16>, vector<128x256xbf16>, vector<32x256xf32> -> vector<32x256xf32>
    %c0_4 = arith.constant 0 : index
    %c0_5 = arith.constant 0 : index
    %5 = vector.load %arg3[%c0_4, %c0_5] : memref<1x256xf32, #tpu.memory_space<vmem>>, vector<1x256xf32>
    %6 = vector.broadcast %5 : vector<1x256xf32> to vector<32x256xf32>
    %7 = arith.addf %4, %6 : vector<32x256xf32>
    %8 = vector.extract_strided_slice %7 {offsets = [0, 0], sizes = [32, 128], strides = [1, 1]} : vector<32x256xf32> to vector<32x128xf32>
    %9 = vector.shape_cast %8 : vector<32x128xf32> to vector<2x16x128xf32>
    %10 = vector.extract_strided_slice %7 {offsets = [0, 128], sizes = [32, 128], strides = [1, 1]} : vector<32x256xf32> to vector<32x128xf32>
    %11 = vector.shape_cast %10 : vector<32x128xf32> to vector<2x16x128xf32>
    %12 = vector.extract_strided_slice %9 {offsets = [0, 2, 0], sizes = [2, 8, 128], strides = [1, 1, 1]} : vector<2x16x128xf32> to vector<2x8x128xf32>
    %13 = vector.extract_strided_slice %11 {offsets = [0, 2, 0], sizes = [2, 8, 128], strides = [1, 1, 1]} : vector<2x16x128xf32> to vector<2x8x128xf32>
    %14 = vector.extract_strided_slice %11 {offsets = [0, 10, 0], sizes = [2, 6, 128], strides = [1, 1, 1]} : vector<2x16x128xf32> to vector<2x6x128xf32>
    %15 = vector.extract_strided_slice %9 {offsets = [0, 0, 0], sizes = [2, 2, 128], strides = [1, 1, 1]} : vector<2x16x128xf32> to vector<2x2x128xf32>
    %16 = vector.extract_strided_slice %9 {offsets = [0, 10, 0], sizes = [2, 6, 128], strides = [1, 1, 1]} : vector<2x16x128xf32> to vector<2x6x128xf32>
    %17 = tpu.concatenate %15, %16 in 1 : vector<2x2x128xf32>, vector<2x6x128xf32> -> vector<2x8x128xf32>
    %18 = vector.extract_strided_slice %11 {offsets = [0, 0, 0], sizes = [2, 2, 128], strides = [1, 1, 1]} : vector<2x16x128xf32> to vector<2x2x128xf32>
    %19 = vector.extract_strided_slice %11 {offsets = [0, 10, 0], sizes = [2, 6, 128], strides = [1, 1, 1]} : vector<2x16x128xf32> to vector<2x6x128xf32>
    %20 = tpu.concatenate %18, %19 in 1 : vector<2x2x128xf32>, vector<2x6x128xf32> -> vector<2x8x128xf32>
    %21 = vector.shape_cast %12 : vector<2x8x128xf32> to vector<8x2x128xf32>
    %22 = vector.shape_cast %13 : vector<2x8x128xf32> to vector<8x2x128xf32>
    %23 = vector.extract_strided_slice %21 {offsets = [0, 0, 0], sizes = [8, 2, 32], strides = [1, 1, 1]} : vector<8x2x128xf32> to vector<8x2x32xf32>
    %24 = vector.extract_strided_slice %22 {offsets = [0, 0, 0], sizes = [8, 2, 32], strides = [1, 1, 1]} : vector<8x2x128xf32> to vector<8x2x32xf32>
    %cst_6 = arith.constant dense<0.000000e+00> : vector<8x2x2xf32>
    %25 = tpu.matmul %23, %24, %cst_6 {dimension_numbers = #tpu.dot_dimension_numbers<[2], [2], [1], [1], [0, 0, 0, 1, 1, 1], [0], [0]>} : vector<8x2x32xf32>, vector<8x2x32xf32>, vector<8x2x2xf32> -> vector<8x2x2xf32>
    %26 = vector.shape_cast %25 : vector<8x2x2xf32> to vector<2x8x2xf32>
    %27 = vector.extract_strided_slice %12 {offsets = [0, 0, 0], sizes = [2, 8, 32], strides = [1, 1, 1]} : vector<2x8x128xf32> to vector<2x8x32xf32>
    %28 = vector.extract_strided_slice %14 {offsets = [0, 0, 0], sizes = [2, 6, 32], strides = [1, 1, 1]} : vector<2x6x128xf32> to vector<2x6x32xf32>
    %cst_7 = arith.constant dense<0.000000e+00> : vector<2x8x6xf32>
    %29 = tpu.matmul %27, %28, %cst_7 {dimension_numbers = #tpu.dot_dimension_numbers<[2], [2], [1], [1], [0, 0, 0, 1, 1, 1], [0], [0]>} : vector<2x8x32xf32>, vector<2x6x32xf32>, vector<2x8x6xf32> -> vector<2x8x6xf32>
    %30 = tpu.concatenate %26, %29 in 2 : vector<2x8x2xf32>, vector<2x8x6xf32> -> vector<2x8x8xf32>
    %cst_8 = arith.constant dense<0xFF800000> : vector<2x8xf32>
    %31 = vector.multi_reduction <maximumf>, %30, %cst_8 [2] : vector<2x8x8xf32> to vector<2x8xf32>
    %32 = vector.shape_cast %31 : vector<2x8xf32> to vector<2x8x1xf32>
    %33 = vector.broadcast %32 : vector<2x8x1xf32> to vector<2x8x8xf32>
    %34 = arith.subf %30, %33 : vector<2x8x8xf32>
    %35 = math.exp %34 : vector<2x8x8xf32>
    %cst_9 = arith.constant dense<0.000000e+00> : vector<2x8xf32>
    %36 = vector.multi_reduction <add>, %35, %cst_9 [2] : vector<2x8x8xf32> to vector<2x8xf32>
    %37 = vector.shape_cast %36 : vector<2x8xf32> to vector<2x8x1xf32>
    %38 = vector.broadcast %37 : vector<2x8x1xf32> to vector<2x8x8xf32>
    %39 = arith.divf %35, %38 : vector<2x8x8xf32>
    %40 = vector.extract_strided_slice %17 {offsets = [0, 0, 0], sizes = [2, 8, 32], strides = [1, 1, 1]} : vector<2x8x128xf32> to vector<2x8x32xf32>
    %41 = vector.extract_strided_slice %20 {offsets = [0, 0, 0], sizes = [2, 8, 32], strides = [1, 1, 1]} : vector<2x8x128xf32> to vector<2x8x32xf32>
    %cst_10 = arith.constant dense<0.000000e+00> : vector<2x8x8xf32>
    %42 = tpu.matmul %40, %41, %cst_10 {dimension_numbers = #tpu.dot_dimension_numbers<[2], [2], [1], [1], [0, 0, 0, 1, 1, 1], [0], [0]>} : vector<2x8x32xf32>, vector<2x8x32xf32>, vector<2x8x8xf32> -> vector<2x8x8xf32>
    %cst_11 = arith.constant dense<0xFF800000> : vector<2x8xf32>
    %43 = vector.multi_reduction <maximumf>, %42, %cst_11 [2] : vector<2x8x8xf32> to vector<2x8xf32>
    %44 = vector.shape_cast %43 : vector<2x8xf32> to vector<2x8x1xf32>
    %45 = vector.broadcast %44 : vector<2x8x1xf32> to vector<2x8x8xf32>
    %46 = arith.subf %42, %45 : vector<2x8x8xf32>
    %47 = math.exp %46 : vector<2x8x8xf32>
    %cst_12 = arith.constant dense<0.000000e+00> : vector<2x8xf32>
    %48 = vector.multi_reduction <add>, %47, %cst_12 [2] : vector<2x8x8xf32> to vector<2x8xf32>
    %49 = vector.shape_cast %48 : vector<2x8xf32> to vector<2x8x1xf32>
    %50 = vector.broadcast %49 : vector<2x8x1xf32> to vector<2x8x8xf32>
    %51 = arith.divf %47, %50 : vector<2x8x8xf32>
    %52 = vector.extract_strided_slice %21 {offsets = [0, 0, 32], sizes = [8, 2, 32], strides = [1, 1, 1]} : vector<8x2x128xf32> to vector<8x2x32xf32>
    %53 = vector.extract_strided_slice %22 {offsets = [0, 0, 32], sizes = [8, 2, 32], strides = [1, 1, 1]} : vector<8x2x128xf32> to vector<8x2x32xf32>
    %cst_13 = arith.constant dense<0.000000e+00> : vector<8x2x2xf32>
    %54 = tpu.matmul %52, %53, %cst_13 {dimension_numbers = #tpu.dot_dimension_numbers<[2], [2], [1], [1], [0, 0, 0, 1, 1, 1], [0], [0]>} : vector<8x2x32xf32>, vector<8x2x32xf32>, vector<8x2x2xf32> -> vector<8x2x2xf32>
    %55 = vector.shape_cast %54 : vector<8x2x2xf32> to vector<2x8x2xf32>
    %56 = vector.extract_strided_slice %12 {offsets = [0, 0, 32], sizes = [2, 8, 32], strides = [1, 1, 1]} : vector<2x8x128xf32> to vector<2x8x32xf32>
    %57 = vector.extract_strided_slice %14 {offsets = [0, 0, 32], sizes = [2, 6, 32], strides = [1, 1, 1]} : vector<2x6x128xf32> to vector<2x6x32xf32>
    %cst_14 = arith.constant dense<0.000000e+00> : vector<2x8x6xf32>
    %58 = tpu.matmul %56, %57, %cst_14 {dimension_numbers = #tpu.dot_dimension_numbers<[2], [2], [1], [1], [0, 0, 0, 1, 1, 1], [0], [0]>} : vector<2x8x32xf32>, vector<2x6x32xf32>, vector<2x8x6xf32> -> vector<2x8x6xf32>
    %59 = tpu.concatenate %55, %58 in 2 : vector<2x8x2xf32>, vector<2x8x6xf32> -> vector<2x8x8xf32>
    %cst_15 = arith.constant dense<0xFF800000> : vector<2x8xf32>
    %60 = vector.multi_reduction <maximumf>, %59, %cst_15 [2] : vector<2x8x8xf32> to vector<2x8xf32>
    %61 = vector.shape_cast %60 : vector<2x8xf32> to vector<2x8x1xf32>
    %62 = vector.broadcast %61 : vector<2x8x1xf32> to vector<2x8x8xf32>
    %63 = arith.subf %59, %62 : vector<2x8x8xf32>
    %64 = math.exp %63 : vector<2x8x8xf32>
    %cst_16 = arith.constant dense<0.000000e+00> : vector<2x8xf32>
    %65 = vector.multi_reduction <add>, %64, %cst_16 [2] : vector<2x8x8xf32> to vector<2x8xf32>
    %66 = vector.shape_cast %65 : vector<2x8xf32> to vector<2x8x1xf32>
    %67 = vector.broadcast %66 : vector<2x8x1xf32> to vector<2x8x8xf32>
    %68 = arith.divf %64, %67 : vector<2x8x8xf32>
    %69 = vector.extract_strided_slice %17 {offsets = [0, 0, 32], sizes = [2, 8, 32], strides = [1, 1, 1]} : vector<2x8x128xf32> to vector<2x8x32xf32>
    %70 = vector.extract_strided_slice %20 {offsets = [0, 0, 32], sizes = [2, 8, 32], strides = [1, 1, 1]} : vector<2x8x128xf32> to vector<2x8x32xf32>
    %cst_17 = arith.constant dense<0.000000e+00> : vector<2x8x8xf32>
    %71 = tpu.matmul %69, %70, %cst_17 {dimension_numbers = #tpu.dot_dimension_numbers<[2], [2], [1], [1], [0, 0, 0, 1, 1, 1], [0], [0]>} : vector<2x8x32xf32>, vector<2x8x32xf32>, vector<2x8x8xf32> -> vector<2x8x8xf32>
    %cst_18 = arith.constant dense<0xFF800000> : vector<2x8xf32>
    %72 = vector.multi_reduction <maximumf>, %71, %cst_18 [2] : vector<2x8x8xf32> to vector<2x8xf32>
    %73 = vector.shape_cast %72 : vector<2x8xf32> to vector<2x8x1xf32>
    %74 = vector.broadcast %73 : vector<2x8x1xf32> to vector<2x8x8xf32>
    %75 = arith.subf %71, %74 : vector<2x8x8xf32>
    %76 = math.exp %75 : vector<2x8x8xf32>
    %cst_19 = arith.constant dense<0.000000e+00> : vector<2x8xf32>
    %77 = vector.multi_reduction <add>, %76, %cst_19 [2] : vector<2x8x8xf32> to vector<2x8xf32>
    %78 = vector.shape_cast %77 : vector<2x8xf32> to vector<2x8x1xf32>
    %79 = vector.broadcast %78 : vector<2x8x1xf32> to vector<2x8x8xf32>
    %80 = arith.divf %76, %79 : vector<2x8x8xf32>
    %81 = vector.extract_strided_slice %21 {offsets = [0, 0, 64], sizes = [8, 2, 32], strides = [1, 1, 1]} : vector<8x2x128xf32> to vector<8x2x32xf32>
    %82 = vector.extract_strided_slice %22 {offsets = [0, 0, 64], sizes = [8, 2, 32], strides = [1, 1, 1]} : vector<8x2x128xf32> to vector<8x2x32xf32>
    %cst_20 = arith.constant dense<0.000000e+00> : vector<8x2x2xf32>
    %83 = tpu.matmul %81, %82, %cst_20 {dimension_numbers = #tpu.dot_dimension_numbers<[2], [2], [1], [1], [0, 0, 0, 1, 1, 1], [0], [0]>} : vector<8x2x32xf32>, vector<8x2x32xf32>, vector<8x2x2xf32> -> vector<8x2x2xf32>
    %84 = vector.shape_cast %83 : vector<8x2x2xf32> to vector<2x8x2xf32>
    %85 = vector.extract_strided_slice %12 {offsets = [0, 0, 64], sizes = [2, 8, 32], strides = [1, 1, 1]} : vector<2x8x128xf32> to vector<2x8x32xf32>
    %86 = vector.extract_strided_slice %14 {offsets = [0, 0, 64], sizes = [2, 6, 32], strides = [1, 1, 1]} : vector<2x6x128xf32> to vector<2x6x32xf32>
    %cst_21 = arith.constant dense<0.000000e+00> : vector<2x8x6xf32>
    %87 = tpu.matmul %85, %86, %cst_21 {dimension_numbers = #tpu.dot_dimension_numbers<[2], [2], [1], [1], [0, 0, 0, 1, 1, 1], [0], [0]>} : vector<2x8x32xf32>, vector<2x6x32xf32>, vector<2x8x6xf32> -> vector<2x8x6xf32>
    %88 = tpu.concatenate %84, %87 in 2 : vector<2x8x2xf32>, vector<2x8x6xf32> -> vector<2x8x8xf32>
    %cst_22 = arith.constant dense<0xFF800000> : vector<2x8xf32>
    %89 = vector.multi_reduction <maximumf>, %88, %cst_22 [2] : vector<2x8x8xf32> to vector<2x8xf32>
    %90 = vector.shape_cast %89 : vector<2x8xf32> to vector<2x8x1xf32>
    %91 = vector.broadcast %90 : vector<2x8x1xf32> to vector<2x8x8xf32>
    %92 = arith.subf %88, %91 : vector<2x8x8xf32>
    %93 = math.exp %92 : vector<2x8x8xf32>
    %cst_23 = arith.constant dense<0.000000e+00> : vector<2x8xf32>
    %94 = vector.multi_reduction <add>, %93, %cst_23 [2] : vector<2x8x8xf32> to vector<2x8xf32>
    %95 = vector.shape_cast %94 : vector<2x8xf32> to vector<2x8x1xf32>
    %96 = vector.broadcast %95 : vector<2x8x1xf32> to vector<2x8x8xf32>
    %97 = arith.divf %93, %96 : vector<2x8x8xf32>
    %98 = vector.extract_strided_slice %17 {offsets = [0, 0, 64], sizes = [2, 8, 32], strides = [1, 1, 1]} : vector<2x8x128xf32> to vector<2x8x32xf32>
    %99 = vector.extract_strided_slice %20 {offsets = [0, 0, 64], sizes = [2, 8, 32], strides = [1, 1, 1]} : vector<2x8x128xf32> to vector<2x8x32xf32>
    %cst_24 = arith.constant dense<0.000000e+00> : vector<2x8x8xf32>
    %100 = tpu.matmul %98, %99, %cst_24 {dimension_numbers = #tpu.dot_dimension_numbers<[2], [2], [1], [1], [0, 0, 0, 1, 1, 1], [0], [0]>} : vector<2x8x32xf32>, vector<2x8x32xf32>, vector<2x8x8xf32> -> vector<2x8x8xf32>
    %cst_25 = arith.constant dense<0xFF800000> : vector<2x8xf32>
    %101 = vector.multi_reduction <maximumf>, %100, %cst_25 [2] : vector<2x8x8xf32> to vector<2x8xf32>
    %102 = vector.shape_cast %101 : vector<2x8xf32> to vector<2x8x1xf32>
    %103 = vector.broadcast %102 : vector<2x8x1xf32> to vector<2x8x8xf32>
    %104 = arith.subf %100, %103 : vector<2x8x8xf32>
    %105 = math.exp %104 : vector<2x8x8xf32>
    %cst_26 = arith.constant dense<0.000000e+00> : vector<2x8xf32>
    %106 = vector.multi_reduction <add>, %105, %cst_26 [2] : vector<2x8x8xf32> to vector<2x8xf32>
    %107 = vector.shape_cast %106 : vector<2x8xf32> to vector<2x8x1xf32>
    %108 = vector.broadcast %107 : vector<2x8x1xf32> to vector<2x8x8xf32>
    %109 = arith.divf %105, %108 : vector<2x8x8xf32>
    %110 = vector.extract_strided_slice %21 {offsets = [0, 0, 96], sizes = [8, 2, 32], strides = [1, 1, 1]} : vector<8x2x128xf32> to vector<8x2x32xf32>
    %111 = vector.extract_strided_slice %22 {offsets = [0, 0, 96], sizes = [8, 2, 32], strides = [1, 1, 1]} : vector<8x2x128xf32> to vector<8x2x32xf32>
    %cst_27 = arith.constant dense<0.000000e+00> : vector<8x2x2xf32>
    %112 = tpu.matmul %110, %111, %cst_27 {dimension_numbers = #tpu.dot_dimension_numbers<[2], [2], [1], [1], [0, 0, 0, 1, 1, 1], [0], [0]>} : vector<8x2x32xf32>, vector<8x2x32xf32>, vector<8x2x2xf32> -> vector<8x2x2xf32>
    %113 = vector.shape_cast %112 : vector<8x2x2xf32> to vector<2x8x2xf32>
    %114 = vector.extract_strided_slice %12 {offsets = [0, 0, 96], sizes = [2, 8, 32], strides = [1, 1, 1]} : vector<2x8x128xf32> to vector<2x8x32xf32>
    %115 = vector.extract_strided_slice %14 {offsets = [0, 0, 96], sizes = [2, 6, 32], strides = [1, 1, 1]} : vector<2x6x128xf32> to vector<2x6x32xf32>
    %cst_28 = arith.constant dense<0.000000e+00> : vector<2x8x6xf32>
    %116 = tpu.matmul %114, %115, %cst_28 {dimension_numbers = #tpu.dot_dimension_numbers<[2], [2], [1], [1], [0, 0, 0, 1, 1, 1], [0], [0]>} : vector<2x8x32xf32>, vector<2x6x32xf32>, vector<2x8x6xf32> -> vector<2x8x6xf32>
    %117 = tpu.concatenate %113, %116 in 2 : vector<2x8x2xf32>, vector<2x8x6xf32> -> vector<2x8x8xf32>
    %cst_29 = arith.constant dense<0xFF800000> : vector<2x8xf32>
    %118 = vector.multi_reduction <maximumf>, %117, %cst_29 [2] : vector<2x8x8xf32> to vector<2x8xf32>
    %119 = vector.shape_cast %118 : vector<2x8xf32> to vector<2x8x1xf32>
    %120 = vector.broadcast %119 : vector<2x8x1xf32> to vector<2x8x8xf32>
    %121 = arith.subf %117, %120 : vector<2x8x8xf32>
    %122 = math.exp %121 : vector<2x8x8xf32>
    %cst_30 = arith.constant dense<0.000000e+00> : vector<2x8xf32>
    %123 = vector.multi_reduction <add>, %122, %cst_30 [2] : vector<2x8x8xf32> to vector<2x8xf32>
    %124 = vector.shape_cast %123 : vector<2x8xf32> to vector<2x8x1xf32>
    %125 = vector.broadcast %124 : vector<2x8x1xf32> to vector<2x8x8xf32>
    %126 = arith.divf %122, %125 : vector<2x8x8xf32>
    %127 = vector.extract_strided_slice %17 {offsets = [0, 0, 96], sizes = [2, 8, 32], strides = [1, 1, 1]} : vector<2x8x128xf32> to vector<2x8x32xf32>
    %128 = vector.extract_strided_slice %20 {offsets = [0, 0, 96], sizes = [2, 8, 32], strides = [1, 1, 1]} : vector<2x8x128xf32> to vector<2x8x32xf32>
    %cst_31 = arith.constant dense<0.000000e+00> : vector<2x8x8xf32>
    %129 = tpu.matmul %127, %128, %cst_31 {dimension_numbers = #tpu.dot_dimension_numbers<[2], [2], [1], [1], [0, 0, 0, 1, 1, 1], [0], [0]>} : vector<2x8x32xf32>, vector<2x8x32xf32>, vector<2x8x8xf32> -> vector<2x8x8xf32>
    %cst_32 = arith.constant dense<0xFF800000> : vector<2x8xf32>
    %130 = vector.multi_reduction <maximumf>, %129, %cst_32 [2] : vector<2x8x8xf32> to vector<2x8xf32>
    %131 = vector.shape_cast %130 : vector<2x8xf32> to vector<2x8x1xf32>
    %132 = vector.broadcast %131 : vector<2x8x1xf32> to vector<2x8x8xf32>
    %133 = arith.subf %129, %132 : vector<2x8x8xf32>
    %134 = math.exp %133 : vector<2x8x8xf32>
    %cst_33 = arith.constant dense<0.000000e+00> : vector<2x8xf32>
    %135 = vector.multi_reduction <add>, %134, %cst_33 [2] : vector<2x8x8xf32> to vector<2x8xf32>
    %136 = vector.shape_cast %135 : vector<2x8xf32> to vector<2x8x1xf32>
    %137 = vector.broadcast %136 : vector<2x8x1xf32> to vector<2x8x8xf32>
    %138 = arith.divf %134, %137 : vector<2x8x8xf32>
    %139 = tpu.concatenate %39, %68, %97, %126 in 2 : vector<2x8x8xf32>, vector<2x8x8xf32>, vector<2x8x8xf32>, vector<2x8x8xf32> -> vector<2x8x32xf32>
    %c0_34 = arith.constant 0 : index
    %c0_35 = arith.constant 0 : index
    %c0_36 = arith.constant 0 : index
    %140 = vector.load %arg14[%c0_34, %c0_35, %c0_36] : memref<2x8x32xf32, #tpu.memory_space<vmem>>, vector<2x8x32xf32>
    tpu.vector_store %arg14[%c0_34, %c0_35, %c0_36], %139 {strides = array<i32>} : memref<2x8x32xf32, #tpu.memory_space<vmem>>, vector<2x8x32xf32>,
    %141 = tpu.concatenate %51, %80, %109, %138 in 2 : vector<2x8x8xf32>, vector<2x8x8xf32>, vector<2x8x8xf32>, vector<2x8x8xf32> -> vector<2x8x32xf32>
    %c0_37 = arith.constant 0 : index
    %c0_38 = arith.constant 0 : index
    %c0_39 = arith.constant 0 : index
    %142 = vector.load %arg15[%c0_37, %c0_38, %c0_39] : memref<2x8x32xf32, #tpu.memory_space<vmem>>, vector<2x8x32xf32>
    tpu.vector_store %arg15[%c0_37, %c0_38, %c0_39], %141 {strides = array<i32>} : memref<2x8x32xf32, #tpu.memory_space<vmem>>, vector<2x8x32xf32>,
    %143 = arith.addf %1, %1 : vector<32x128xf32>
    %cst_40 = arith.constant dense<0.000000e+00> : vector<32xf32>
    %144 = vector.multi_reduction <add>, %143, %cst_40 [1] : vector<32x128xf32> to vector<32xf32>
    %145 = vector.shape_cast %144 : vector<32xf32> to vector<32x1xf32>
    %cst_41 = arith.constant 1.280000e+02 : f32
    %146 = vector.broadcast %cst_41 : f32 to vector<32x1xf32>
    %147 = arith.divf %145, %146 : vector<32x1xf32>
    %148 = vector.broadcast %147 : vector<32x1xf32> to vector<32x128xf32>
    %149 = arith.subf %143, %148 : vector<32x128xf32>
    %150 = arith.mulf %149, %149 : vector<32x128xf32>
    %cst_42 = arith.constant dense<0.000000e+00> : vector<32xf32>
    %151 = vector.multi_reduction <add>, %150, %cst_42 [1] : vector<32x128xf32> to vector<32xf32>
    %152 = vector.shape_cast %151 : vector<32xf32> to vector<32x1xf32>
    %cst_43 = arith.constant 1.280000e+02 : f32
    %153 = vector.broadcast %cst_43 : f32 to vector<32x1xf32>
    %154 = arith.divf %152, %153 : vector<32x1xf32>
    %cst_44 = arith.constant 9.99999974E-6 : f32
    %155 = vector.broadcast %cst_44 : f32 to vector<32x1xf32>
    %156 = arith.addf %154, %155 : vector<32x1xf32>
    %157 = math.rsqrt %156 : vector<32x1xf32>
    %158 = vector.broadcast %157 : vector<32x1xf32> to vector<32x128xf32>
    %159 = arith.mulf %149, %158 : vector<32x128xf32>
    %c0_45 = arith.constant 0 : index
    %c0_46 = arith.constant 0 : index
    %160 = vector.load %arg8[%c0_45, %c0_46] : memref<1x128xf32, #tpu.memory_space<vmem>>, vector<1x128xf32>
    %161 = vector.broadcast %160 : vector<1x128xf32> to vector<32x128xf32>
    %162 = arith.mulf %159, %161 : vector<32x128xf32>
    %c0_47 = arith.constant 0 : index
    %c0_48 = arith.constant 0 : index
    %163 = vector.load %arg9[%c0_47, %c0_48] : memref<1x128xf32, #tpu.memory_space<vmem>>, vector<1x128xf32>
    %164 = vector.broadcast %163 : vector<1x128xf32> to vector<32x128xf32>
    %165 = arith.addf %162, %164 : vector<32x128xf32>
    %166 = arith.truncf %165 : vector<32x128xf32> to vector<32x128xbf16>
    %c0_49 = arith.constant 0 : index
    %c0_50 = arith.constant 0 : index
    %167 = vector.load %arg4[%c0_49, %c0_50] : memref<128x256xbf16, #tpu.memory_space<vmem>>, vector<128x256xbf16>
    %cst_51 = arith.constant dense<0.000000e+00> : vector<32x256xf32>
    %168 = tpu.matmul %166, %167, %cst_51 {dimension_numbers = #tpu.dot_dimension_numbers<[1], [0], [0], [1], [0, 0, 1, 1], [], []>} : vector<32x128xbf16>, vector<128x256xbf16>, vector<32x256xf32> -> vector<32x256xf32>
    %c0_52 = arith.constant 0 : index
    %c0_53 = arith.constant 0 : index
    %169 = vector.load %arg5[%c0_52, %c0_53] : memref<1x256xf32, #tpu.memory_space<vmem>>, vector<1x256xf32>
    %170 = vector.broadcast %169 : vector<1x256xf32> to vector<32x256xf32>
    %171 = arith.addf %168, %170 : vector<32x256xf32>
    %cst_54 = arith.constant 0.000000e+00 : f32
    %172 = vector.broadcast %cst_54 : f32 to vector<32x256xf32>
    %173 = arith.maximumf %171, %172 : vector<32x256xf32>
    %174 = arith.truncf %173 : vector<32x256xf32> to vector<32x256xbf16>
    %c0_55 = arith.constant 0 : index
    %c0_56 = arith.constant 0 : index
    %175 = vector.load %arg6[%c0_55, %c0_56] : memref<256x128xbf16, #tpu.memory_space<vmem>>, vector<256x128xbf16>
    %cst_57 = arith.constant dense<0.000000e+00> : vector<32x128xf32>
    %176 = tpu.matmul %174, %175, %cst_57 {dimension_numbers = #tpu.dot_dimension_numbers<[1], [0], [0], [1], [0, 0, 1, 1], [], []>} : vector<32x256xbf16>, vector<256x128xbf16>, vector<32x128xf32> -> vector<32x128xf32>
    %c0_58 = arith.constant 0 : index
    %c0_59 = arith.constant 0 : index
    %177 = vector.load %arg7[%c0_58, %c0_59] : memref<1x128xf32, #tpu.memory_space<vmem>>, vector<1x128xf32>
    %178 = vector.broadcast %177 : vector<1x128xf32> to vector<32x128xf32>
    %179 = arith.addf %176, %178 : vector<32x128xf32>
    %180 = arith.addf %165, %179 : vector<32x128xf32>
    %cst_60 = arith.constant dense<0.000000e+00> : vector<32xf32>
    %181 = vector.multi_reduction <add>, %180, %cst_60 [1] : vector<32x128xf32> to vector<32xf32>
    %182 = vector.shape_cast %181 : vector<32xf32> to vector<32x1xf32>
    %cst_61 = arith.constant 1.280000e+02 : f32
    %183 = vector.broadcast %cst_61 : f32 to vector<32x1xf32>
    %184 = arith.divf %182, %183 : vector<32x1xf32>
    %185 = vector.broadcast %184 : vector<32x1xf32> to vector<32x128xf32>
    %186 = arith.subf %180, %185 : vector<32x128xf32>
    %187 = arith.mulf %186, %186 : vector<32x128xf32>
    %cst_62 = arith.constant dense<0.000000e+00> : vector<32xf32>
    %188 = vector.multi_reduction <add>, %187, %cst_62 [1] : vector<32x128xf32> to vector<32xf32>
    %189 = vector.shape_cast %188 : vector<32xf32> to vector<32x1xf32>
    %cst_63 = arith.constant 1.280000e+02 : f32
    %190 = vector.broadcast %cst_63 : f32 to vector<32x1xf32>
    %191 = arith.divf %189, %190 : vector<32x1xf32>
    %cst_64 = arith.constant 9.99999974E-6 : f32
    %192 = vector.broadcast %cst_64 : f32 to vector<32x1xf32>
    %193 = arith.addf %191, %192 : vector<32x1xf32>
    %194 = math.rsqrt %193 : vector<32x1xf32>
    %195 = vector.broadcast %194 : vector<32x1xf32> to vector<32x128xf32>
    %196 = arith.mulf %186, %195 : vector<32x128xf32>
    %c0_65 = arith.constant 0 : index
    %c0_66 = arith.constant 0 : index
    %197 = vector.load %arg10[%c0_65, %c0_66] : memref<1x128xf32, #tpu.memory_space<vmem>>, vector<1x128xf32>
    %198 = vector.broadcast %197 : vector<1x128xf32> to vector<32x128xf32>
    %199 = arith.mulf %196, %198 : vector<32x128xf32>
    %c0_67 = arith.constant 0 : index
    %c0_68 = arith.constant 0 : index
    %200 = vector.load %arg11[%c0_67, %c0_68] : memref<1x128xf32, #tpu.memory_space<vmem>>, vector<1x128xf32>
    %201 = vector.broadcast %200 : vector<1x128xf32> to vector<32x128xf32>
    %202 = arith.addf %199, %201 : vector<32x128xf32>
    %203 = vector.shape_cast %202 : vector<32x128xf32> to vector<2x16x128xf32>
    %204 = vector.extract_strided_slice %203 {offsets = [0, 0, 0], sizes = [2, 10, 128], strides = [1, 1, 1]} : vector<2x16x128xf32> to vector<2x10x128xf32>
    %c0_69 = arith.constant 0 : index
    %c0_70 = arith.constant 0 : index
    %c0_71 = arith.constant 0 : index
    %205 = vector.load %arg12[%c0_69, %c0_70, %c0_71] : memref<2x10x128xf32, #tpu.memory_space<vmem>>, vector<2x10x128xf32>
    tpu.vector_store %arg12[%c0_69, %c0_70, %c0_71], %204 {strides = array<i32>} : memref<2x10x128xf32, #tpu.memory_space<vmem>>, vector<2x10x128xf32>,
    %206 = vector.extract_strided_slice %203 {offsets = [0, 10, 0], sizes = [2, 6, 128], strides = [1, 1, 1]} : vector<2x16x128xf32> to vector<2x6x128xf32>
    %c0_72 = arith.constant 0 : index
    %c0_73 = arith.constant 0 : index
    %c0_74 = arith.constant 0 : index
    %207 = vector.load %arg13[%c0_72, %c0_73, %c0_74] : memref<2x6x128xf32, #tpu.memory_space<vmem>>, vector<2x6x128xf32>
    tpu.vector_store %arg13[%c0_72, %c0_73, %c0_74], %206 {strides = array<i32>} : memref<2x6x128xf32, #tpu.memory_space<vmem>>, vector<2x6x128xf32>,
    return
  }
  func.func @transform_0(%arg0: i32) -> (i32, i32, i32) {
    %c0_i32 = arith.constant 0 : i32
    %c0_i32_0 = arith.constant 0 : i32
    %c0_i32_1 = arith.constant 0 : i32
    return %arg0, %c0_i32, %c0_i32_0 : i32, i32, i32
  }
  func.func @transform_1(%arg0: i32) -> (i32, i32) {
    %c0_i32 = arith.constant 0 : i32
    %c0_i32_0 = arith.constant 0 : i32
    %c0_i32_1 = arith.constant 0 : i32
    return %c0_i32, %c0_i32_0 : i32, i32
  }
  func.func @transform_2(%arg0: i32) -> (i32, i32) {
    %c0_i32 = arith.constant 0 : i32
    %c0_i32_0 = arith.constant 0 : i32
    %c0_i32_1 = arith.constant 0 : i32
    return %c0_i32, %c0_i32_0 : i32, i32
  }
  func.func @transform_3(%arg0: i32) -> (i32, i32) {
    %c0_i32 = arith.constant 0 : i32
    %c0_i32_0 = arith.constant 0 : i32
    %c0_i32_1 = arith.constant 0 : i32
    return %c0_i32, %c0_i32_0 : i32, i32
  }
  func.func @transform_4(%arg0: i32) -> (i32, i32) {
    %c0_i32 = arith.constant 0 : i32
    %c0_i32_0 = arith.constant 0 : i32
    %c0_i32_1 = arith.constant 0 : i32
    return %c0_i32, %c0_i32_0 : i32, i32
  }
  func.func @transform_5(%arg0: i32) -> (i32, i32) {
    %c0_i32 = arith.constant 0 : i32
    %c0_i32_0 = arith.constant 0 : i32
    %c0_i32_1 = arith.constant 0 : i32
    return %c0_i32, %c0_i32_0 : i32, i32
  }
  func.func @transform_6(%arg0: i32) -> (i32, i32) {
    %c0_i32 = arith.constant 0 : i32
    %c0_i32_0 = arith.constant 0 : i32
    %c0_i32_1 = arith.constant 0 : i32
    return %c0_i32, %c0_i32_0 : i32, i32
  }
  func.func @transform_7(%arg0: i32) -> (i32, i32) {
    %c0_i32 = arith.constant 0 : i32
    %c0_i32_0 = arith.constant 0 : i32
    %c0_i32_1 = arith.constant 0 : i32
    return %c0_i32, %c0_i32_0 : i32, i32
  }
  func.func @transform_8(%arg0: i32) -> (i32, i32) {
    %c0_i32 = arith.constant 0 : i32
    %c0_i32_0 = arith.constant 0 : i32
    %c0_i32_1 = arith.constant 0 : i32
    return %c0_i32, %c0_i32_0 : i32, i32
  }
  func.func @transform_9(%arg0: i32) -> (i32, i32) {
    %c0_i32 = arith.constant 0 : i32
    %c0_i32_0 = arith.constant 0 : i32
    %c0_i32_1 = arith.constant 0 : i32
    return %c0_i32, %c0_i32_0 : i32, i32
  }
  func.func @transform_10(%arg0: i32) -> (i32, i32) {
    %c0_i32 = arith.constant 0 : i32
    %c0_i32_0 = arith.constant 0 : i32
    %c0_i32_1 = arith.constant 0 : i32
    return %c0_i32, %c0_i32_0 : i32, i32
  }
  func.func @transform_11(%arg0: i32) -> (i32, i32, i32) {
    %c0_i32 = arith.constant 0 : i32
    %c0_i32_0 = arith.constant 0 : i32
    %c0_i32_1 = arith.constant 0 : i32
    return %arg0, %c0_i32, %c0_i32_0 : i32, i32, i32
  }
  func.func @transform_12(%arg0: i32) -> (i32, i32, i32) {
    %c0_i32 = arith.constant 0 : i32
    %c0_i32_0 = arith.constant 0 : i32
    %c0_i32_1 = arith.constant 0 : i32
    return %arg0, %c0_i32, %c0_i32_0 : i32, i32, i32
  }
  func.func @transform_13(%arg0: i32) -> (i32, i32, i32) {
    %c0_i32 = arith.constant 0 : i32
    %c0_i32_0 = arith.constant 0 : i32
    %c0_i32_1 = arith.constant 0 : i32
    return %arg0, %c0_i32, %c0_i32_0 : i32, i32, i32
  }
  func.func @transform_14(%arg0: i32) -> (i32, i32, i32) {
    %c0_i32 = arith.constant 0 : i32
    %c0_i32_0 = arith.constant 0 : i32
    %c0_i32_1 = arith.constant 0 : i32
    return %arg0, %c0_i32, %c0_i32_0 : i32, i32, i32
  }
}

</mosaic_0001>

<llo_original>
// kernel: block_encoder_layer.1
$region0: #{block_encoder_layer.1}
  #allocation0 [shape = 'u32[]', space=smem, size = 0x4, offset = 0x4, fixed_abs, tag = 'smem constant byte address 0x4 - core index']
  #allocation1 [shape = 'u32[144,128]{1,0:T(1,128)}', space=vmem, size = 0x12000, scoped, tag = 'internal scratch']
  %s0 = inlined_call_operand.vmem [shape: f32[4,16,128], index: 0, kind: input, shape index: {}]
  %s1 = inlined_call_operand.vmem [shape: bf16[128,256], index: 1, kind: input, shape index: {}]
  %s2 = inlined_call_operand.vmem [shape: f32[1,256], index: 2, kind: input, shape index: {}]
  %s3 = inlined_call_operand.vmem [shape: bf16[128,256], index: 3, kind: input, shape index: {}]
  %s4 = inlined_call_operand.vmem [shape: f32[1,256], index: 4, kind: input, shape index: {}]
  %s5 = inlined_call_operand.vmem [shape: bf16[256,128], index: 5, kind: input, shape index: {}]
  %s6 = inlined_call_operand.vmem [shape: f32[1,128], index: 6, kind: input, shape index: {}]
  %s7 = inlined_call_operand.vmem [shape: f32[1,128], index: 7, kind: input, shape index: {}]
  %s8 = inlined_call_operand.vmem [shape: f32[1,128], index: 8, kind: input, shape index: {}]
  %s9 = inlined_call_operand.vmem [shape: f32[1,128], index: 9, kind: input, shape index: {}]
  %s10 = inlined_call_operand.vmem [shape: f32[1,128], index: 10, kind: input, shape index: {}]
  %s11 = inlined_call_operand.vmem [shape: f32[4,10,128], index: 11, kind: output, shape index: {0}]
  %s12 = inlined_call_operand.vmem [shape: f32[4,6,128], index: 12, kind: output, shape index: {1}]
  %s13 = inlined_call_operand.vmem [shape: f32[4,8,32], index: 13, kind: output, shape index: {2}]
  %s14 = inlined_call_operand.vmem [shape: f32[4,8,32], index: 14, kind: output, shape index: {3}]
  %15 = xla_tuple %s11, %s12, %s13, %s14
  %s16 = sld [smem:[#allocation0]]
  $region101: #{block_encoder_layer.1} parent=0
    _
  %s18 = ssub.s32 1, %s16
  %s19 = scalar_select 0, %s18, %s16
  loop: start=0, step=1, limit=4
  $region2: #{block_encoder_layer.1} parent=0 // loop_pre_header
    _
  $region3: #{block_encoder_layer.1} parent=0 // loop_header
    %s21 = sphi 0, %s25
    %p22 = scmp.ge.s32.totalorder %s21, 4
    %s31 = sphi 0, %s33
    %s34 = sphi 0, %s31
    %s35 = sphi 0, %s34
    %s51 = sphi 0, %s35
    %s55 = sphi 0, %s55
    %s57 = sphi 0, %s55
    %s58 = sphi 0, %s57
    %s72 = sphi 0, %s58
    %s76 = sphi 0, %s76
    %s78 = sphi 0, %s76
    %s79 = sphi 0, %s78
    %s93 = sphi 0, %s79
    %s97 = sphi 0, %s97
    %s99 = sphi 0, %s97
    %s100 = sphi 0, %s99
    %s114 = sphi 0, %s100
    %s118 = sphi 0, %s118
    %s120 = sphi 0, %s118
    %s121 = sphi 0, %s120
    %s135 = sphi 0, %s121
    %s139 = sphi 0, %s139
    %s141 = sphi 0, %s139
    %s142 = sphi 0, %s141
    %s156 = sphi 0, %s142
    %s160 = sphi 0, %s160
    %s162 = sphi 0, %s160
    %s163 = sphi 0, %s162
    %s177 = sphi 0, %s163
    %s181 = sphi 0, %s181
    %s183 = sphi 0, %s181
    %s184 = sphi 0, %s183
    %s198 = sphi 0, %s184
    %s202 = sphi 0, %s202
    %s204 = sphi 0, %s202
    %s205 = sphi 0, %s204
    %s219 = sphi 0, %s205
    %s223 = sphi 0, %s223
    %s225 = sphi 0, %s223
    %s226 = sphi 0, %s225
    %s240 = sphi 0, %s226
    %s244 = sphi 0, %s244
    %s246 = sphi 0, %s244
    %s247 = sphi 0, %s246
    %s261 = sphi 0, %s247
    %s267 = sphi 0, %s269
    %s270 = sphi 0, %s267
    %s271 = sphi 0, %s270
    %s287 = sphi 0, %s271
    %s293 = sphi 0, %s295
    %s296 = sphi 0, %s293
    %s297 = sphi 0, %s296
    %s313 = sphi 0, %s297
    %s319 = sphi 0, %s321
    %s322 = sphi 0, %s319
    %s323 = sphi 0, %s322
    %s339 = sphi 0, %s323
    %s345 = sphi 0, %s347
    %s348 = sphi 0, %s345
    %s349 = sphi 0, %s348
    %s365 = sphi 0, %s349
  $region4: #{block_encoder_layer.1} parent=0 // loop_header_branch
    %24 = sbr.rel (%p22) target = $region8
  $region5: #{block_encoder_layer.1} parent=0 // loop_body
    %s26 = ssub.s32 %s21, 1
    %s27 = ssub.s32 %s21, 2
    %s28 = sadd.s32 %s21, 1
    %s29 = ssub.s32 %s21, %s28
    %p30 = scmp.eq.s32.totalorder %s29, 0
    %s32 = sadd.s32 %s31, 1
    %s33 = scalar_select %p30, %s31, %s32
    %p36 = pneg %p30
    %p37 = scmp.eq.s32.totalorder %s21, 1
    %p38 = por %p36, %p37
    %p39 = scmp.ne.s32.totalorder %s31, %s34
    %p40 = scmp.eq.s32.totalorder %s21, 0
    %p41 = por %p39, %p40
    %p42 = scmp.ne.s32.totalorder %s31, %s34
    %p43 = scmp.eq.s32.totalorder %s26, 1
    %p44 = por %p42, %p43
    %p45 = scmp.ne.s32.totalorder %s34, %s35
    %p46 = scmp.eq.s32.totalorder %s26, 0
    %p47 = por %p45, %p46
    %p48 = scmp.ne.s32.totalorder %s34, %s35
    %p49 = scmp.eq.s32.totalorder %s27, 1
    %p50 = por %p48, %p49
    %p52 = scmp.ne.s32.totalorder %s35, %s51
    %p53 = scmp.eq.s32.totalorder %s27, 0
    %p54 = por %p52, %p53
    %s56 = sadd.s32 %s55, 1
    %p59 = scmp.eq.s32.totalorder %s21, 1
    %p60 = scmp.ne.s32.totalorder %s55, %s57
    %p61 = scmp.eq.s32.totalorder %s21, 0
    %p62 = por %p60, %p61
    %p63 = scmp.ne.s32.totalorder %s55, %s57
    %p64 = scmp.eq.s32.totalorder %s26, 1
    %p65 = por %p63, %p64
    %p66 = scmp.ne.s32.totalorder %s57, %s58
    %p67 = scmp.eq.s32.totalorder %s26, 0
    %p68 = por %p66, %p67
    %p69 = scmp.ne.s32.totalorder %s57, %s58
    %p70 = scmp.eq.s32.totalorder %s27, 1
    %p71 = por %p69, %p70
    %p73 = scmp.ne.s32.totalorder %s58, %s72
    %p74 = scmp.eq.s32.totalorder %s27, 0
    %p75 = por %p73, %p74
    %s77 = sadd.s32 %s76, 1
    %p80 = scmp.eq.s32.totalorder %s21, 1
    %p81 = scmp.ne.s32.totalorder %s76, %s78
    %p82 = scmp.eq.s32.totalorder %s21, 0
    %p83 = por %p81, %p82
    %p84 = scmp.ne.s32.totalorder %s76, %s78
    %p85 = scmp.eq.s32.totalorder %s26, 1
    %p86 = por %p84, %p85
    %p87 = scmp.ne.s32.totalorder %s78, %s79
    %p88 = scmp.eq.s32.totalorder %s26, 0
    %p89 = por %p87, %p88
    %p90 = scmp.ne.s32.totalorder %s78, %s79
    %p91 = scmp.eq.s32.totalorder %s27, 1
    %p92 = por %p90, %p91
    %p94 = scmp.ne.s32.totalorder %s79, %s93
    %p95 = scmp.eq.s32.totalorder %s27, 0
    %p96 = por %p94, %p95
    %s98 = sadd.s32 %s97, 1
    %p101 = scmp.eq.s32.totalorder %s21, 1
    %p102 = scmp.ne.s32.totalorder %s97, %s99
    %p103 = scmp.eq.s32.totalorder %s21, 0
    %p104 = por %p102, %p103
    %p105 = scmp.ne.s32.totalorder %s97, %s99
    %p106 = scmp.eq.s32.totalorder %s26, 1
    %p107 = por %p105, %p106
    %p108 = scmp.ne.s32.totalorder %s99, %s100
    %p109 = scmp.eq.s32.totalorder %s26, 0
    %p110 = por %p108, %p109
    %p111 = scmp.ne.s32.totalorder %s99, %s100
    %p112 = scmp.eq.s32.totalorder %s27, 1
    %p113 = por %p111, %p112
    %p115 = scmp.ne.s32.totalorder %s100, %s114
    %p116 = scmp.eq.s32.totalorder %s27, 0
    %p117 = por %p115, %p116
    %s119 = sadd.s32 %s118, 1
    %p122 = scmp.eq.s32.totalorder %s21, 1
    %p123 = scmp.ne.s32.totalorder %s118, %s120
    %p124 = scmp.eq.s32.totalorder %s21, 0
    %p125 = por %p123, %p124
    %p126 = scmp.ne.s32.totalorder %s118, %s120
    %p127 = scmp.eq.s32.totalorder %s26, 1
    %p128 = por %p126, %p127
    %p129 = scmp.ne.s32.totalorder %s120, %s121
    %p130 = scmp.eq.s32.totalorder %s26, 0
    %p131 = por %p129, %p130
    %p132 = scmp.ne.s32.totalorder %s120, %s121
    %p133 = scmp.eq.s32.totalorder %s27, 1
    %p134 = por %p132, %p133
    %p136 = scmp.ne.s32.totalorder %s121, %s135
    %p137 = scmp.eq.s32.totalorder %s27, 0
    %p138 = por %p136, %p137
    %s140 = sadd.s32 %s139, 1
    %p143 = scmp.eq.s32.totalorder %s21, 1
    %p144 = scmp.ne.s32.totalorder %s139, %s141
    %p145 = scmp.eq.s32.totalorder %s21, 0
    %p146 = por %p144, %p145
    %p147 = scmp.ne.s32.totalorder %s139, %s141
    %p148 = scmp.eq.s32.totalorder %s26, 1
    %p149 = por %p147, %p148
    %p150 = scmp.ne.s32.totalorder %s141, %s142
    %p151 = scmp.eq.s32.totalorder %s26, 0
    %p152 = por %p150, %p151
    %p153 = scmp.ne.s32.totalorder %s141, %s142
    %p154 = scmp.eq.s32.totalorder %s27, 1
    %p155 = por %p153, %p154
    %p157 = scmp.ne.s32.totalorder %s142, %s156
    %p158 = scmp.eq.s32.totalorder %s27, 0
    %p159 = por %p157, %p158
    %s161 = sadd.s32 %s160, 1
    %p164 = scmp.eq.s32.totalorder %s21, 1
    %p165 = scmp.ne.s32.totalorder %s160, %s162
    %p166 = scmp.eq.s32.totalorder %s21, 0
    %p167 = por %p165, %p166
    %p168 = scmp.ne.s32.totalorder %s160, %s162
    %p169 = scmp.eq.s32.totalorder %s26, 1
    %p170 = por %p168, %p169
    %p171 = scmp.ne.s32.totalorder %s162, %s163
    %p172 = scmp.eq.s32.totalorder %s26, 0
    %p173 = por %p171, %p172
    %p174 = scmp.ne.s32.totalorder %s162, %s163
    %p175 = scmp.eq.s32.totalorder %s27, 1
    %p176 = por %p174, %p175
    %p178 = scmp.ne.s32.totalorder %s163, %s177
    %p179 = scmp.eq.s32.totalorder %s27, 0
    %p180 = por %p178, %p179
    %s182 = sadd.s32 %s181, 1
    %p185 = scmp.eq.s32.totalorder %s21, 1
    %p186 = scmp.ne.s32.totalorder %s181, %s183
    %p187 = scmp.eq.s32.totalorder %s21, 0
    %p188 = por %p186, %p187
    %p189 = scmp.ne.s32.totalorder %s181, %s183
    %p190 = scmp.eq.s32.totalorder %s26, 1
    %p191 = por %p189, %p190
    %p192 = scmp.ne.s32.totalorder %s183, %s184
    %p193 = scmp.eq.s32.totalorder %s26, 0
    %p194 = por %p192, %p193
    %p195 = scmp.ne.s32.totalorder %s183, %s184
    %p196 = scmp.eq.s32.totalorder %s27, 1
    %p197 = por %p195, %p196
    %p199 = scmp.ne.s32.totalorder %s184, %s198
    %p200 = scmp.eq.s32.totalorder %s27, 0
    %p201 = por %p199, %p200
    %s203 = sadd.s32 %s202, 1
    %p206 = scmp.eq.s32.totalorder %s21, 1
    %p207 = scmp.ne.s32.totalorder %s202, %s204
    %p208 = scmp.eq.s32.totalorder %s21, 0
    %p209 = por %p207, %p208
    %p210 = scmp.ne.s32.totalorder %s202, %s204
    %p211 = scmp.eq.s32.totalorder %s26, 1
    %p212 = por %p210, %p211
    %p213 = scmp.ne.s32.totalorder %s204, %s205
    %p214 = scmp.eq.s32.totalorder %s26, 0
    %p215 = por %p213, %p214
    %p216 = scmp.ne.s32.totalorder %s204, %s205
    %p217 = scmp.eq.s32.totalorder %s27, 1
    %p218 = por %p216, %p217
    %p220 = scmp.ne.s32.totalorder %s205, %s219
    %p221 = scmp.eq.s32.totalorder %s27, 0
    %p222 = por %p220, %p221
    %s224 = sadd.s32 %s223, 1
    %p227 = scmp.eq.s32.totalorder %s21, 1
    %p228 = scmp.ne.s32.totalorder %s223, %s225
    %p229 = scmp.eq.s32.totalorder %s21, 0
    %p230 = por %p228, %p229
    %p231 = scmp.ne.s32.totalorder %s223, %s225
    %p232 = scmp.eq.s32.totalorder %s26, 1
    %p233 = por %p231, %p232
    %p234 = scmp.ne.s32.totalorder %s225, %s226
    %p235 = scmp.eq.s32.totalorder %s26, 0
    %p236 = por %p234, %p235
    %p237 = scmp.ne.s32.totalorder %s225, %s226
    %p238 = scmp.eq.s32.totalorder %s27, 1
    %p239 = por %p237, %p238
    %p241 = scmp.ne.s32.totalorder %s226, %s240
    %p242 = scmp.eq.s32.totalorder %s27, 0
    %p243 = por %p241, %p242
    %s245 = sadd.s32 %s244, 1
    %p248 = scmp.eq.s32.totalorder %s21, 1
    %p249 = scmp.ne.s32.totalorder %s244, %s246
    %p250 = scmp.eq.s32.totalorder %s21, 0
    %p251 = por %p249, %p250
    %p252 = scmp.ne.s32.totalorder %s244, %s246
    %p253 = scmp.eq.s32.totalorder %s26, 1
    %p254 = por %p252, %p253
    %p255 = scmp.ne.s32.totalorder %s246, %s247
    %p256 = scmp.eq.s32.totalorder %s26, 0
    %p257 = por %p255, %p256
    %p258 = scmp.ne.s32.totalorder %s246, %s247
    %p259 = scmp.eq.s32.totalorder %s27, 1
    %p260 = por %p258, %p259
    %p262 = scmp.ne.s32.totalorder %s247, %s261
    %p263 = scmp.eq.s32.totalorder %s27, 0
    %p264 = por %p262, %p263
    %s265 = ssub.s32 %s21, %s28
    %p266 = scmp.eq.s32.totalorder %s265, 0
    %s268 = sadd.s32 %s267, 1
    %s269 = scalar_select %p266, %s267, %s268
    %p272 = pneg %p266
    %p273 = scmp.eq.s32.totalorder %s21, 1
    %p274 = por %p272, %p273
    %p275 = scmp.ne.s32.totalorder %s267, %s270
    %p276 = scmp.eq.s32.totalorder %s21, 0
    %p277 = por %p275, %p276
    %p278 = scmp.ne.s32.totalorder %s267, %s270
    %p279 = scmp.eq.s32.totalorder %s26, 1
    %p280 = por %p278, %p279
    %p281 = scmp.ne.s32.totalorder %s270, %s271
    %p282 = scmp.eq.s32.totalorder %s26, 0
    %p283 = por %p281, %p282
    %p284 = scmp.ne.s32.totalorder %s270, %s271
    %p285 = scmp.eq.s32.totalorder %s27, 1
    %p286 = por %p284, %p285
    %p288 = scmp.ne.s32.totalorder %s271, %s287
    %p289 = scmp.eq.s32.totalorder %s27, 0
    %p290 = por %p288, %p289
    %s291 = ssub.s32 %s21, %s28
    %p292 = scmp.eq.s32.totalorder %s291, 0
    %s294 = sadd.s32 %s293, 1
    %s295 = scalar_select %p292, %s293, %s294
    %p298 = pneg %p292
    %p299 = scmp.eq.s32.totalorder %s21, 1
    %p300 = por %p298, %p299
    %p301 = scmp.ne.s32.totalorder %s293, %s296
    %p302 = scmp.eq.s32.totalorder %s21, 0
    %p303 = por %p301, %p302
    %p304 = scmp.ne.s32.totalorder %s293, %s296
    %p305 = scmp.eq.s32.totalorder %s26, 1
    %p306 = por %p304, %p305
    %p307 = scmp.ne.s32.totalorder %s296, %s297
    %p308 = scmp.eq.s32.totalorder %s26, 0
    %p309 = por %p307, %p308
    %p310 = scmp.ne.s32.totalorder %s296, %s297
    %p311 = scmp.eq.s32.totalorder %s27, 1
    %p312 = por %p310, %p311
    %p314 = scmp.ne.s32.totalorder %s297, %s313
    %p315 = scmp.eq.s32.totalorder %s27, 0
    %p316 = por %p314, %p315
    %s317 = ssub.s32 %s21, %s28
    %p318 = scmp.eq.s32.totalorder %s317, 0
    %s320 = sadd.s32 %s319, 1
    %s321 = scalar_select %p318, %s319, %s320
    %p324 = pneg %p318
    %p325 = scmp.eq.s32.totalorder %s21, 1
    %p326 = por %p324, %p325
    %p327 = scmp.ne.s32.totalorder %s319, %s322
    %p328 = scmp.eq.s32.totalorder %s21, 0
    %p329 = por %p327, %p328
    %p330 = scmp.ne.s32.totalorder %s319, %s322
    %p331 = scmp.eq.s32.totalorder %s26, 1
    %p332 = por %p330, %p331
    %p333 = scmp.ne.s32.totalorder %s322, %s323
    %p334 = scmp.eq.s32.totalorder %s26, 0
    %p335 = por %p333, %p334
    %p336 = scmp.ne.s32.totalorder %s322, %s323
    %p337 = scmp.eq.s32.totalorder %s27, 1
    %p338 = por %p336, %p337
    %p340 = scmp.ne.s32.totalorder %s323, %s339
    %p341 = scmp.eq.s32.totalorder %s27, 0
    %p342 = por %p340, %p341
    %s343 = ssub.s32 %s21, %s28
    %p344 = scmp.eq.s32.totalorder %s343, 0
    %s346 = sadd.s32 %s345, 1
    %s347 = scalar_select %p344, %s345, %s346
    %p350 = pneg %p344
    %p351 = scmp.eq.s32.totalorder %s21, 1
    %p352 = por %p350, %p351
    %p353 = scmp.ne.s32.totalorder %s345, %s348
    %p354 = scmp.eq.s32.totalorder %s21, 0
    %p355 = por %p353, %p354
    %p356 = scmp.ne.s32.totalorder %s345, %s348
    %p357 = scmp.eq.s32.totalorder %s26, 1
    %p358 = por %p356, %p357
    %p359 = scmp.ne.s32.totalorder %s348, %s349
    %p360 = scmp.eq.s32.totalorder %s26, 0
    %p361 = por %p359, %p360
    %p362 = scmp.ne.s32.totalorder %s348, %s349
    %p363 = scmp.eq.s32.totalorder %s27, 1
    %p364 = por %p362, %p363
    %p366 = scmp.ne.s32.totalorder %s349, %s365
    %p367 = scmp.eq.s32.totalorder %s27, 0
    %p368 = por %p366, %p367
    %p369 = scmp.le.s32.totalorder 1, %s21
    %p370 = scmp.lt.s32.totalorder %s21, 3
    %p371 = pnand %p369, %p370
    %p372 = pneg %p371
    // Predicated region
    $region9: #{block_encoder_layer.1} parent=5 // pred_check
      _
    $region10: #{block_encoder_layer.1} parent=5 // pred_check_branch
      %374 = sbr.rel (%p371) target = $region12
    $region11: #{block_encoder_layer.1} parent=5 // pred_region
      %s375 = ssub.s32 %s21, 1
      // Predicated region
      $region13: #{block_encoder_layer.1} parent=11 // pred_check
        %p376 = pneg %p68
      $region14: #{block_encoder_layer.1} parent=11 // pred_check_branch
        %378 = sbr.rel (%p376) target = $region16
      $region15: #{block_encoder_layer.1} parent=11 // pred_region
        _
      $region16: #{block_encoder_layer.1} parent=11 // pred_fallthru
        _
      // Predicated region
      $region17: #{block_encoder_layer.1} parent=11 // pred_check
        %p379 = pneg %p89
      $region18: #{block_encoder_layer.1} parent=11 // pred_check_branch
        %381 = sbr.rel (%p379) target = $region20
      $region19: #{block_encoder_layer.1} parent=11 // pred_region
        _
      $region20: #{block_encoder_layer.1} parent=11 // pred_fallthru
        _
      // Predicated region
      $region21: #{block_encoder_layer.1} parent=11 // pred_check
        %p382 = pneg %p110
      $region22: #{block_encoder_layer.1} parent=11 // pred_check_branch
        %384 = sbr.rel (%p382) target = $region24
      $region23: #{block_encoder_layer.1} parent=11 // pred_region
        _
      $region24: #{block_encoder_layer.1} parent=11 // pred_fallthru
        _
      // Predicated region
      $region25: #{block_encoder_layer.1} parent=11 // pred_check
        %p385 = pneg %p131
      $region26: #{block_encoder_layer.1} parent=11 // pred_check_branch
        %387 = sbr.rel (%p385) target = $region28
      $region27: #{block_encoder_layer.1} parent=11 // pred_region
        _
      $region28: #{block_encoder_layer.1} parent=11 // pred_fallthru
        _
      // Predicated region
      $region29: #{block_encoder_layer.1} parent=11 // pred_check
        %p388 = pneg %p152
      $region30: #{block_encoder_layer.1} parent=11 // pred_check_branch
        %390 = sbr.rel (%p388) target = $region32
      $region31: #{block_encoder_layer.1} parent=11 // pred_region
        _
      $region32: #{block_encoder_layer.1} parent=11 // pred_fallthru
        _
      // Predicated region
      $region33: #{block_encoder_layer.1} parent=11 // pred_check
        %p391 = pneg %p173
      $region34: #{block_encoder_layer.1} parent=11 // pred_check_branch
        %393 = sbr.rel (%p391) target = $region36
      $region35: #{block_encoder_layer.1} parent=11 // pred_region
        _
      $region36: #{block_encoder_layer.1} parent=11 // pred_fallthru
        _
      // Predicated region
      $region37: #{block_encoder_layer.1} parent=11 // pred_check
        %p394 = pneg %p194
      $region38: #{block_encoder_layer.1} parent=11 // pred_check_branch
        %396 = sbr.rel (%p394) target = $region40
      $region39: #{block_encoder_layer.1} parent=11 // pred_region
        _
      $region40: #{block_encoder_layer.1} parent=11 // pred_fallthru
        _
      // Predicated region
      $region41: #{block_encoder_layer.1} parent=11 // pred_check
        %p397 = pneg %p215
      $region42: #{block_encoder_layer.1} parent=11 // pred_check_branch
        %399 = sbr.rel (%p397) target = $region44
      $region43: #{block_encoder_layer.1} parent=11 // pred_region
        _
      $region44: #{block_encoder_layer.1} parent=11 // pred_fallthru
        _
      // Predicated region
      $region45: #{block_encoder_layer.1} parent=11 // pred_check
        %p400 = pneg %p236
      $region46: #{block_encoder_layer.1} parent=11 // pred_check_branch
        %402 = sbr.rel (%p400) target = $region48
      $region47: #{block_encoder_layer.1} parent=11 // pred_region
        _
      $region48: #{block_encoder_layer.1} parent=11 // pred_fallthru
        _
      // Predicated region
      $region49: #{block_encoder_layer.1} parent=11 // pred_check
        %p403 = pneg %p257
      $region50: #{block_encoder_layer.1} parent=11 // pred_check_branch
        %405 = sbr.rel (%p403) target = $region52
      $region51: #{block_encoder_layer.1} parent=11 // pred_region
        _
      $region52: #{block_encoder_layer.1} parent=11 // pred_fallthru
        _
    $region12: #{block_encoder_layer.1} parent=5 // pred_fallthru
      _
    %p406 = scmp.lt.s32.totalorder %s21, 2
    // Predicated region
    $region53: #{block_encoder_layer.1} parent=5 // pred_check
      %p407 = pneg %p406
    $region54: #{block_encoder_layer.1} parent=5 // pred_check_branch
      %409 = sbr.rel (%p407) target = $region56
    $region55: #{block_encoder_layer.1} parent=5 // pred_region
      // Predicated region
      $region57: #{block_encoder_layer.1} parent=55 // pred_check
        %p410 = pneg %p41
      $region58: #{block_encoder_layer.1} parent=55 // pred_check_branch
        %412 = sbr.rel (%p410) target = $region60
      $region59: #{block_encoder_layer.1} parent=55 // pred_region
        %s413 = smul.u32 2, %s21
        %p414 = scmp.lt.s32.totalorder %s413, 3
        %s415 = scalar_select %p414, %s413, 3
        %s416 = smul.addr %s415, 2
        %s417 = smul.addr %s416, 8
        %s418 = scalar_lea.vmem %s0, %s417
        %s419 = smul.u32 2, %s21
      $region60: #{block_encoder_layer.1} parent=55 // pred_fallthru
        _
    $region56: #{block_encoder_layer.1} parent=5 // pred_fallthru
      _
    %p420 = scmp.le.s32.totalorder 1, %s21
    %p421 = scmp.lt.s32.totalorder %s21, 3
    %p422 = pnand %p420, %p421
    %p423 = pneg %p422
    // Predicated region
    $region61: #{block_encoder_layer.1} parent=5 // pred_check
      _
    $region62: #{block_encoder_layer.1} parent=5 // pred_check_branch
      %425 = sbr.rel (%p422) target = $region64
    $region63: #{block_encoder_layer.1} parent=5 // pred_region
      %s426 = ssub.s32 %s21, 1
      %s427 = smul.u32 2, %s26
      %p428 = scmp.lt.s32.totalorder %s427, 3
      %s429 = scalar_select %p428, %s427, 3
      %s430 = smul.addr %s429, 2
      %s431 = smul.addr %s430, 8
      %s432 = scalar_lea.vmem %s0, %s431
      %p433 = pneg %p47
      %p434 = pneg %p44
      %p435 = pneg %p68
      %p436 = pneg %p65
      %p437 = pneg %p89
      %p438 = pneg %p86
      %p439 = pneg %p110
      %p440 = pneg %p107
      %p441 = pneg %p131
      %p442 = pneg %p128
      %p443 = pneg %p152
      %p444 = pneg %p149
      %p445 = pneg %p173
      %p446 = pneg %p170
      %p447 = pneg %p194
      %p448 = pneg %p191
      %p449 = pneg %p215
      %p450 = pneg %p212
      %p451 = pneg %p236
      %p452 = pneg %p233
      %p453 = pneg %p257
      %p454 = pneg %p254
      %p455 = pneg %p283
      %p456 = pneg %p280
      %s457 = smul.u32 2, %s26
      %p458 = scmp.lt.s32.totalorder %s457, 3
      %s459 = scalar_select %p458, %s457, 3
      %s460 = smul.addr %s459, 2
      %s461 = smul.addr %s460, 8
      %s462 = scalar_lea.vmem %s11, %s461
      %p463 = pneg %p309
      %p464 = pneg %p306
      %s465 = smul.u32 2, %s26
      %p466 = scmp.lt.s32.totalorder %s465, 3
      %s467 = scalar_select %p466, %s465, 3
      %s468 = smul.addr %s467, 8
      %s469 = scalar_lea.vmem %s12, %s468
      %p470 = pneg %p335
      %p471 = pneg %p332
      %s472 = smul.u32 2, %s26
      %p473 = scmp.lt.s32.totalorder %s472, 3
      %s474 = scalar_select %p473, %s472, 3
      %s475 = smul.addr %s474, 8
      %s476 = scalar_lea.vmem %s13, %s475
      %p477 = pneg %p361
      %p478 = pneg %p358
      %s479 = smul.u32 2, %s26
      %p480 = scmp.lt.s32.totalorder %s479, 3
      %s481 = scalar_select %p480, %s479, 3
      %s482 = smul.addr %s481, 8
      %s483 = scalar_lea.vmem %s14, %s482
      %s484 = smul.u32 2, %s26
      %p485 = scmp.lt.s32.totalorder %s484, 3
      %s486 = scalar_select %p485, %s484, 3
      %s487 = smul.addr %s486, 2
      %s488 = smul.addr %s487, 8
      %s489 = scalar_lea.vmem %s0, %s488
      %s490 = smul.u32 2, %s26
      %s491 = smul.u32 2, %s26
      %p492 = scmp.lt.s32.totalorder %s491, 3
      %s493 = scalar_select %p492, %s491, 3
      %s494 = smul.addr %s493, 2
      %s495 = smul.addr %s494, 8
      %s496 = scalar_lea.vmem %s11, %s495
      %s497 = smul.u32 2, %s26
      %s498 = smul.u32 2, %s26
      %p499 = scmp.lt.s32.totalorder %s498, 3
      %s500 = scalar_select %p499, %s498, 3
      %s501 = smul.addr %s500, 8
      %s502 = scalar_lea.vmem %s12, %s501
      %s503 = smul.u32 2, %s26
      %s504 = smul.u32 2, %s26
      %p505 = scmp.lt.s32.totalorder %s504, 3
      %s506 = scalar_select %p505, %s504, 3
      %s507 = smul.addr %s506, 8
      %s508 = scalar_lea.vmem %s13, %s507
      %s509 = smul.u32 2, %s26
      %s510 = smul.u32 2, %s26
      %p511 = scmp.lt.s32.totalorder %s510, 3
      %s512 = scalar_select %p511, %s510, 3
      %s513 = smul.addr %s512, 8
      %s514 = scalar_lea.vmem %s14, %s513
      %s515 = smul.u32 2, %s26
      %v517 = vld [vmem:[%s489] sm:$0xff]
      %v518 = vld [vmem:[%s489 + $0x8] sm:$0xff]
      %v519 = vld [vmem:[%s489 + $0x10] sm:$0xff]
      %v520 = vld [vmem:[%s489 + $0x18] sm:$0xff]
      %v521 = vpack.c.bf16 %v518, %v517
      %v522 = vpack.c.bf16 %v520, %v519
      %v523 = vld [vmem:[%s1] sm:$0xff]
      %v524 = vld [vmem:[%s1 + $0x8] sm:$0xff]
      %v525 = vld [vmem:[%s1 + $0x10] sm:$0xff]
      %v526 = vld [vmem:[%s1 + $0x18] sm:$0xff]
      %v527 = vld [vmem:[%s1 + $0x20] sm:$0xff]
      %v528 = vld [vmem:[%s1 + $0x28] sm:$0xff]
      %v529 = vld [vmem:[%s1 + $0x30] sm:$0xff]
      %v530 = vld [vmem:[%s1 + $0x38] sm:$0xff]
      %v531 = vld [vmem:[%s1 + $0x40] sm:$0xff]
      %v532 = vld [vmem:[%s1 + $0x48] sm:$0xff]
      %v533 = vld [vmem:[%s1 + $0x50] sm:$0xff]
      %v534 = vld [vmem:[%s1 + $0x58] sm:$0xff]
      %v535 = vld [vmem:[%s1 + $0x60] sm:$0xff]
      %v536 = vld [vmem:[%s1 + $0x68] sm:$0xff]
      %v537 = vld [vmem:[%s1 + $0x70] sm:$0xff]
      %v538 = vld [vmem:[%s1 + $0x78] sm:$0xff]
      %v539 = vld [vmem:[%s2] sm:$0x3]
      %v541 = vlaneseq
      %v542 = vshrl.u32 %v541, 7
      %v543 = vsub.s32 0, %v542
      %v544 = vrot.slane %v539, %v543
      %v545 = vlaneseq
      %v546 = vshrl.u32 %v545, 7
      %v547 = vsub.s32 1, %v546
      %v548 = vrot.slane %v539, %v547
      %v567 = vunpack.c.l.b16 %v523
      %v568 = vunpack.c.h.b16 %v523
      %v569 = vunpack.c.l.b16 %v524
      %v570 = vunpack.c.h.b16 %v524
      %v571 = vunpack.c.l.b16 %v525
      %v572 = vunpack.c.h.b16 %v525
      %v573 = vunpack.c.l.b16 %v526
      %v574 = vunpack.c.h.b16 %v526
      %v575 = vunpack.c.l.b16 %v527
      %v576 = vunpack.c.h.b16 %v527
      %v577 = vunpack.c.l.b16 %v528
      %v578 = vunpack.c.h.b16 %v528
      %v579 = vunpack.c.l.b16 %v529
      %v580 = vunpack.c.h.b16 %v529
      %v581 = vunpack.c.l.b16 %v530
      %v582 = vunpack.c.h.b16 %v530
      %v583 = vunpack.c.l.b16 %v531
      %v584 = vunpack.c.h.b16 %v531
      %v585 = vunpack.c.l.b16 %v532
      %v586 = vunpack.c.h.b16 %v532
      %v587 = vunpack.c.l.b16 %v533
      %v588 = vunpack.c.h.b16 %v533
      %v589 = vunpack.c.l.b16 %v534
      %v590 = vunpack.c.h.b16 %v534
      %v591 = vunpack.c.l.b16 %v535
      %v592 = vunpack.c.h.b16 %v535
      %v593 = vunpack.c.l.b16 %v536
      %v594 = vunpack.c.h.b16 %v536
      %v595 = vunpack.c.l.b16 %v537
      %v596 = vunpack.c.h.b16 %v537
      %v597 = vunpack.c.l.b16 %v538
      %v598 = vunpack.c.h.b16 %v538
      %v599 = vpack.c.b16 %v569, %v567
      %v600 = vpack.c.b16 %v570, %v568
      %v601 = vpack.c.b16 %v573, %v571
      %v602 = vpack.c.b16 %v574, %v572
      %v603 = vpack.c.b16 %v577, %v575
      %v604 = vpack.c.b16 %v578, %v576
      %v605 = vpack.c.b16 %v581, %v579
      %v606 = vpack.c.b16 %v582, %v580
      %v607 = vpack.c.b16 %v585, %v583
      %v608 = vpack.c.b16 %v586, %v584
      %v609 = vpack.c.b16 %v589, %v587
      %v610 = vpack.c.b16 %v590, %v588
      %v611 = vpack.c.b16 %v593, %v591
      %v612 = vpack.c.b16 %v594, %v592
      %v613 = vpack.c.b16 %v597, %v595
      %v614 = vpack.c.b16 %v598, %v596
      %631 = vmatprep.subr.bf16.mxu0 %v614
      %632 = vmatpush1.bf16.msra.mxu0 %v613
      %633 = vmatprep.subr.bf16.mxu0 %v612
      %634 = vmatpush1.bf16.msra.mxu0 %v611
      %635 = vmatprep.subr.bf16.mxu0 %v610
      %636 = vmatpush1.bf16.msra.mxu0 %v609
      %637 = vmatprep.subr.bf16.mxu0 %v608
      %638 = vmatpush1.bf16.msra.mxu0 %v607
      %639 = vmatprep.subr.bf16.mxu0 %v606
      %640 = vmatpush1.bf16.msra.mxu0 %v605
      %641 = vmatprep.subr.bf16.mxu0 %v604
      %642 = vmatpush1.bf16.msra.mxu0 %v603
      %643 = vmatprep.subr.bf16.mxu0 %v602
      %644 = vmatpush1.bf16.msra.mxu0 %v601
      %645 = vmatprep.subr.bf16.mxu0 %v600
      %646 = vmatpush1.bf16.msra.mxu0 %v599
      %647 = vmatprep.subr.bf16.mxu0 0
      %648 = vmatpush2.bf16.msra.mxu0 0
      %649 = vmatprep.subr.bf16.mxu0 0
      %650 = vmatpush2.bf16.msra.mxu0 0
      %651 = vmatprep.subr.bf16.mxu0 0
      %652 = vmatpush2.bf16.msra.mxu0 0
      %653 = vmatprep.subr.bf16.mxu0 0
      %654 = vmatpush2.bf16.msra.mxu0 0
      %655 = vmatprep.subr.bf16.mxu0 0
      %656 = vmatpush2.bf16.msra.mxu0 0
      %657 = vmatprep.subr.bf16.mxu0 0
      %658 = vmatpush2.bf16.msra.mxu0 0
      %659 = vmatprep.subr.bf16.mxu0 0
      %660 = vmatpush2.bf16.msra.mxu0 0
      %661 = vmatprep.subr.bf16.mxu0 0
      %662 = vmatpush2.bf16.msra.mxu0 0
      %663 = vmatprep.mubr.bf16.mxu0 0
      %664 = vmatmul.mubr.bf16.gmra.mxu0 %v521
      %v665 = vpop.f32.mrf.mxu0
      %v666 = vadd.f32 %v544, %v665
      %v667 = vpop.f32.mrf.mxu0
      %v668 = vadd.f32 %v548, %v667
      %v669 = vpop.f32.mrf.mxu0
      %v670 = vadd.f32 %v544, %v669
      %v671 = vpop.f32.mrf.mxu0
      %v672 = vadd.f32 %v548, %v671
      %673 = vmatprep.mubr.bf16.mxu0 0
      %674 = vmatmul.mubr.bf16.gmra.mxu0 %v522
      %v675 = vpop.f32.mrf.mxu0
      %v676 = vadd.f32 %v544, %v675
      %v677 = vpop.f32.mrf.mxu0
      %v678 = vadd.f32 %v548, %v677
      %v679 = vpop.f32.mrf.mxu0
      %v680 = vadd.f32 %v544, %v679
      %v681 = vpop.f32.mrf.mxu0
      %v682 = vadd.f32 %v548, %v681
      %683 = vdwg.mxu0
      %vm684 = vcmask 1041408
      %v685 = vsel %vm684, %v666, %v670
      %v686 = vsel %vm684, %v676, %v680
      %v687 = vsel %vm684, %v668, %v672
      %v688 = vsel %vm684, %v678, %v682
      %v693 = vcombine.high %v666, %v666
      %v695 = vunpack.c.l.s4 1983009808
      %v696 = vunpack.c.0.s8 %v695
      %v697 = vlaneseq
      %v698 = vshrl.u32 %v697, 7
      %v699 = vsub.s32 %v696, %v698
      %v700 = vrot.slane %v666, %v699
      %v702 = vunpack.c.l.s4 1983009808
      %v703 = vunpack.c.0.s8 %v702
      %v704 = vlaneseq
      %v705 = vshrl.u32 %v704, 7
      %v706 = vsub.s32 %v703, %v705
      %v707 = vrot.slane %v693, %v706
      %v708 = vcombine.high %v700, %v700
      %v709 = vcombine.high %v707, %v707
      %v711 = vunpack.c.l.s4 1983009808
      %v712 = vunpack.c.0.s8 %v711
      %v713 = vlaneseq
      %v714 = vshrl.u32 %v713, 7
      %v715 = vsub.s32 %v712, %v714
      %v716 = vrot.slane %v670, %v715
      %v717 = vcombine.high %v676, %v676
      %v719 = vunpack.c.l.s4 1983009808
      %v720 = vunpack.c.0.s8 %v719
      %v721 = vlaneseq
      %v722 = vshrl.u32 %v721, 7
      %v723 = vsub.s32 %v720, %v722
      %v724 = vrot.slane %v676, %v723
      %v726 = vunpack.c.l.s4 1983009808
      %v727 = vunpack.c.0.s8 %v726
      %v728 = vlaneseq
      %v729 = vshrl.u32 %v728, 7
      %v730 = vsub.s32 %v727, %v729
      %v731 = vrot.slane %v717, %v730
      %v732 = vcombine.high %v724, %v724
      %v733 = vcombine.high %v731, %v731
      %v735 = vunpack.c.l.s4 1983009808
      %v736 = vunpack.c.0.s8 %v735
      %v737 = vlaneseq
      %v738 = vshrl.u32 %v737, 7
      %v739 = vsub.s32 %v736, %v738
      %v740 = vrot.slane %v680, %v739
      %v745 = vcombine.high %v668, %v668
      %v747 = vunpack.c.l.s4 1983009808
      %v748 = vunpack.c.0.s8 %v747
      %v749 = vlaneseq
      %v750 = vshrl.u32 %v749, 7
      %v751 = vsub.s32 %v748, %v750
      %v752 = vrot.slane %v668, %v751
      %v754 = vunpack.c.l.s4 1983009808
      %v755 = vunpack.c.0.s8 %v754
      %v756 = vlaneseq
      %v757 = vshrl.u32 %v756, 7
      %v758 = vsub.s32 %v755, %v757
      %v759 = vrot.slane %v745, %v758
      %v760 = vcombine.high %v752, %v752
      %v761 = vcombine.high %v759, %v759
      %v763 = vunpack.c.l.s4 1983009808
      %v764 = vunpack.c.0.s8 %v763
      %v765 = vlaneseq
      %v766 = vshrl.u32 %v765, 7
      %v767 = vsub.s32 %v764, %v766
      %v768 = vrot.slane %v672, %v767
      %v769 = vcombine.high %v678, %v678
      %v771 = vunpack.c.l.s4 1983009808
      %v772 = vunpack.c.0.s8 %v771
      %v773 = vlaneseq
      %v774 = vshrl.u32 %v773, 7
      %v775 = vsub.s32 %v772, %v774
      %v776 = vrot.slane %v678, %v775
      %v778 = vunpack.c.l.s4 1983009808
      %v779 = vunpack.c.0.s8 %v778
      %v780 = vlaneseq
      %v781 = vshrl.u32 %v780, 7
      %v782 = vsub.s32 %v779, %v781
      %v783 = vrot.slane %v769, %v782
      %v784 = vcombine.high %v776, %v776
      %v785 = vcombine.high %v783, %v783
      %v787 = vunpack.c.l.s4 1983009808
      %v788 = vunpack.c.0.s8 %v787
      %v789 = vlaneseq
      %v790 = vshrl.u32 %v789, 7
      %v791 = vsub.s32 %v788, %v790
      %v792 = vrot.slane %v682, %v791
      %vm793 = vcmask 261120
      %v794 = vsel %vm793, %v708, 0
      %v796 = vsel %vm793, %v760, 0
      %798 = vmatprep.subr.mxu0 0.0
      %799 = vmatpush1.xpose.msra.mxu0 0.0
      %800 = vmatprep.subr.mxu0 0.0
      %801 = vmatpush1.xpose.msra.mxu0 0.0
      %802 = vmatprep.subr.mxu0 0.0
      %803 = vmatpush1.xpose.msra.mxu0 0.0
      %804 = vmatprep.subr.mxu0 0.0
      %805 = vmatpush1.xpose.msra.mxu0 0.0
      %806 = vmatprep.subr.mxu0 0.0
      %807 = vmatpush1.xpose.msra.mxu0 0.0
      %808 = vmatprep.subr.mxu0 0.0
      %809 = vmatpush1.xpose.msra.mxu0 0.0
      %810 = vmatprep.subr.mxu0 0.0
      %811 = vmatpush1.xpose.msra.mxu0 0.0
      %812 = vmatprep.subr.mxu0 0.0
      %813 = vmatpush1.xpose.msra.mxu0 0.0
      %814 = vmatprep.subr.mxu0 0.0
      %815 = vmatpush1.xpose.msra.mxu0 0.0
      %816 = vmatprep.subr.mxu0 0.0
      %817 = vmatpush1.xpose.msra.mxu0 0.0
      %818 = vmatprep.subr.mxu0 0.0
      %819 = vmatpush1.xpose.msra.mxu0 0.0
      %820 = vmatprep.subr.mxu0 0.0
      %821 = vmatpush1.xpose.msra.mxu0 0.0
      %822 = vmatprep.subr.mxu0 0.0
      %823 = vmatpush1.xpose.msra.mxu0 0.0
      %824 = vmatprep.subr.mxu0 0.0
      %825 = vmatpush1.xpose.msra.mxu0 0.0
      %826 = vmatprep.subr.mxu0 0.0
      %827 = vmatpush1.xpose.msra.mxu0 0.0
      %828 = vmatprep.subr.mxu0 0.0
      %829 = vmatpush1.xpose.msra.mxu0 %v796
      %830 = vmatprep.subr.mxu0 0.0
      %831 = vmatpush2.xpose.msra.mxu0 0.0
      %832 = vmatprep.subr.mxu0 0.0
      %833 = vmatpush2.xpose.msra.mxu0 0.0
      %834 = vmatprep.subr.mxu0 0.0
      %835 = vmatpush2.xpose.msra.mxu0 0.0
      %836 = vmatprep.subr.mxu0 0.0
      %837 = vmatpush2.xpose.msra.mxu0 0.0
      %838 = vmatprep.subr.mxu0 0.0
      %839 = vmatpush2.xpose.msra.mxu0 0.0
      %840 = vmatprep.subr.mxu0 0.0
      %841 = vmatpush2.xpose.msra.mxu0 0.0
      %842 = vmatprep.subr.mxu0 0.0
      %843 = vmatpush2.xpose.msra.mxu0 0.0
      %844 = vmatprep.subr.mxu0 0.0
      %845 = vmatpush2.xpose.msra.mxu0 0.0
      %846 = vmatprep.subr.mxu0 0.0
      %847 = vmatpush2.xpose.msra.mxu0 0.0
      %848 = vmatprep.subr.mxu0 0.0
      %849 = vmatpush2.xpose.msra.mxu0 0.0
      %850 = vmatprep.subr.mxu0 0.0
      %851 = vmatpush2.xpose.msra.mxu0 0.0
      %852 = vmatprep.subr.mxu0 0.0
      %853 = vmatpush2.xpose.msra.mxu0 0.0
      %854 = vmatprep.subr.mxu0 0.0
      %855 = vmatpush2.xpose.msra.mxu0 0.0
      %856 = vmatprep.subr.mxu0 0.0
      %857 = vmatpush2.xpose.msra.mxu0 0.0
      %858 = vmatprep.subr.mxu0 0.0
      %859 = vmatpush2.xpose.msra.mxu0 0.0
      %860 = vmatprep.subr.mxu0 0.0
      %861 = vmatpush2.xpose.msra.mxu0 0.0
      %862 = vmatprep.mubr.f32.mxu0 0.0
      %863 = vmatmul.mubr.f32.gmra.mxu0 %v794
      %v864 = vpop.f32.mrf.mxu0
      %v865 = vadd.f32 0.0, %v864
      %v866 = vpop.f32.mrf.mxu0
      %867 = vdwg.mxu0
      %v868 = vsel %vm793, %v707, 0
      %v870 = vsel %vm793, %v759, 0
      %872 = vmatprep.subr.mxu0 0.0
      %873 = vmatpush1.xpose.msra.mxu0 0.0
      %874 = vmatprep.subr.mxu0 0.0
      %875 = vmatpush1.xpose.msra.mxu0 0.0
      %876 = vmatprep.subr.mxu0 0.0
      %877 = vmatpush1.xpose.msra.mxu0 0.0
      %878 = vmatprep.subr.mxu0 0.0
      %879 = vmatpush1.xpose.msra.mxu0 0.0
      %880 = vmatprep.subr.mxu0 0.0
      %881 = vmatpush1.xpose.msra.mxu0 0.0
      %882 = vmatprep.subr.mxu0 0.0
      %883 = vmatpush1.xpose.msra.mxu0 0.0
      %884 = vmatprep.subr.mxu0 0.0
      %885 = vmatpush1.xpose.msra.mxu0 0.0
      %886 = vmatprep.subr.mxu0 0.0
      %887 = vmatpush1.xpose.msra.mxu0 0.0
      %888 = vmatprep.subr.mxu0 0.0
      %889 = vmatpush1.xpose.msra.mxu0 0.0
      %890 = vmatprep.subr.mxu0 0.0
      %891 = vmatpush1.xpose.msra.mxu0 0.0
      %892 = vmatprep.subr.mxu0 0.0
      %893 = vmatpush1.xpose.msra.mxu0 0.0
      %894 = vmatprep.subr.mxu0 0.0
      %895 = vmatpush1.xpose.msra.mxu0 0.0
      %896 = vmatprep.subr.mxu0 0.0
      %897 = vmatpush1.xpose.msra.mxu0 0.0
      %898 = vmatprep.subr.mxu0 0.0
      %899 = vmatpush1.xpose.msra.mxu0 0.0
      %900 = vmatprep.subr.mxu0 0.0
      %901 = vmatpush1.xpose.msra.mxu0 0.0
      %902 = vmatprep.subr.mxu0 0.0
      %903 = vmatpush1.xpose.msra.mxu0 %v870
      %904 = vmatprep.subr.mxu0 0.0
      %905 = vmatpush2.xpose.msra.mxu0 0.0
      %906 = vmatprep.subr.mxu0 0.0
      %907 = vmatpush2.xpose.msra.mxu0 0.0
      %908 = vmatprep.subr.mxu0 0.0
      %909 = vmatpush2.xpose.msra.mxu0 0.0
      %910 = vmatprep.subr.mxu0 0.0
      %911 = vmatpush2.xpose.msra.mxu0 0.0
      %912 = vmatprep.subr.mxu0 0.0
      %913 = vmatpush2.xpose.msra.mxu0 0.0
      %914 = vmatprep.subr.mxu0 0.0
      %915 = vmatpush2.xpose.msra.mxu0 0.0
      %916 = vmatprep.subr.mxu0 0.0
      %917 = vmatpush2.xpose.msra.mxu0 0.0
      %918 = vmatprep.subr.mxu0 0.0
      %919 = vmatpush2.xpose.msra.mxu0 0.0
      %920 = vmatprep.subr.mxu0 0.0
      %921 = vmatpush2.xpose.msra.mxu0 0.0
      %922 = vmatprep.subr.mxu0 0.0
      %923 = vmatpush2.xpose.msra.mxu0 0.0
      %924 = vmatprep.subr.mxu0 0.0
      %925 = vmatpush2.xpose.msra.mxu0 0.0
      %926 = vmatprep.subr.mxu0 0.0
      %927 = vmatpush2.xpose.msra.mxu0 0.0
      %928 = vmatprep.subr.mxu0 0.0
      %929 = vmatpush2.xpose.msra.mxu0 0.0
      %930 = vmatprep.subr.mxu0 0.0
      %931 = vmatpush2.xpose.msra.mxu0 0.0
      %932 = vmatprep.subr.mxu0 0.0
      %933 = vmatpush2.xpose.msra.mxu0 0.0
      %934 = vmatprep.subr.mxu0 0.0
      %935 = vmatpush2.xpose.msra.mxu0 0.0
      %936 = vmatprep.mubr.f32.mxu0 0.0
      %937 = vmatmul.mubr.f32.gmra.mxu0 %v868
      %v938 = vpop.f32.mrf.mxu0
      %v939 = vadd.f32 0.0, %v938
      %v940 = vpop.f32.mrf.mxu0
      %941 = vdwg.mxu0
      %v942 = vsel %vm793, %v709, 0
      %v944 = vsel %vm793, %v761, 0
      %946 = vmatprep.subr.mxu0 0.0
      %947 = vmatpush1.xpose.msra.mxu0 0.0
      %948 = vmatprep.subr.mxu0 0.0
      %949 = vmatpush1.xpose.msra.mxu0 0.0
      %950 = vmatprep.subr.mxu0 0.0
      %951 = vmatpush1.xpose.msra.mxu0 0.0
      %952 = vmatprep.subr.mxu0 0.0
      %953 = vmatpush1.xpose.msra.mxu0 0.0
      %954 = vmatprep.subr.mxu0 0.0
      %955 = vmatpush1.xpose.msra.mxu0 0.0
      %956 = vmatprep.subr.mxu0 0.0
      %957 = vmatpush1.xpose.msra.mxu0 0.0
      %958 = vmatprep.subr.mxu0 0.0
      %959 = vmatpush1.xpose.msra.mxu0 0.0
      %960 = vmatprep.subr.mxu0 0.0
      %961 = vmatpush1.xpose.msra.mxu0 0.0
      %962 = vmatprep.subr.mxu0 0.0
      %963 = vmatpush1.xpose.msra.mxu0 0.0
      %964 = vmatprep.subr.mxu0 0.0
      %965 = vmatpush1.xpose.msra.mxu0 0.0
      %966 = vmatprep.subr.mxu0 0.0
      %967 = vmatpush1.xpose.msra.mxu0 0.0
      %968 = vmatprep.subr.mxu0 0.0
      %969 = vmatpush1.xpose.msra.mxu0 0.0
      %970 = vmatprep.subr.mxu0 0.0
      %971 = vmatpush1.xpose.msra.mxu0 0.0
      %972 = vmatprep.subr.mxu0 0.0
      %973 = vmatpush1.xpose.msra.mxu0 0.0
      %974 = vmatprep.subr.mxu0 0.0
      %975 = vmatpush1.xpose.msra.mxu0 0.0
      %976 = vmatprep.subr.mxu0 0.0
      %977 = vmatpush1.xpose.msra.mxu0 %v944
      %978 = vmatprep.subr.mxu0 0.0
      %979 = vmatpush2.xpose.msra.mxu0 0.0
      %980 = vmatprep.subr.mxu0 0.0
      %981 = vmatpush2.xpose.msra.mxu0 0.0
      %982 = vmatprep.subr.mxu0 0.0
      %983 = vmatpush2.xpose.msra.mxu0 0.0
      %984 = vmatprep.subr.mxu0 0.0
      %985 = vmatpush2.xpose.msra.mxu0 0.0
      %986 = vmatprep.subr.mxu0 0.0
      %987 = vmatpush2.xpose.msra.mxu0 0.0
      %988 = vmatprep.subr.mxu0 0.0
      %989 = vmatpush2.xpose.msra.mxu0 0.0
      %990 = vmatprep.subr.mxu0 0.0
      %991 = vmatpush2.xpose.msra.mxu0 0.0
      %992 = vmatprep.subr.mxu0 0.0
      %993 = vmatpush2.xpose.msra.mxu0 0.0
      %994 = vmatprep.subr.mxu0 0.0
      %995 = vmatpush2.xpose.msra.mxu0 0.0
      %996 = vmatprep.subr.mxu0 0.0
      %997 = vmatpush2.xpose.msra.mxu0 0.0
      %998 = vmatprep.subr.mxu0 0.0
      %999 = vmatpush2.xpose.msra.mxu0 0.0
      %1000 = vmatprep.subr.mxu0 0.0
      %1001 = vmatpush2.xpose.msra.mxu0 0.0
      %1002 = vmatprep.subr.mxu0 0.0
      %1003 = vmatpush2.xpose.msra.mxu0 0.0
      %1004 = vmatprep.subr.mxu0 0.0
      %1005 = vmatpush2.xpose.msra.mxu0 0.0
      %1006 = vmatprep.subr.mxu0 0.0
      %1007 = vmatpush2.xpose.msra.mxu0 0.0
      %1008 = vmatprep.subr.mxu0 0.0
      %1009 = vmatpush2.xpose.msra.mxu0 0.0
      %1010 = vmatprep.mubr.f32.mxu0 0.0
      %1011 = vmatmul.mubr.f32.gmra.mxu0 %v942
      %v1012 = vpop.f32.mrf.mxu0
      %v1013 = vadd.f32 0.0, %v1012
      %v1014 = vpop.f32.mrf.mxu0
      %1015 = vdwg.mxu0
      %v1016 = vsel %vm793, %v716, 0
      %v1018 = vsel %vm793, %v768, 0
      %1020 = vmatprep.subr.mxu0 0.0
      %1021 = vmatpush1.xpose.msra.mxu0 0.0
      %1022 = vmatprep.subr.mxu0 0.0
      %1023 = vmatpush1.xpose.msra.mxu0 0.0
      %1024 = vmatprep.subr.mxu0 0.0
      %1025 = vmatpush1.xpose.msra.mxu0 0.0
      %1026 = vmatprep.subr.mxu0 0.0
      %1027 = vmatpush1.xpose.msra.mxu0 0.0
      %1028 = vmatprep.subr.mxu0 0.0
      %1029 = vmatpush1.xpose.msra.mxu0 0.0
      %1030 = vmatprep.subr.mxu0 0.0
      %1031 = vmatpush1.xpose.msra.mxu0 0.0
      %1032 = vmatprep.subr.mxu0 0.0
      %1033 = vmatpush1.xpose.msra.mxu0 0.0
      %1034 = vmatprep.subr.mxu0 0.0
      %1035 = vmatpush1.xpose.msra.mxu0 0.0
      %1036 = vmatprep.subr.mxu0 0.0
      %1037 = vmatpush1.xpose.msra.mxu0 0.0
      %1038 = vmatprep.subr.mxu0 0.0
      %1039 = vmatpush1.xpose.msra.mxu0 0.0
      %1040 = vmatprep.subr.mxu0 0.0
      %1041 = vmatpush1.xpose.msra.mxu0 0.0
      %1042 = vmatprep.subr.mxu0 0.0
      %1043 = vmatpush1.xpose.msra.mxu0 0.0
      %1044 = vmatprep.subr.mxu0 0.0
      %1045 = vmatpush1.xpose.msra.mxu0 0.0
      %1046 = vmatprep.subr.mxu0 0.0
      %1047 = vmatpush1.xpose.msra.mxu0 0.0
      %1048 = vmatprep.subr.mxu0 0.0
      %1049 = vmatpush1.xpose.msra.mxu0 0.0
      %1050 = vmatprep.subr.mxu0 0.0
      %1051 = vmatpush1.xpose.msra.mxu0 %v1018
      %1052 = vmatprep.subr.mxu0 0.0
      %1053 = vmatpush2.xpose.msra.mxu0 0.0
      %1054 = vmatprep.subr.mxu0 0.0
      %1055 = vmatpush2.xpose.msra.mxu0 0.0
      %1056 = vmatprep.subr.mxu0 0.0
      %1057 = vmatpush2.xpose.msra.mxu0 0.0
      %1058 = vmatprep.subr.mxu0 0.0
      %1059 = vmatpush2.xpose.msra.mxu0 0.0
      %1060 = vmatprep.subr.mxu0 0.0
      %1061 = vmatpush2.xpose.msra.mxu0 0.0
      %1062 = vmatprep.subr.mxu0 0.0
      %1063 = vmatpush2.xpose.msra.mxu0 0.0
      %1064 = vmatprep.subr.mxu0 0.0
      %1065 = vmatpush2.xpose.msra.mxu0 0.0
      %1066 = vmatprep.subr.mxu0 0.0
      %1067 = vmatpush2.xpose.msra.mxu0 0.0
      %1068 = vmatprep.subr.mxu0 0.0
      %1069 = vmatpush2.xpose.msra.mxu0 0.0
      %1070 = vmatprep.subr.mxu0 0.0
      %1071 = vmatpush2.xpose.msra.mxu0 0.0
      %1072 = vmatprep.subr.mxu0 0.0
      %1073 = vmatpush2.xpose.msra.mxu0 0.0
      %1074 = vmatprep.subr.mxu0 0.0
      %1075 = vmatpush2.xpose.msra.mxu0 0.0
      %1076 = vmatprep.subr.mxu0 0.0
      %1077 = vmatpush2.xpose.msra.mxu0 0.0
      %1078 = vmatprep.subr.mxu0 0.0
      %1079 = vmatpush2.xpose.msra.mxu0 0.0
      %1080 = vmatprep.subr.mxu0 0.0
      %1081 = vmatpush2.xpose.msra.mxu0 0.0
      %1082 = vmatprep.subr.mxu0 0.0
      %1083 = vmatpush2.xpose.msra.mxu0 0.0
      %1084 = vmatprep.mubr.f32.mxu0 0.0
      %1085 = vmatmul.mubr.f32.gmra.mxu0 %v1016
      %v1086 = vpop.f32.mrf.mxu0
      %v1087 = vadd.f32 0.0, %v1086
      %v1088 = vpop.f32.mrf.mxu0
      %1089 = vdwg.mxu0
      %v1090 = vsel %vm793, %v732, 0
      %v1092 = vsel %vm793, %v784, 0
      %1094 = vmatprep.subr.mxu0 0.0
      %1095 = vmatpush1.xpose.msra.mxu0 0.0
      %1096 = vmatprep.subr.mxu0 0.0
      %1097 = vmatpush1.xpose.msra.mxu0 0.0
      %1098 = vmatprep.subr.mxu0 0.0
      %1099 = vmatpush1.xpose.msra.mxu0 0.0
      %1100 = vmatprep.subr.mxu0 0.0
      %1101 = vmatpush1.xpose.msra.mxu0 0.0
      %1102 = vmatprep.subr.mxu0 0.0
      %1103 = vmatpush1.xpose.msra.mxu0 0.0
      %1104 = vmatprep.subr.mxu0 0.0
      %1105 = vmatpush1.xpose.msra.mxu0 0.0
      %1106 = vmatprep.subr.mxu0 0.0
      %1107 = vmatpush1.xpose.msra.mxu0 0.0
      %1108 = vmatprep.subr.mxu0 0.0
      %1109 = vmatpush1.xpose.msra.mxu0 0.0
      %1110 = vmatprep.subr.mxu0 0.0
      %1111 = vmatpush1.xpose.msra.mxu0 0.0
      %1112 = vmatprep.subr.mxu0 0.0
      %1113 = vmatpush1.xpose.msra.mxu0 0.0
      %1114 = vmatprep.subr.mxu0 0.0
      %1115 = vmatpush1.xpose.msra.mxu0 0.0
      %1116 = vmatprep.subr.mxu0 0.0
      %1117 = vmatpush1.xpose.msra.mxu0 0.0
      %1118 = vmatprep.subr.mxu0 0.0
      %1119 = vmatpush1.xpose.msra.mxu0 0.0
      %1120 = vmatprep.subr.mxu0 0.0
      %1121 = vmatpush1.xpose.msra.mxu0 0.0
      %1122 = vmatprep.subr.mxu0 0.0
      %1123 = vmatpush1.xpose.msra.mxu0 0.0
      %1124 = vmatprep.subr.mxu0 0.0
      %1125 = vmatpush1.xpose.msra.mxu0 %v1092
      %1126 = vmatprep.subr.mxu0 0.0
      %1127 = vmatpush2.xpose.msra.mxu0 0.0
      %1128 = vmatprep.subr.mxu0 0.0
      %1129 = vmatpush2.xpose.msra.mxu0 0.0
      %1130 = vmatprep.subr.mxu0 0.0
      %1131 = vmatpush2.xpose.msra.mxu0 0.0
      %1132 = vmatprep.subr.mxu0 0.0
      %1133 = vmatpush2.xpose.msra.mxu0 0.0
      %1134 = vmatprep.subr.mxu0 0.0
      %1135 = vmatpush2.xpose.msra.mxu0 0.0
      %1136 = vmatprep.subr.mxu0 0.0
      %1137 = vmatpush2.xpose.msra.mxu0 0.0
      %1138 = vmatprep.subr.mxu0 0.0
      %1139 = vmatpush2.xpose.msra.mxu0 0.0
      %1140 = vmatprep.subr.mxu0 0.0
      %1141 = vmatpush2.xpose.msra.mxu0 0.0
      %1142 = vmatprep.subr.mxu0 0.0
      %1143 = vmatpush2.xpose.msra.mxu0 0.0
      %1144 = vmatprep.subr.mxu0 0.0
      %1145 = vmatpush2.xpose.msra.mxu0 0.0
      %1146 = vmatprep.subr.mxu0 0.0
      %1147 = vmatpush2.xpose.msra.mxu0 0.0
      %1148 = vmatprep.subr.mxu0 0.0
      %1149 = vmatpush2.xpose.msra.mxu0 0.0
      %1150 = vmatprep.subr.mxu0 0.0
      %1151 = vmatpush2.xpose.msra.mxu0 0.0
      %1152 = vmatprep.subr.mxu0 0.0
      %1153 = vmatpush2.xpose.msra.mxu0 0.0
      %1154 = vmatprep.subr.mxu0 0.0
      %1155 = vmatpush2.xpose.msra.mxu0 0.0
      %1156 = vmatprep.subr.mxu0 0.0
      %1157 = vmatpush2.xpose.msra.mxu0 0.0
      %1158 = vmatprep.mubr.f32.mxu0 0.0
      %1159 = vmatmul.mubr.f32.gmra.mxu0 %v1090
      %v1160 = vpop.f32.mrf.mxu0
      %v1161 = vadd.f32 0.0, %v1160
      %v1162 = vpop.f32.mrf.mxu0
      %1163 = vdwg.mxu0
      %v1164 = vsel %vm793, %v731, 0
      %v1166 = vsel %vm793, %v783, 0
      %1168 = vmatprep.subr.mxu0 0.0
      %1169 = vmatpush1.xpose.msra.mxu0 0.0
      %1170 = vmatprep.subr.mxu0 0.0
      %1171 = vmatpush1.xpose.msra.mxu0 0.0
      %1172 = vmatprep.subr.mxu0 0.0
      %1173 = vmatpush1.xpose.msra.mxu0 0.0
      %1174 = vmatprep.subr.mxu0 0.0
      %1175 = vmatpush1.xpose.msra.mxu0 0.0
      %1176 = vmatprep.subr.mxu0 0.0
      %1177 = vmatpush1.xpose.msra.mxu0 0.0
      %1178 = vmatprep.subr.mxu0 0.0
      %1179 = vmatpush1.xpose.msra.mxu0 0.0
      %1180 = vmatprep.subr.mxu0 0.0
      %1181 = vmatpush1.xpose.msra.mxu0 0.0
      %1182 = vmatprep.subr.mxu0 0.0
      %1183 = vmatpush1.xpose.msra.mxu0 0.0
      %1184 = vmatprep.subr.mxu0 0.0
      %1185 = vmatpush1.xpose.msra.mxu0 0.0
      %1186 = vmatprep.subr.mxu0 0.0
      %1187 = vmatpush1.xpose.msra.mxu0 0.0
      %1188 = vmatprep.subr.mxu0 0.0
      %1189 = vmatpush1.xpose.msra.mxu0 0.0
      %1190 = vmatprep.subr.mxu0 0.0
      %1191 = vmatpush1.xpose.msra.mxu0 0.0
      %1192 = vmatprep.subr.mxu0 0.0
      %1193 = vmatpush1.xpose.msra.mxu0 0.0
      %1194 = vmatprep.subr.mxu0 0.0
      %1195 = vmatpush1.xpose.msra.mxu0 0.0
      %1196 = vmatprep.subr.mxu0 0.0
      %1197 = vmatpush1.xpose.msra.mxu0 0.0
      %1198 = vmatprep.subr.mxu0 0.0
      %1199 = vmatpush1.xpose.msra.mxu0 %v1166
      %1200 = vmatprep.subr.mxu0 0.0
      %1201 = vmatpush2.xpose.msra.mxu0 0.0
      %1202 = vmatprep.subr.mxu0 0.0
      %1203 = vmatpush2.xpose.msra.mxu0 0.0
      %1204 = vmatprep.subr.mxu0 0.0
      %1205 = vmatpush2.xpose.msra.mxu0 0.0
      %1206 = vmatprep.subr.mxu0 0.0
      %1207 = vmatpush2.xpose.msra.mxu0 0.0
      %1208 = vmatprep.subr.mxu0 0.0
      %1209 = vmatpush2.xpose.msra.mxu0 0.0
      %1210 = vmatprep.subr.mxu0 0.0
      %1211 = vmatpush2.xpose.msra.mxu0 0.0
      %1212 = vmatprep.subr.mxu0 0.0
      %1213 = vmatpush2.xpose.msra.mxu0 0.0
      %1214 = vmatprep.subr.mxu0 0.0
      %1215 = vmatpush2.xpose.msra.mxu0 0.0
      %1216 = vmatprep.subr.mxu0 0.0
      %1217 = vmatpush2.xpose.msra.mxu0 0.0
      %1218 = vmatprep.subr.mxu0 0.0
      %1219 = vmatpush2.xpose.msra.mxu0 0.0
      %1220 = vmatprep.subr.mxu0 0.0
      %1221 = vmatpush2.xpose.msra.mxu0 0.0
      %1222 = vmatprep.subr.mxu0 0.0
      %1223 = vmatpush2.xpose.msra.mxu0 0.0
      %1224 = vmatprep.subr.mxu0 0.0
      %1225 = vmatpush2.xpose.msra.mxu0 0.0
      %1226 = vmatprep.subr.mxu0 0.0
      %1227 = vmatpush2.xpose.msra.mxu0 0.0
      %1228 = vmatprep.subr.mxu0 0.0
      %1229 = vmatpush2.xpose.msra.mxu0 0.0
      %1230 = vmatprep.subr.mxu0 0.0
      %1231 = vmatpush2.xpose.msra.mxu0 0.0
      %1232 = vmatprep.mubr.f32.mxu0 0.0
      %1233 = vmatmul.mubr.f32.gmra.mxu0 %v1164
      %v1234 = vpop.f32.mrf.mxu0
      %v1235 = vadd.f32 0.0, %v1234
      %v1236 = vpop.f32.mrf.mxu0
      %1237 = vdwg.mxu0
      %v1238 = vsel %vm793, %v733, 0
      %v1240 = vsel %vm793, %v785, 0
      %1242 = vmatprep.subr.mxu0 0.0
      %1243 = vmatpush1.xpose.msra.mxu0 0.0
      %1244 = vmatprep.subr.mxu0 0.0
      %1245 = vmatpush1.xpose.msra.mxu0 0.0
      %1246 = vmatprep.subr.mxu0 0.0
      %1247 = vmatpush1.xpose.msra.mxu0 0.0
      %1248 = vmatprep.subr.mxu0 0.0
      %1249 = vmatpush1.xpose.msra.mxu0 0.0
      %1250 = vmatprep.subr.mxu0 0.0
      %1251 = vmatpush1.xpose.msra.mxu0 0.0
      %1252 = vmatprep.subr.mxu0 0.0
      %1253 = vmatpush1.xpose.msra.mxu0 0.0
      %1254 = vmatprep.subr.mxu0 0.0
      %1255 = vmatpush1.xpose.msra.mxu0 0.0
      %1256 = vmatprep.subr.mxu0 0.0
      %1257 = vmatpush1.xpose.msra.mxu0 0.0
      %1258 = vmatprep.subr.mxu0 0.0
      %1259 = vmatpush1.xpose.msra.mxu0 0.0
      %1260 = vmatprep.subr.mxu0 0.0
      %1261 = vmatpush1.xpose.msra.mxu0 0.0
      %1262 = vmatprep.subr.mxu0 0.0
      %1263 = vmatpush1.xpose.msra.mxu0 0.0
      %1264 = vmatprep.subr.mxu0 0.0
      %1265 = vmatpush1.xpose.msra.mxu0 0.0
      %1266 = vmatprep.subr.mxu0 0.0
      %1267 = vmatpush1.xpose.msra.mxu0 0.0
      %1268 = vmatprep.subr.mxu0 0.0
      %1269 = vmatpush1.xpose.msra.mxu0 0.0
      %1270 = vmatprep.subr.mxu0 0.0
      %1271 = vmatpush1.xpose.msra.mxu0 0.0
      %1272 = vmatprep.subr.mxu0 0.0
      %1273 = vmatpush1.xpose.msra.mxu0 %v1240
      %1274 = vmatprep.subr.mxu0 0.0
      %1275 = vmatpush2.xpose.msra.mxu0 0.0
      %1276 = vmatprep.subr.mxu0 0.0
      %1277 = vmatpush2.xpose.msra.mxu0 0.0
      %1278 = vmatprep.subr.mxu0 0.0
      %1279 = vmatpush2.xpose.msra.mxu0 0.0
      %1280 = vmatprep.subr.mxu0 0.0
      %1281 = vmatpush2.xpose.msra.mxu0 0.0
      %1282 = vmatprep.subr.mxu0 0.0
      %1283 = vmatpush2.xpose.msra.mxu0 0.0
      %1284 = vmatprep.subr.mxu0 0.0
      %1285 = vmatpush2.xpose.msra.mxu0 0.0
      %1286 = vmatprep.subr.mxu0 0.0
      %1287 = vmatpush2.xpose.msra.mxu0 0.0
      %1288 = vmatprep.subr.mxu0 0.0
      %1289 = vmatpush2.xpose.msra.mxu0 0.0
      %1290 = vmatprep.subr.mxu0 0.0
      %1291 = vmatpush2.xpose.msra.mxu0 0.0
      %1292 = vmatprep.subr.mxu0 0.0
      %1293 = vmatpush2.xpose.msra.mxu0 0.0
      %1294 = vmatprep.subr.mxu0 0.0
      %1295 = vmatpush2.xpose.msra.mxu0 0.0
      %1296 = vmatprep.subr.mxu0 0.0
      %1297 = vmatpush2.xpose.msra.mxu0 0.0
      %1298 = vmatprep.subr.mxu0 0.0
      %1299 = vmatpush2.xpose.msra.mxu0 0.0
      %1300 = vmatprep.subr.mxu0 0.0
      %1301 = vmatpush2.xpose.msra.mxu0 0.0
      %1302 = vmatprep.subr.mxu0 0.0
      %1303 = vmatpush2.xpose.msra.mxu0 0.0
      %1304 = vmatprep.subr.mxu0 0.0
      %1305 = vmatpush2.xpose.msra.mxu0 0.0
      %1306 = vmatprep.mubr.f32.mxu0 0.0
      %1307 = vmatmul.mubr.f32.gmra.mxu0 %v1238
      %v1308 = vpop.f32.mrf.mxu0
      %v1309 = vadd.f32 0.0, %v1308
      %v1310 = vpop.f32.mrf.mxu0
      %1311 = vdwg.mxu0
      %v1312 = vsel %vm793, %v740, 0
      %v1314 = vsel %vm793, %v792, 0
      %1316 = vmatprep.subr.mxu0 0.0
      %1317 = vmatpush1.xpose.msra.mxu0 0.0
      %1318 = vmatprep.subr.mxu0 0.0
      %1319 = vmatpush1.xpose.msra.mxu0 0.0
      %1320 = vmatprep.subr.mxu0 0.0
      %1321 = vmatpush1.xpose.msra.mxu0 0.0
      %1322 = vmatprep.subr.mxu0 0.0
      %1323 = vmatpush1.xpose.msra.mxu0 0.0
      %1324 = vmatprep.subr.mxu0 0.0
      %1325 = vmatpush1.xpose.msra.mxu0 0.0
      %1326 = vmatprep.subr.mxu0 0.0
      %1327 = vmatpush1.xpose.msra.mxu0 0.0
      %1328 = vmatprep.subr.mxu0 0.0
      %1329 = vmatpush1.xpose.msra.mxu0 0.0
      %1330 = vmatprep.subr.mxu0 0.0
      %1331 = vmatpush1.xpose.msra.mxu0 0.0
      %1332 = vmatprep.subr.mxu0 0.0
      %1333 = vmatpush1.xpose.msra.mxu0 0.0
      %1334 = vmatprep.subr.mxu0 0.0
      %1335 = vmatpush1.xpose.msra.mxu0 0.0
      %1336 = vmatprep.subr.mxu0 0.0
      %1337 = vmatpush1.xpose.msra.mxu0 0.0
      %1338 = vmatprep.subr.mxu0 0.0
      %1339 = vmatpush1.xpose.msra.mxu0 0.0
      %1340 = vmatprep.subr.mxu0 0.0
      %1341 = vmatpush1.xpose.msra.mxu0 0.0
      %1342 = vmatprep.subr.mxu0 0.0
      %1343 = vmatpush1.xpose.msra.mxu0 0.0
      %1344 = vmatprep.subr.mxu0 0.0
      %1345 = vmatpush1.xpose.msra.mxu0 0.0
      %1346 = vmatprep.subr.mxu0 0.0
      %1347 = vmatpush1.xpose.msra.mxu0 %v1314
      %1348 = vmatprep.subr.mxu0 0.0
      %1349 = vmatpush2.xpose.msra.mxu0 0.0
      %1350 = vmatprep.subr.mxu0 0.0
      %1351 = vmatpush2.xpose.msra.mxu0 0.0
      %1352 = vmatprep.subr.mxu0 0.0
      %1353 = vmatpush2.xpose.msra.mxu0 0.0
      %1354 = vmatprep.subr.mxu0 0.0
      %1355 = vmatpush2.xpose.msra.mxu0 0.0
      %1356 = vmatprep.subr.mxu0 0.0
      %1357 = vmatpush2.xpose.msra.mxu0 0.0
      %1358 = vmatprep.subr.mxu0 0.0
      %1359 = vmatpush2.xpose.msra.mxu0 0.0
      %1360 = vmatprep.subr.mxu0 0.0
      %1361 = vmatpush2.xpose.msra.mxu0 0.0
      %1362 = vmatprep.subr.mxu0 0.0
      %1363 = vmatpush2.xpose.msra.mxu0 0.0
      %1364 = vmatprep.subr.mxu0 0.0
      %1365 = vmatpush2.xpose.msra.mxu0 0.0
      %1366 = vmatprep.subr.mxu0 0.0
      %1367 = vmatpush2.xpose.msra.mxu0 0.0
      %1368 = vmatprep.subr.mxu0 0.0
      %1369 = vmatpush2.xpose.msra.mxu0 0.0
      %1370 = vmatprep.subr.mxu0 0.0
      %1371 = vmatpush2.xpose.msra.mxu0 0.0
      %1372 = vmatprep.subr.mxu0 0.0
      %1373 = vmatpush2.xpose.msra.mxu0 0.0
      %1374 = vmatprep.subr.mxu0 0.0
      %1375 = vmatpush2.xpose.msra.mxu0 0.0
      %1376 = vmatprep.subr.mxu0 0.0
      %1377 = vmatpush2.xpose.msra.mxu0 0.0
      %1378 = vmatprep.subr.mxu0 0.0
      %1379 = vmatpush2.xpose.msra.mxu0 0.0
      %1380 = vmatprep.mubr.f32.mxu0 0.0
      %1381 = vmatmul.mubr.f32.gmra.mxu0 %v1312
      %v1382 = vpop.f32.mrf.mxu0
      %v1383 = vadd.f32 0.0, %v1382
      %v1384 = vpop.f32.mrf.mxu0
      %1385 = vdwg.mxu0
      %vm1386 = vcmask 1045504
      %v1387 = vrot.slane %v666, 2
      %v1388 = vrot.slane %v670, 2
      %v1389 = vsel %vm1386, %v1387, %v1388
      %v1390 = vrot.slane %v672, 2
      %v1391 = vsel %vm793, %v1389, 0
      %v1393 = vsel %vm793, %v1390, 0
      %1395 = vmatprep.subr.mxu0 0.0
      %1396 = vmatpush1.xpose.msra.mxu0 0.0
      %1397 = vmatprep.subr.mxu0 0.0
      %1398 = vmatpush1.xpose.msra.mxu0 0.0
      %1399 = vmatprep.subr.mxu0 0.0
      %1400 = vmatpush1.xpose.msra.mxu0 0.0
      %1401 = vmatprep.subr.mxu0 0.0
      %1402 = vmatpush1.xpose.msra.mxu0 0.0
      %1403 = vmatprep.subr.mxu0 0.0
      %1404 = vmatpush1.xpose.msra.mxu0 0.0
      %1405 = vmatprep.subr.mxu0 0.0
      %1406 = vmatpush1.xpose.msra.mxu0 0.0
      %1407 = vmatprep.subr.mxu0 0.0
      %1408 = vmatpush1.xpose.msra.mxu0 0.0
      %1409 = vmatprep.subr.mxu0 0.0
      %1410 = vmatpush1.xpose.msra.mxu0 0.0
      %1411 = vmatprep.subr.mxu0 0.0
      %1412 = vmatpush1.xpose.msra.mxu0 0.0
      %1413 = vmatprep.subr.mxu0 0.0
      %1414 = vmatpush1.xpose.msra.mxu0 0.0
      %1415 = vmatprep.subr.mxu0 0.0
      %1416 = vmatpush1.xpose.msra.mxu0 0.0
      %1417 = vmatprep.subr.mxu0 0.0
      %1418 = vmatpush1.xpose.msra.mxu0 0.0
      %1419 = vmatprep.subr.mxu0 0.0
      %1420 = vmatpush1.xpose.msra.mxu0 0.0
      %1421 = vmatprep.subr.mxu0 0.0
      %1422 = vmatpush1.xpose.msra.mxu0 0.0
      %1423 = vmatprep.subr.mxu0 0.0
      %1424 = vmatpush1.xpose.msra.mxu0 0.0
      %1425 = vmatprep.subr.mxu0 0.0
      %1426 = vmatpush1.xpose.msra.mxu0 %v1393
      %1427 = vmatprep.subr.mxu0 0.0
      %1428 = vmatpush2.xpose.msra.mxu0 0.0
      %1429 = vmatprep.subr.mxu0 0.0
      %1430 = vmatpush2.xpose.msra.mxu0 0.0
      %1431 = vmatprep.subr.mxu0 0.0
      %1432 = vmatpush2.xpose.msra.mxu0 0.0
      %1433 = vmatprep.subr.mxu0 0.0
      %1434 = vmatpush2.xpose.msra.mxu0 0.0
      %1435 = vmatprep.subr.mxu0 0.0
      %1436 = vmatpush2.xpose.msra.mxu0 0.0
      %1437 = vmatprep.subr.mxu0 0.0
      %1438 = vmatpush2.xpose.msra.mxu0 0.0
      %1439 = vmatprep.subr.mxu0 0.0
      %1440 = vmatpush2.xpose.msra.mxu0 0.0
      %1441 = vmatprep.subr.mxu0 0.0
      %1442 = vmatpush2.xpose.msra.mxu0 0.0
      %1443 = vmatprep.subr.mxu0 0.0
      %1444 = vmatpush2.xpose.msra.mxu0 0.0
      %1445 = vmatprep.subr.mxu0 0.0
      %1446 = vmatpush2.xpose.msra.mxu0 0.0
      %1447 = vmatprep.subr.mxu0 0.0
      %1448 = vmatpush2.xpose.msra.mxu0 0.0
      %1449 = vmatprep.subr.mxu0 0.0
      %1450 = vmatpush2.xpose.msra.mxu0 0.0
      %1451 = vmatprep.subr.mxu0 0.0
      %1452 = vmatpush2.xpose.msra.mxu0 0.0
      %1453 = vmatprep.subr.mxu0 0.0
      %1454 = vmatpush2.xpose.msra.mxu0 0.0
      %1455 = vmatprep.subr.mxu0 0.0
      %1456 = vmatpush2.xpose.msra.mxu0 0.0
      %1457 = vmatprep.subr.mxu0 0.0
      %1458 = vmatpush2.xpose.msra.mxu0 0.0
      %1459 = vmatprep.mubr.f32.mxu0 0.0
      %1460 = vmatmul.mubr.f32.gmra.mxu0 %v1391
      %v1461 = vpop.f32.mrf.mxu0
      %v1462 = vadd.f32 0.0, %v1461
      %v1463 = vpop.f32.mrf.mxu0
      %1464 = vdwg.mxu0
      %v1465 = vrot.slane %v676, 2
      %v1466 = vrot.slane %v680, 2
      %v1467 = vsel %vm1386, %v1465, %v1466
      %v1468 = vrot.slane %v682, 2
      %v1469 = vsel %vm793, %v1467, 0
      %v1471 = vsel %vm793, %v1468, 0
      %1473 = vmatprep.subr.mxu0 0.0
      %1474 = vmatpush1.xpose.msra.mxu0 0.0
      %1475 = vmatprep.subr.mxu0 0.0
      %1476 = vmatpush1.xpose.msra.mxu0 0.0
      %1477 = vmatprep.subr.mxu0 0.0
      %1478 = vmatpush1.xpose.msra.mxu0 0.0
      %1479 = vmatprep.subr.mxu0 0.0
      %1480 = vmatpush1.xpose.msra.mxu0 0.0
      %1481 = vmatprep.subr.mxu0 0.0
      %1482 = vmatpush1.xpose.msra.mxu0 0.0
      %1483 = vmatprep.subr.mxu0 0.0
      %1484 = vmatpush1.xpose.msra.mxu0 0.0
      %1485 = vmatprep.subr.mxu0 0.0
      %1486 = vmatpush1.xpose.msra.mxu0 0.0
      %1487 = vmatprep.subr.mxu0 0.0
      %1488 = vmatpush1.xpose.msra.mxu0 0.0
      %1489 = vmatprep.subr.mxu0 0.0
      %1490 = vmatpush1.xpose.msra.mxu0 0.0
      %1491 = vmatprep.subr.mxu0 0.0
      %1492 = vmatpush1.xpose.msra.mxu0 0.0
      %1493 = vmatprep.subr.mxu0 0.0
      %1494 = vmatpush1.xpose.msra.mxu0 0.0
      %1495 = vmatprep.subr.mxu0 0.0
      %1496 = vmatpush1.xpose.msra.mxu0 0.0
      %1497 = vmatprep.subr.mxu0 0.0
      %1498 = vmatpush1.xpose.msra.mxu0 0.0
      %1499 = vmatprep.subr.mxu0 0.0
      %1500 = vmatpush1.xpose.msra.mxu0 0.0
      %1501 = vmatprep.subr.mxu0 0.0
      %1502 = vmatpush1.xpose.msra.mxu0 0.0
      %1503 = vmatprep.subr.mxu0 0.0
      %1504 = vmatpush1.xpose.msra.mxu0 %v1471
      %1505 = vmatprep.subr.mxu0 0.0
      %1506 = vmatpush2.xpose.msra.mxu0 0.0
      %1507 = vmatprep.subr.mxu0 0.0
      %1508 = vmatpush2.xpose.msra.mxu0 0.0
      %1509 = vmatprep.subr.mxu0 0.0
      %1510 = vmatpush2.xpose.msra.mxu0 0.0
      %1511 = vmatprep.subr.mxu0 0.0
      %1512 = vmatpush2.xpose.msra.mxu0 0.0
      %1513 = vmatprep.subr.mxu0 0.0
      %1514 = vmatpush2.xpose.msra.mxu0 0.0
      %1515 = vmatprep.subr.mxu0 0.0
      %1516 = vmatpush2.xpose.msra.mxu0 0.0
      %1517 = vmatprep.subr.mxu0 0.0
      %1518 = vmatpush2.xpose.msra.mxu0 0.0
      %1519 = vmatprep.subr.mxu0 0.0
      %1520 = vmatpush2.xpose.msra.mxu0 0.0
      %1521 = vmatprep.subr.mxu0 0.0
      %1522 = vmatpush2.xpose.msra.mxu0 0.0
      %1523 = vmatprep.subr.mxu0 0.0
      %1524 = vmatpush2.xpose.msra.mxu0 0.0
      %1525 = vmatprep.subr.mxu0 0.0
      %1526 = vmatpush2.xpose.msra.mxu0 0.0
      %1527 = vmatprep.subr.mxu0 0.0
      %1528 = vmatpush2.xpose.msra.mxu0 0.0
      %1529 = vmatprep.subr.mxu0 0.0
      %1530 = vmatpush2.xpose.msra.mxu0 0.0
      %1531 = vmatprep.subr.mxu0 0.0
      %1532 = vmatpush2.xpose.msra.mxu0 0.0
      %1533 = vmatprep.subr.mxu0 0.0
      %1534 = vmatpush2.xpose.msra.mxu0 0.0
      %1535 = vmatprep.subr.mxu0 0.0
      %1536 = vmatpush2.xpose.msra.mxu0 0.0
      %1537 = vmatprep.mubr.f32.mxu0 0.0
      %1538 = vmatmul.mubr.f32.gmra.mxu0 %v1469
      %v1539 = vpop.f32.mrf.mxu0
      %v1540 = vadd.f32 0.0, %v1539
      %v1541 = vpop.f32.mrf.mxu0
      %1542 = vdwg.mxu0
      %v1551 = vcombine.low %v865, %v939
      %v1552 = vcombine.low %v1013, %v1087
      %v1554 = vunpack.c.l.s4 1983009808
      %v1555 = vunpack.c.0.s8 %v1554
      %v1556 = vlaneseq
      %v1557 = vshrl.u32 %v1556, 7
      %v1558 = vsub.s32 %v1555, %v1557
      %v1559 = vrot.slane %v1551, %v1558
      %v1561 = vunpack.c.l.s4 1983009808
      %v1562 = vunpack.c.0.s8 %v1561
      %v1563 = vlaneseq
      %v1564 = vshrl.u32 %v1563, 7
      %v1565 = vsub.s32 %v1562, %v1564
      %v1566 = vrot.slane %v1552, %v1565
      %v1567 = vcombine.low %v1559, %v1566
      %v1568 = vcombine.low %v1161, %v1235
      %v1569 = vcombine.low %v1309, %v1383
      %v1571 = vunpack.c.l.s4 1983009808
      %v1572 = vunpack.c.0.s8 %v1571
      %v1573 = vlaneseq
      %v1574 = vshrl.u32 %v1573, 7
      %v1575 = vsub.s32 %v1572, %v1574
      %v1576 = vrot.slane %v1568, %v1575
      %v1578 = vunpack.c.l.s4 1983009808
      %v1579 = vunpack.c.0.s8 %v1578
      %v1580 = vlaneseq
      %v1581 = vshrl.u32 %v1580, 7
      %v1582 = vsub.s32 %v1579, %v1581
      %v1583 = vrot.slane %v1569, %v1582
      %v1584 = vcombine.low %v1576, %v1583
      %1589 = vrot.lane.b32.xlu0 %v1462, 2
      %v1590 = vpop.permute.xlu0 %1589
      %1591 = vrot.lane.b32.xlu0 %v1540, 2
      %v1592 = vpop.permute.xlu0 %1591
      %vm1595 = vcmask 15360
      %v1596 = vsel %vm1595, %v1567, %v1590
      %v1597 = vsel %vm1595, %v1584, %v1592
      %vm1598 = vcmask 64512
      %v1599 = vsel %vm1598, %v1596, -inf
      %1600 = vmax.xlane.f32.xlu0 %v1599
      %v1601 = vpop.xlane.xlu0 %1600
      %v1602 = vsel %vm1598, %v1597, -inf
      %1603 = vmax.xlane.f32.xlu0 %v1602
      %v1604 = vpop.xlane.xlu0 %1603
      %v1605 = vsub.f32 %v1596, %v1601
      %v1606 = vsub.f32 %v1597, %v1604
      %v1607 = vmul.f32 %v1605, 1.442695
      %v1608 = vpow.pop %v1607
      %v1609 = vmul.f32 %v1606, 1.442695
      %v1610 = vpow.pop %v1609
      %v1611 = vsel %vm1598, %v1608, 0.0
      %1612 = vadd.xlane.f32.xlu0 %v1611
      %v1613 = vpop.xlane.xlu0 %1612
      %v1614 = vsel %vm1598, %v1610, 0.0
      %1615 = vadd.xlane.f32.xlu0 %v1614
      %v1616 = vpop.xlane.xlu0 %1615
      %v1617 = vrcp.pop %v1613
      %v1618 = vmul.f32 %v1608, %v1617
      %v1619 = vrcp.pop %v1616
      %v1620 = vmul.f32 %v1610, %v1619
      %v1622 = vsel %vm793, %v685, 0
      %v1625 = vsel %vm793, %v687, 0
      %1627 = vmatprep.subr.mxu0 0.0
      %1628 = vmatpush1.xpose.msra.mxu0 0.0
      %1629 = vmatprep.subr.mxu0 0.0
      %1630 = vmatpush1.xpose.msra.mxu0 0.0
      %1631 = vmatprep.subr.mxu0 0.0
      %1632 = vmatpush1.xpose.msra.mxu0 0.0
      %1633 = vmatprep.subr.mxu0 0.0
      %1634 = vmatpush1.xpose.msra.mxu0 0.0
      %1635 = vmatprep.subr.mxu0 0.0
      %1636 = vmatpush1.xpose.msra.mxu0 0.0
      %1637 = vmatprep.subr.mxu0 0.0
      %1638 = vmatpush1.xpose.msra.mxu0 0.0
      %1639 = vmatprep.subr.mxu0 0.0
      %1640 = vmatpush1.xpose.msra.mxu0 0.0
      %1641 = vmatprep.subr.mxu0 0.0
      %1642 = vmatpush1.xpose.msra.mxu0 0.0
      %1643 = vmatprep.subr.mxu0 0.0
      %1644 = vmatpush1.xpose.msra.mxu0 0.0
      %1645 = vmatprep.subr.mxu0 0.0
      %1646 = vmatpush1.xpose.msra.mxu0 0.0
      %1647 = vmatprep.subr.mxu0 0.0
      %1648 = vmatpush1.xpose.msra.mxu0 0.0
      %1649 = vmatprep.subr.mxu0 0.0
      %1650 = vmatpush1.xpose.msra.mxu0 0.0
      %1651 = vmatprep.subr.mxu0 0.0
      %1652 = vmatpush1.xpose.msra.mxu0 0.0
      %1653 = vmatprep.subr.mxu0 0.0
      %1654 = vmatpush1.xpose.msra.mxu0 0.0
      %1655 = vmatprep.subr.mxu0 0.0
      %1656 = vmatpush1.xpose.msra.mxu0 0.0
      %1657 = vmatprep.subr.mxu0 0.0
      %1658 = vmatpush1.xpose.msra.mxu0 %v1625
      %1659 = vmatprep.subr.mxu0 0.0
      %1660 = vmatpush2.xpose.msra.mxu0 0.0
      %1661 = vmatprep.subr.mxu0 0.0
      %1662 = vmatpush2.xpose.msra.mxu0 0.0
      %1663 = vmatprep.subr.mxu0 0.0
      %1664 = vmatpush2.xpose.msra.mxu0 0.0
      %1665 = vmatprep.subr.mxu0 0.0
      %1666 = vmatpush2.xpose.msra.mxu0 0.0
      %1667 = vmatprep.subr.mxu0 0.0
      %1668 = vmatpush2.xpose.msra.mxu0 0.0
      %1669 = vmatprep.subr.mxu0 0.0
      %1670 = vmatpush2.xpose.msra.mxu0 0.0
      %1671 = vmatprep.subr.mxu0 0.0
      %1672 = vmatpush2.xpose.msra.mxu0 0.0
      %1673 = vmatprep.subr.mxu0 0.0
      %1674 = vmatpush2.xpose.msra.mxu0 0.0
      %1675 = vmatprep.subr.mxu0 0.0
      %1676 = vmatpush2.xpose.msra.mxu0 0.0
      %1677 = vmatprep.subr.mxu0 0.0
      %1678 = vmatpush2.xpose.msra.mxu0 0.0
      %1679 = vmatprep.subr.mxu0 0.0
      %1680 = vmatpush2.xpose.msra.mxu0 0.0
      %1681 = vmatprep.subr.mxu0 0.0
      %1682 = vmatpush2.xpose.msra.mxu0 0.0
      %1683 = vmatprep.subr.mxu0 0.0
      %1684 = vmatpush2.xpose.msra.mxu0 0.0
      %1685 = vmatprep.subr.mxu0 0.0
      %1686 = vmatpush2.xpose.msra.mxu0 0.0
      %1687 = vmatprep.subr.mxu0 0.0
      %1688 = vmatpush2.xpose.msra.mxu0 0.0
      %1689 = vmatprep.subr.mxu0 0.0
      %1690 = vmatpush2.xpose.msra.mxu0 0.0
      %1691 = vmatprep.mubr.f32.mxu0 0.0
      %1692 = vmatmul.mubr.f32.gmra.mxu0 %v1622
      %v1693 = vpop.f32.mrf.mxu0
      %v1694 = vadd.f32 0.0, %v1693
      %v1695 = vpop.f32.mrf.mxu0
      %1696 = vdwg.mxu0
      %v1698 = vsel %vm793, %v686, 0
      %v1701 = vsel %vm793, %v688, 0
      %1703 = vmatprep.subr.mxu0 0.0
      %1704 = vmatpush1.xpose.msra.mxu0 0.0
      %1705 = vmatprep.subr.mxu0 0.0
      %1706 = vmatpush1.xpose.msra.mxu0 0.0
      %1707 = vmatprep.subr.mxu0 0.0
      %1708 = vmatpush1.xpose.msra.mxu0 0.0
      %1709 = vmatprep.subr.mxu0 0.0
      %1710 = vmatpush1.xpose.msra.mxu0 0.0
      %1711 = vmatprep.subr.mxu0 0.0
      %1712 = vmatpush1.xpose.msra.mxu0 0.0
      %1713 = vmatprep.subr.mxu0 0.0
      %1714 = vmatpush1.xpose.msra.mxu0 0.0
      %1715 = vmatprep.subr.mxu0 0.0
      %1716 = vmatpush1.xpose.msra.mxu0 0.0
      %1717 = vmatprep.subr.mxu0 0.0
      %1718 = vmatpush1.xpose.msra.mxu0 0.0
      %1719 = vmatprep.subr.mxu0 0.0
      %1720 = vmatpush1.xpose.msra.mxu0 0.0
      %1721 = vmatprep.subr.mxu0 0.0
      %1722 = vmatpush1.xpose.msra.mxu0 0.0
      %1723 = vmatprep.subr.mxu0 0.0
      %1724 = vmatpush1.xpose.msra.mxu0 0.0
      %1725 = vmatprep.subr.mxu0 0.0
      %1726 = vmatpush1.xpose.msra.mxu0 0.0
      %1727 = vmatprep.subr.mxu0 0.0
      %1728 = vmatpush1.xpose.msra.mxu0 0.0
      %1729 = vmatprep.subr.mxu0 0.0
      %1730 = vmatpush1.xpose.msra.mxu0 0.0
      %1731 = vmatprep.subr.mxu0 0.0
      %1732 = vmatpush1.xpose.msra.mxu0 0.0
      %1733 = vmatprep.subr.mxu0 0.0
      %1734 = vmatpush1.xpose.msra.mxu0 %v1701
      %1735 = vmatprep.subr.mxu0 0.0
      %1736 = vmatpush2.xpose.msra.mxu0 0.0
      %1737 = vmatprep.subr.mxu0 0.0
      %1738 = vmatpush2.xpose.msra.mxu0 0.0
      %1739 = vmatprep.subr.mxu0 0.0
      %1740 = vmatpush2.xpose.msra.mxu0 0.0
      %1741 = vmatprep.subr.mxu0 0.0
      %1742 = vmatpush2.xpose.msra.mxu0 0.0
      %1743 = vmatprep.subr.mxu0 0.0
      %1744 = vmatpush2.xpose.msra.mxu0 0.0
      %1745 = vmatprep.subr.mxu0 0.0
      %1746 = vmatpush2.xpose.msra.mxu0 0.0
      %1747 = vmatprep.subr.mxu0 0.0
      %1748 = vmatpush2.xpose.msra.mxu0 0.0
      %1749 = vmatprep.subr.mxu0 0.0
      %1750 = vmatpush2.xpose.msra.mxu0 0.0
      %1751 = vmatprep.subr.mxu0 0.0
      %1752 = vmatpush2.xpose.msra.mxu0 0.0
      %1753 = vmatprep.subr.mxu0 0.0
      %1754 = vmatpush2.xpose.msra.mxu0 0.0
      %1755 = vmatprep.subr.mxu0 0.0
      %1756 = vmatpush2.xpose.msra.mxu0 0.0
      %1757 = vmatprep.subr.mxu0 0.0
      %1758 = vmatpush2.xpose.msra.mxu0 0.0
      %1759 = vmatprep.subr.mxu0 0.0
      %1760 = vmatpush2.xpose.msra.mxu0 0.0
      %1761 = vmatprep.subr.mxu0 0.0
      %1762 = vmatpush2.xpose.msra.mxu0 0.0
      %1763 = vmatprep.subr.mxu0 0.0
      %1764 = vmatpush2.xpose.msra.mxu0 0.0
      %1765 = vmatprep.subr.mxu0 0.0
      %1766 = vmatpush2.xpose.msra.mxu0 0.0
      %1767 = vmatprep.mubr.f32.mxu0 0.0
      %1768 = vmatmul.mubr.f32.gmra.mxu0 %v1698
      %v1769 = vpop.f32.mrf.mxu0
      %v1770 = vadd.f32 0.0, %v1769
      %v1771 = vpop.f32.mrf.mxu0
      %1772 = vdwg.mxu0
      %v1773 = vsel %vm1598, %v1694, -inf
      %1774 = vmax.xlane.f32.xlu0 %v1773
      %v1775 = vpop.xlane.xlu0 %1774
      %v1776 = vsel %vm1598, %v1770, -inf
      %1777 = vmax.xlane.f32.xlu0 %v1776
      %v1778 = vpop.xlane.xlu0 %1777
      %v1779 = vsub.f32 %v1694, %v1775
      %v1780 = vsub.f32 %v1770, %v1778
      %v1781 = vmul.f32 %v1779, 1.442695
      %v1782 = vpow.pop %v1781
      %v1783 = vmul.f32 %v1780, 1.442695
      %v1784 = vpow.pop %v1783
      %v1785 = vsel %vm1598, %v1782, 0.0
      %1786 = vadd.xlane.f32.xlu0 %v1785
      %v1787 = vpop.xlane.xlu0 %1786
      %v1788 = vsel %vm1598, %v1784, 0.0
      %1789 = vadd.xlane.f32.xlu0 %v1788
      %v1790 = vpop.xlane.xlu0 %1789
      %v1791 = vrcp.pop %v1787
      %v1792 = vmul.f32 %v1782, %v1791
      %v1793 = vrcp.pop %v1790
      %v1794 = vmul.f32 %v1784, %v1793
      %v1796 = vunpack.c.l.s4 1983009808
      %v1797 = vunpack.c.0.s8 %v1796
      %v1798 = vlaneseq
      %v1799 = vshrl.u32 %v1798, 7
      %v1800 = vsub.s32 %v1797, %v1799
      %v1801 = vrot.slane %v708, %v1800
      %1802 = vrot.lane.b32.xlu0 %v1801, 96
      %v1803 = vpop.permute.xlu0 %1802
      %v1805 = vunpack.c.l.s4 1983009808
      %v1806 = vunpack.c.0.s8 %v1805
      %v1807 = vlaneseq
      %v1808 = vshrl.u32 %v1807, 7
      %v1809 = vsub.s32 %v1806, %v1808
      %v1810 = vrot.slane %v760, %v1809
      %1811 = vrot.lane.b32.xlu0 %v1810, 96
      %v1812 = vpop.permute.xlu0 %1811
      %v1813 = vsel %vm793, %v1803, 0
      %v1815 = vsel %vm793, %v1812, 0
      %1817 = vmatprep.subr.mxu0 0.0
      %1818 = vmatpush1.xpose.msra.mxu0 0.0
      %1819 = vmatprep.subr.mxu0 0.0
      %1820 = vmatpush1.xpose.msra.mxu0 0.0
      %1821 = vmatprep.subr.mxu0 0.0
      %1822 = vmatpush1.xpose.msra.mxu0 0.0
      %1823 = vmatprep.subr.mxu0 0.0
      %1824 = vmatpush1.xpose.msra.mxu0 0.0
      %1825 = vmatprep.subr.mxu0 0.0
      %1826 = vmatpush1.xpose.msra.mxu0 0.0
      %1827 = vmatprep.subr.mxu0 0.0
      %1828 = vmatpush1.xpose.msra.mxu0 0.0
      %1829 = vmatprep.subr.mxu0 0.0
      %1830 = vmatpush1.xpose.msra.mxu0 0.0
      %1831 = vmatprep.subr.mxu0 0.0
      %1832 = vmatpush1.xpose.msra.mxu0 0.0
      %1833 = vmatprep.subr.mxu0 0.0
      %1834 = vmatpush1.xpose.msra.mxu0 0.0
      %1835 = vmatprep.subr.mxu0 0.0
      %1836 = vmatpush1.xpose.msra.mxu0 0.0
      %1837 = vmatprep.subr.mxu0 0.0
      %1838 = vmatpush1.xpose.msra.mxu0 0.0
      %1839 = vmatprep.subr.mxu0 0.0
      %1840 = vmatpush1.xpose.msra.mxu0 0.0
      %1841 = vmatprep.subr.mxu0 0.0
      %1842 = vmatpush1.xpose.msra.mxu0 0.0
      %1843 = vmatprep.subr.mxu0 0.0
      %1844 = vmatpush1.xpose.msra.mxu0 0.0
      %1845 = vmatprep.subr.mxu0 0.0
      %1846 = vmatpush1.xpose.msra.mxu0 0.0
      %1847 = vmatprep.subr.mxu0 0.0
      %1848 = vmatpush1.xpose.msra.mxu0 %v1815
      %1849 = vmatprep.subr.mxu0 0.0
      %1850 = vmatpush2.xpose.msra.mxu0 0.0
      %1851 = vmatprep.subr.mxu0 0.0
      %1852 = vmatpush2.xpose.msra.mxu0 0.0
      %1853 = vmatprep.subr.mxu0 0.0
      %1854 = vmatpush2.xpose.msra.mxu0 0.0
      %1855 = vmatprep.subr.mxu0 0.0
      %1856 = vmatpush2.xpose.msra.mxu0 0.0
      %1857 = vmatprep.subr.mxu0 0.0
      %1858 = vmatpush2.xpose.msra.mxu0 0.0
      %1859 = vmatprep.subr.mxu0 0.0
      %1860 = vmatpush2.xpose.msra.mxu0 0.0
      %1861 = vmatprep.subr.mxu0 0.0
      %1862 = vmatpush2.xpose.msra.mxu0 0.0
      %1863 = vmatprep.subr.mxu0 0.0
      %1864 = vmatpush2.xpose.msra.mxu0 0.0
      %1865 = vmatprep.subr.mxu0 0.0
      %1866 = vmatpush2.xpose.msra.mxu0 0.0
      %1867 = vmatprep.subr.mxu0 0.0
      %1868 = vmatpush2.xpose.msra.mxu0 0.0
      %1869 = vmatprep.subr.mxu0 0.0
      %1870 = vmatpush2.xpose.msra.mxu0 0.0
      %1871 = vmatprep.subr.mxu0 0.0
      %1872 = vmatpush2.xpose.msra.mxu0 0.0
      %1873 = vmatprep.subr.mxu0 0.0
      %1874 = vmatpush2.xpose.msra.mxu0 0.0
      %1875 = vmatprep.subr.mxu0 0.0
      %1876 = vmatpush2.xpose.msra.mxu0 0.0
      %1877 = vmatprep.subr.mxu0 0.0
      %1878 = vmatpush2.xpose.msra.mxu0 0.0
      %1879 = vmatprep.subr.mxu0 0.0
      %1880 = vmatpush2.xpose.msra.mxu0 0.0
      %1881 = vmatprep.mubr.f32.mxu0 0.0
      %1882 = vmatmul.mubr.f32.gmra.mxu0 %v1813
      %v1883 = vpop.f32.mrf.mxu0
      %v1884 = vadd.f32 0.0, %v1883
      %v1885 = vpop.f32.mrf.mxu0
      %1886 = vdwg.mxu0
      %v1888 = vunpack.c.l.s4 1983009808
      %v1889 = vunpack.c.0.s8 %v1888
      %v1890 = vlaneseq
      %v1891 = vshrl.u32 %v1890, 7
      %v1892 = vsub.s32 %v1889, %v1891
      %v1893 = vrot.slane %v707, %v1892
      %1894 = vrot.lane.b32.xlu0 %v1893, 96
      %v1895 = vpop.permute.xlu0 %1894
      %v1897 = vunpack.c.l.s4 1983009808
      %v1898 = vunpack.c.0.s8 %v1897
      %v1899 = vlaneseq
      %v1900 = vshrl.u32 %v1899, 7
      %v1901 = vsub.s32 %v1898, %v1900
      %v1902 = vrot.slane %v759, %v1901
      %1903 = vrot.lane.b32.xlu0 %v1902, 96
      %v1904 = vpop.permute.xlu0 %1903
      %v1905 = vsel %vm793, %v1895, 0
      %v1907 = vsel %vm793, %v1904, 0
      %1909 = vmatprep.subr.mxu0 0.0
      %1910 = vmatpush1.xpose.msra.mxu0 0.0
      %1911 = vmatprep.subr.mxu0 0.0
      %1912 = vmatpush1.xpose.msra.mxu0 0.0
      %1913 = vmatprep.subr.mxu0 0.0
      %1914 = vmatpush1.xpose.msra.mxu0 0.0
      %1915 = vmatprep.subr.mxu0 0.0
      %1916 = vmatpush1.xpose.msra.mxu0 0.0
      %1917 = vmatprep.subr.mxu0 0.0
      %1918 = vmatpush1.xpose.msra.mxu0 0.0
      %1919 = vmatprep.subr.mxu0 0.0
      %1920 = vmatpush1.xpose.msra.mxu0 0.0
      %1921 = vmatprep.subr.mxu0 0.0
      %1922 = vmatpush1.xpose.msra.mxu0 0.0
      %1923 = vmatprep.subr.mxu0 0.0
      %1924 = vmatpush1.xpose.msra.mxu0 0.0
      %1925 = vmatprep.subr.mxu0 0.0
      %1926 = vmatpush1.xpose.msra.mxu0 0.0
      %1927 = vmatprep.subr.mxu0 0.0
      %1928 = vmatpush1.xpose.msra.mxu0 0.0
      %1929 = vmatprep.subr.mxu0 0.0
      %1930 = vmatpush1.xpose.msra.mxu0 0.0
      %1931 = vmatprep.subr.mxu0 0.0
      %1932 = vmatpush1.xpose.msra.mxu0 0.0
      %1933 = vmatprep.subr.mxu0 0.0
      %1934 = vmatpush1.xpose.msra.mxu0 0.0
      %1935 = vmatprep.subr.mxu0 0.0
      %1936 = vmatpush1.xpose.msra.mxu0 0.0
      %1937 = vmatprep.subr.mxu0 0.0
      %1938 = vmatpush1.xpose.msra.mxu0 0.0
      %1939 = vmatprep.subr.mxu0 0.0
      %1940 = vmatpush1.xpose.msra.mxu0 %v1907
      %1941 = vmatprep.subr.mxu0 0.0
      %1942 = vmatpush2.xpose.msra.mxu0 0.0
      %1943 = vmatprep.subr.mxu0 0.0
      %1944 = vmatpush2.xpose.msra.mxu0 0.0
      %1945 = vmatprep.subr.mxu0 0.0
      %1946 = vmatpush2.xpose.msra.mxu0 0.0
      %1947 = vmatprep.subr.mxu0 0.0
      %1948 = vmatpush2.xpose.msra.mxu0 0.0
      %1949 = vmatprep.subr.mxu0 0.0
      %1950 = vmatpush2.xpose.msra.mxu0 0.0
      %1951 = vmatprep.subr.mxu0 0.0
      %1952 = vmatpush2.xpose.msra.mxu0 0.0
      %1953 = vmatprep.subr.mxu0 0.0
      %1954 = vmatpush2.xpose.msra.mxu0 0.0
      %1955 = vmatprep.subr.mxu0 0.0
      %1956 = vmatpush2.xpose.msra.mxu0 0.0
      %1957 = vmatprep.subr.mxu0 0.0
      %1958 = vmatpush2.xpose.msra.mxu0 0.0
      %1959 = vmatprep.subr.mxu0 0.0
      %1960 = vmatpush2.xpose.msra.mxu0 0.0
      %1961 = vmatprep.subr.mxu0 0.0
      %1962 = vmatpush2.xpose.msra.mxu0 0.0
      %1963 = vmatprep.subr.mxu0 0.0
      %1964 = vmatpush2.xpose.msra.mxu0 0.0
      %1965 = vmatprep.subr.mxu0 0.0
      %1966 = vmatpush2.xpose.msra.mxu0 0.0
      %1967 = vmatprep.subr.mxu0 0.0
      %1968 = vmatpush2.xpose.msra.mxu0 0.0
      %1969 = vmatprep.subr.mxu0 0.0
      %1970 = vmatpush2.xpose.msra.mxu0 0.0
      %1971 = vmatprep.subr.mxu0 0.0
      %1972 = vmatpush2.xpose.msra.mxu0 0.0
      %1973 = vmatprep.mubr.f32.mxu0 0.0
      %1974 = vmatmul.mubr.f32.gmra.mxu0 %v1905
      %v1975 = vpop.f32.mrf.mxu0
      %v1976 = vadd.f32 0.0, %v1975
      %v1977 = vpop.f32.mrf.mxu0
      %1978 = vdwg.mxu0
      %v1980 = vunpack.c.l.s4 1983009808
      %v1981 = vunpack.c.0.s8 %v1980
      %v1982 = vlaneseq
      %v1983 = vshrl.u32 %v1982, 7
      %v1984 = vsub.s32 %v1981, %v1983
      %v1985 = vrot.slane %v709, %v1984
      %1986 = vrot.lane.b32.xlu0 %v1985, 96
      %v1987 = vpop.permute.xlu0 %1986
      %v1989 = vunpack.c.l.s4 1983009808
      %v1990 = vunpack.c.0.s8 %v1989
      %v1991 = vlaneseq
      %v1992 = vshrl.u32 %v1991, 7
      %v1993 = vsub.s32 %v1990, %v1992
      %v1994 = vrot.slane %v761, %v1993
      %1995 = vrot.lane.b32.xlu0 %v1994, 96
      %v1996 = vpop.permute.xlu0 %1995
      %v1997 = vsel %vm793, %v1987, 0
      %v1999 = vsel %vm793, %v1996, 0
      %2001 = vmatprep.subr.mxu0 0.0
      %2002 = vmatpush1.xpose.msra.mxu0 0.0
      %2003 = vmatprep.subr.mxu0 0.0
      %2004 = vmatpush1.xpose.msra.mxu0 0.0
      %2005 = vmatprep.subr.mxu0 0.0
      %2006 = vmatpush1.xpose.msra.mxu0 0.0
      %2007 = vmatprep.subr.mxu0 0.0
      %2008 = vmatpush1.xpose.msra.mxu0 0.0
      %2009 = vmatprep.subr.mxu0 0.0
      %2010 = vmatpush1.xpose.msra.mxu0 0.0
      %2011 = vmatprep.subr.mxu0 0.0
      %2012 = vmatpush1.xpose.msra.mxu0 0.0
      %2013 = vmatprep.subr.mxu0 0.0
      %2014 = vmatpush1.xpose.msra.mxu0 0.0
      %2015 = vmatprep.subr.mxu0 0.0
      %2016 = vmatpush1.xpose.msra.mxu0 0.0
      %2017 = vmatprep.subr.mxu0 0.0
      %2018 = vmatpush1.xpose.msra.mxu0 0.0
      %2019 = vmatprep.subr.mxu0 0.0
      %2020 = vmatpush1.xpose.msra.mxu0 0.0
      %2021 = vmatprep.subr.mxu0 0.0
      %2022 = vmatpush1.xpose.msra.mxu0 0.0
      %2023 = vmatprep.subr.mxu0 0.0
      %2024 = vmatpush1.xpose.msra.mxu0 0.0
      %2025 = vmatprep.subr.mxu0 0.0
      %2026 = vmatpush1.xpose.msra.mxu0 0.0
      %2027 = vmatprep.subr.mxu0 0.0
      %2028 = vmatpush1.xpose.msra.mxu0 0.0
      %2029 = vmatprep.subr.mxu0 0.0
      %2030 = vmatpush1.xpose.msra.mxu0 0.0
      %2031 = vmatprep.subr.mxu0 0.0
      %2032 = vmatpush1.xpose.msra.mxu0 %v1999
      %2033 = vmatprep.subr.mxu0 0.0
      %2034 = vmatpush2.xpose.msra.mxu0 0.0
      %2035 = vmatprep.subr.mxu0 0.0
      %2036 = vmatpush2.xpose.msra.mxu0 0.0
      %2037 = vmatprep.subr.mxu0 0.0
      %2038 = vmatpush2.xpose.msra.mxu0 0.0
      %2039 = vmatprep.subr.mxu0 0.0
      %2040 = vmatpush2.xpose.msra.mxu0 0.0
      %2041 = vmatprep.subr.mxu0 0.0
      %2042 = vmatpush2.xpose.msra.mxu0 0.0
      %2043 = vmatprep.subr.mxu0 0.0
      %2044 = vmatpush2.xpose.msra.mxu0 0.0
      %2045 = vmatprep.subr.mxu0 0.0
      %2046 = vmatpush2.xpose.msra.mxu0 0.0
      %2047 = vmatprep.subr.mxu0 0.0
      %2048 = vmatpush2.xpose.msra.mxu0 0.0
      %2049 = vmatprep.subr.mxu0 0.0
      %2050 = vmatpush2.xpose.msra.mxu0 0.0
      %2051 = vmatprep.subr.mxu0 0.0
      %2052 = vmatpush2.xpose.msra.mxu0 0.0
      %2053 = vmatprep.subr.mxu0 0.0
      %2054 = vmatpush2.xpose.msra.mxu0 0.0
      %2055 = vmatprep.subr.mxu0 0.0
      %2056 = vmatpush2.xpose.msra.mxu0 0.0
      %2057 = vmatprep.subr.mxu0 0.0
      %2058 = vmatpush2.xpose.msra.mxu0 0.0
      %2059 = vmatprep.subr.mxu0 0.0
      %2060 = vmatpush2.xpose.msra.mxu0 0.0
      %2061 = vmatprep.subr.mxu0 0.0
      %2062 = vmatpush2.xpose.msra.mxu0 0.0
      %2063 = vmatprep.subr.mxu0 0.0
      %2064 = vmatpush2.xpose.msra.mxu0 0.0
      %2065 = vmatprep.mubr.f32.mxu0 0.0
      %2066 = vmatmul.mubr.f32.gmra.mxu0 %v1997
      %v2067 = vpop.f32.mrf.mxu0
      %v2068 = vadd.f32 0.0, %v2067
      %v2069 = vpop.f32.mrf.mxu0
      %2070 = vdwg.mxu0
      %v2072 = vunpack.c.l.s4 1983009808
      %v2073 = vunpack.c.0.s8 %v2072
      %v2074 = vlaneseq
      %v2075 = vshrl.u32 %v2074, 7
      %v2076 = vsub.s32 %v2073, %v2075
      %v2077 = vrot.slane %v716, %v2076
      %2078 = vrot.lane.b32.xlu0 %v2077, 96
      %v2079 = vpop.permute.xlu0 %2078
      %v2081 = vunpack.c.l.s4 1983009808
      %v2082 = vunpack.c.0.s8 %v2081
      %v2083 = vlaneseq
      %v2084 = vshrl.u32 %v2083, 7
      %v2085 = vsub.s32 %v2082, %v2084
      %v2086 = vrot.slane %v768, %v2085
      %2087 = vrot.lane.b32.xlu0 %v2086, 96
      %v2088 = vpop.permute.xlu0 %2087
      %v2089 = vsel %vm793, %v2079, 0
      %v2091 = vsel %vm793, %v2088, 0
      %2093 = vmatprep.subr.mxu0 0.0
      %2094 = vmatpush1.xpose.msra.mxu0 0.0
      %2095 = vmatprep.subr.mxu0 0.0
      %2096 = vmatpush1.xpose.msra.mxu0 0.0
      %2097 = vmatprep.subr.mxu0 0.0
      %2098 = vmatpush1.xpose.msra.mxu0 0.0
      %2099 = vmatprep.subr.mxu0 0.0
      %2100 = vmatpush1.xpose.msra.mxu0 0.0
      %2101 = vmatprep.subr.mxu0 0.0
      %2102 = vmatpush1.xpose.msra.mxu0 0.0
      %2103 = vmatprep.subr.mxu0 0.0
      %2104 = vmatpush1.xpose.msra.mxu0 0.0
      %2105 = vmatprep.subr.mxu0 0.0
      %2106 = vmatpush1.xpose.msra.mxu0 0.0
      %2107 = vmatprep.subr.mxu0 0.0
      %2108 = vmatpush1.xpose.msra.mxu0 0.0
      %2109 = vmatprep.subr.mxu0 0.0
      %2110 = vmatpush1.xpose.msra.mxu0 0.0
      %2111 = vmatprep.subr.mxu0 0.0
      %2112 = vmatpush1.xpose.msra.mxu0 0.0
      %2113 = vmatprep.subr.mxu0 0.0
      %2114 = vmatpush1.xpose.msra.mxu0 0.0
      %2115 = vmatprep.subr.mxu0 0.0
      %2116 = vmatpush1.xpose.msra.mxu0 0.0
      %2117 = vmatprep.subr.mxu0 0.0
      %2118 = vmatpush1.xpose.msra.mxu0 0.0
      %2119 = vmatprep.subr.mxu0 0.0
      %2120 = vmatpush1.xpose.msra.mxu0 0.0
      %2121 = vmatprep.subr.mxu0 0.0
      %2122 = vmatpush1.xpose.msra.mxu0 0.0
      %2123 = vmatprep.subr.mxu0 0.0
      %2124 = vmatpush1.xpose.msra.mxu0 %v2091
      %2125 = vmatprep.subr.mxu0 0.0
      %2126 = vmatpush2.xpose.msra.mxu0 0.0
      %2127 = vmatprep.subr.mxu0 0.0
      %2128 = vmatpush2.xpose.msra.mxu0 0.0
      %2129 = vmatprep.subr.mxu0 0.0
      %2130 = vmatpush2.xpose.msra.mxu0 0.0
      %2131 = vmatprep.subr.mxu0 0.0
      %2132 = vmatpush2.xpose.msra.mxu0 0.0
      %2133 = vmatprep.subr.mxu0 0.0
      %2134 = vmatpush2.xpose.msra.mxu0 0.0
      %2135 = vmatprep.subr.mxu0 0.0
      %2136 = vmatpush2.xpose.msra.mxu0 0.0
      %2137 = vmatprep.subr.mxu0 0.0
      %2138 = vmatpush2.xpose.msra.mxu0 0.0
      %2139 = vmatprep.subr.mxu0 0.0
      %2140 = vmatpush2.xpose.msra.mxu0 0.0
      %2141 = vmatprep.subr.mxu0 0.0
      %2142 = vmatpush2.xpose.msra.mxu0 0.0
      %2143 = vmatprep.subr.mxu0 0.0
      %2144 = vmatpush2.xpose.msra.mxu0 0.0
      %2145 = vmatprep.subr.mxu0 0.0
      %2146 = vmatpush2.xpose.msra.mxu0 0.0
      %2147 = vmatprep.subr.mxu0 0.0
      %2148 = vmatpush2.xpose.msra.mxu0 0.0
      %2149 = vmatprep.subr.mxu0 0.0
      %2150 = vmatpush2.xpose.msra.mxu0 0.0
      %2151 = vmatprep.subr.mxu0 0.0
      %2152 = vmatpush2.xpose.msra.mxu0 0.0
      %2153 = vmatprep.subr.mxu0 0.0
      %2154 = vmatpush2.xpose.msra.mxu0 0.0
      %2155 = vmatprep.subr.mxu0 0.0
      %2156 = vmatpush2.xpose.msra.mxu0 0.0
      %2157 = vmatprep.mubr.f32.mxu0 0.0
      %2158 = vmatmul.mubr.f32.gmra.mxu0 %v2089
      %v2159 = vpop.f32.mrf.mxu0
      %v2160 = vadd.f32 0.0, %v2159
      %v2161 = vpop.f32.mrf.mxu0
      %2162 = vdwg.mxu0
      %v2164 = vunpack.c.l.s4 1983009808
      %v2165 = vunpack.c.0.s8 %v2164
      %v2166 = vlaneseq
      %v2167 = vshrl.u32 %v2166, 7
      %v2168 = vsub.s32 %v2165, %v2167
      %v2169 = vrot.slane %v732, %v2168
      %2170 = vrot.lane.b32.xlu0 %v2169, 96
      %v2171 = vpop.permute.xlu0 %2170
      %v2173 = vunpack.c.l.s4 1983009808
      %v2174 = vunpack.c.0.s8 %v2173
      %v2175 = vlaneseq
      %v2176 = vshrl.u32 %v2175, 7
      %v2177 = vsub.s32 %v2174, %v2176
      %v2178 = vrot.slane %v784, %v2177
      %2179 = vrot.lane.b32.xlu0 %v2178, 96
      %v2180 = vpop.permute.xlu0 %2179
      %v2181 = vsel %vm793, %v2171, 0
      %v2183 = vsel %vm793, %v2180, 0
      %2185 = vmatprep.subr.mxu0 0.0
      %2186 = vmatpush1.xpose.msra.mxu0 0.0
      %2187 = vmatprep.subr.mxu0 0.0
      %2188 = vmatpush1.xpose.msra.mxu0 0.0
      %2189 = vmatprep.subr.mxu0 0.0
      %2190 = vmatpush1.xpose.msra.mxu0 0.0
      %2191 = vmatprep.subr.mxu0 0.0
      %2192 = vmatpush1.xpose.msra.mxu0 0.0
      %2193 = vmatprep.subr.mxu0 0.0
      %2194 = vmatpush1.xpose.msra.mxu0 0.0
      %2195 = vmatprep.subr.mxu0 0.0
      %2196 = vmatpush1.xpose.msra.mxu0 0.0
      %2197 = vmatprep.subr.mxu0 0.0
      %2198 = vmatpush1.xpose.msra.mxu0 0.0
      %2199 = vmatprep.subr.mxu0 0.0
      %2200 = vmatpush1.xpose.msra.mxu0 0.0
      %2201 = vmatprep.subr.mxu0 0.0
      %2202 = vmatpush1.xpose.msra.mxu0 0.0
      %2203 = vmatprep.subr.mxu0 0.0
      %2204 = vmatpush1.xpose.msra.mxu0 0.0
      %2205 = vmatprep.subr.mxu0 0.0
      %2206 = vmatpush1.xpose.msra.mxu0 0.0
      %2207 = vmatprep.subr.mxu0 0.0
      %2208 = vmatpush1.xpose.msra.mxu0 0.0
      %2209 = vmatprep.subr.mxu0 0.0
      %2210 = vmatpush1.xpose.msra.mxu0 0.0
      %2211 = vmatprep.subr.mxu0 0.0
      %2212 = vmatpush1.xpose.msra.mxu0 0.0
      %2213 = vmatprep.subr.mxu0 0.0
      %2214 = vmatpush1.xpose.msra.mxu0 0.0
      %2215 = vmatprep.subr.mxu0 0.0
      %2216 = vmatpush1.xpose.msra.mxu0 %v2183
      %2217 = vmatprep.subr.mxu0 0.0
      %2218 = vmatpush2.xpose.msra.mxu0 0.0
      %2219 = vmatprep.subr.mxu0 0.0
      %2220 = vmatpush2.xpose.msra.mxu0 0.0
      %2221 = vmatprep.subr.mxu0 0.0
      %2222 = vmatpush2.xpose.msra.mxu0 0.0
      %2223 = vmatprep.subr.mxu0 0.0
      %2224 = vmatpush2.xpose.msra.mxu0 0.0
      %2225 = vmatprep.subr.mxu0 0.0
      %2226 = vmatpush2.xpose.msra.mxu0 0.0
      %2227 = vmatprep.subr.mxu0 0.0
      %2228 = vmatpush2.xpose.msra.mxu0 0.0
      %2229 = vmatprep.subr.mxu0 0.0
      %2230 = vmatpush2.xpose.msra.mxu0 0.0
      %2231 = vmatprep.subr.mxu0 0.0
      %2232 = vmatpush2.xpose.msra.mxu0 0.0
      %2233 = vmatprep.subr.mxu0 0.0
      %2234 = vmatpush2.xpose.msra.mxu0 0.0
      %2235 = vmatprep.subr.mxu0 0.0
      %2236 = vmatpush2.xpose.msra.mxu0 0.0
      %2237 = vmatprep.subr.mxu0 0.0
      %2238 = vmatpush2.xpose.msra.mxu0 0.0
      %2239 = vmatprep.subr.mxu0 0.0
      %2240 = vmatpush2.xpose.msra.mxu0 0.0
      %2241 = vmatprep.subr.mxu0 0.0
      %2242 = vmatpush2.xpose.msra.mxu0 0.0
      %2243 = vmatprep.subr.mxu0 0.0
      %2244 = vmatpush2.xpose.msra.mxu0 0.0
      %2245 = vmatprep.subr.mxu0 0.0
      %2246 = vmatpush2.xpose.msra.mxu0 0.0
      %2247 = vmatprep.subr.mxu0 0.0
      %2248 = vmatpush2.xpose.msra.mxu0 0.0
      %2249 = vmatprep.mubr.f32.mxu0 0.0
      %2250 = vmatmul.mubr.f32.gmra.mxu0 %v2181
      %v2251 = vpop.f32.mrf.mxu0
      %v2252 = vadd.f32 0.0, %v2251
      %v2253 = vpop.f32.mrf.mxu0
      %2254 = vdwg.mxu0
      %v2256 = vunpack.c.l.s4 1983009808
      %v2257 = vunpack.c.0.s8 %v2256
      %v2258 = vlaneseq
      %v2259 = vshrl.u32 %v2258, 7
      %v2260 = vsub.s32 %v2257, %v2259
      %v2261 = vrot.slane %v731, %v2260
      %2262 = vrot.lane.b32.xlu0 %v2261, 96
      %v2263 = vpop.permute.xlu0 %2262
      %v2265 = vunpack.c.l.s4 1983009808
      %v2266 = vunpack.c.0.s8 %v2265
      %v2267 = vlaneseq
      %v2268 = vshrl.u32 %v2267, 7
      %v2269 = vsub.s32 %v2266, %v2268
      %v2270 = vrot.slane %v783, %v2269
      %2271 = vrot.lane.b32.xlu0 %v2270, 96
      %v2272 = vpop.permute.xlu0 %2271
      %v2273 = vsel %vm793, %v2263, 0
      %v2275 = vsel %vm793, %v2272, 0
      %2277 = vmatprep.subr.mxu0 0.0
      %2278 = vmatpush1.xpose.msra.mxu0 0.0
      %2279 = vmatprep.subr.mxu0 0.0
      %2280 = vmatpush1.xpose.msra.mxu0 0.0
      %2281 = vmatprep.subr.mxu0 0.0
      %2282 = vmatpush1.xpose.msra.mxu0 0.0
      %2283 = vmatprep.subr.mxu0 0.0
      %2284 = vmatpush1.xpose.msra.mxu0 0.0
      %2285 = vmatprep.subr.mxu0 0.0
      %2286 = vmatpush1.xpose.msra.mxu0 0.0
      %2287 = vmatprep.subr.mxu0 0.0
      %2288 = vmatpush1.xpose.msra.mxu0 0.0
      %2289 = vmatprep.subr.mxu0 0.0
      %2290 = vmatpush1.xpose.msra.mxu0 0.0
      %2291 = vmatprep.subr.mxu0 0.0
      %2292 = vmatpush1.xpose.msra.mxu0 0.0
      %2293 = vmatprep.subr.mxu0 0.0
      %2294 = vmatpush1.xpose.msra.mxu0 0.0
      %2295 = vmatprep.subr.mxu0 0.0
      %2296 = vmatpush1.xpose.msra.mxu0 0.0
      %2297 = vmatprep.subr.mxu0 0.0
      %2298 = vmatpush1.xpose.msra.mxu0 0.0
      %2299 = vmatprep.subr.mxu0 0.0
      %2300 = vmatpush1.xpose.msra.mxu0 0.0
      %2301 = vmatprep.subr.mxu0 0.0
      %2302 = vmatpush1.xpose.msra.mxu0 0.0
      %2303 = vmatprep.subr.mxu0 0.0
      %2304 = vmatpush1.xpose.msra.mxu0 0.0
      %2305 = vmatprep.subr.mxu0 0.0
      %2306 = vmatpush1.xpose.msra.mxu0 0.0
      %2307 = vmatprep.subr.mxu0 0.0
      %2308 = vmatpush1.xpose.msra.mxu0 %v2275
      %2309 = vmatprep.subr.mxu0 0.0
      %2310 = vmatpush2.xpose.msra.mxu0 0.0
      %2311 = vmatprep.subr.mxu0 0.0
      %2312 = vmatpush2.xpose.msra.mxu0 0.0
      %2313 = vmatprep.subr.mxu0 0.0
      %2314 = vmatpush2.xpose.msra.mxu0 0.0
      %2315 = vmatprep.subr.mxu0 0.0
      %2316 = vmatpush2.xpose.msra.mxu0 0.0
      %2317 = vmatprep.subr.mxu0 0.0
      %2318 = vmatpush2.xpose.msra.mxu0 0.0
      %2319 = vmatprep.subr.mxu0 0.0
      %2320 = vmatpush2.xpose.msra.mxu0 0.0
      %2321 = vmatprep.subr.mxu0 0.0
      %2322 = vmatpush2.xpose.msra.mxu0 0.0
      %2323 = vmatprep.subr.mxu0 0.0
      %2324 = vmatpush2.xpose.msra.mxu0 0.0
      %2325 = vmatprep.subr.mxu0 0.0
      %2326 = vmatpush2.xpose.msra.mxu0 0.0
      %2327 = vmatprep.subr.mxu0 0.0
      %2328 = vmatpush2.xpose.msra.mxu0 0.0
      %2329 = vmatprep.subr.mxu0 0.0
      %2330 = vmatpush2.xpose.msra.mxu0 0.0
      %2331 = vmatprep.subr.mxu0 0.0
      %2332 = vmatpush2.xpose.msra.mxu0 0.0
      %2333 = vmatprep.subr.mxu0 0.0
      %2334 = vmatpush2.xpose.msra.mxu0 0.0
      %2335 = vmatprep.subr.mxu0 0.0
      %2336 = vmatpush2.xpose.msra.mxu0 0.0
      %2337 = vmatprep.subr.mxu0 0.0
      %2338 = vmatpush2.xpose.msra.mxu0 0.0
      %2339 = vmatprep.subr.mxu0 0.0
      %2340 = vmatpush2.xpose.msra.mxu0 0.0
      %2341 = vmatprep.mubr.f32.mxu0 0.0
      %2342 = vmatmul.mubr.f32.gmra.mxu0 %v2273
      %v2343 = vpop.f32.mrf.mxu0
      %v2344 = vadd.f32 0.0, %v2343
      %v2345 = vpop.f32.mrf.mxu0
      %2346 = vdwg.mxu0
      %v2348 = vunpack.c.l.s4 1983009808
      %v2349 = vunpack.c.0.s8 %v2348
      %v2350 = vlaneseq
      %v2351 = vshrl.u32 %v2350, 7
      %v2352 = vsub.s32 %v2349, %v2351
      %v2353 = vrot.slane %v733, %v2352
      %2354 = vrot.lane.b32.xlu0 %v2353, 96
      %v2355 = vpop.permute.xlu0 %2354
      %v2357 = vunpack.c.l.s4 1983009808
      %v2358 = vunpack.c.0.s8 %v2357
      %v2359 = vlaneseq
      %v2360 = vshrl.u32 %v2359, 7
      %v2361 = vsub.s32 %v2358, %v2360
      %v2362 = vrot.slane %v785, %v2361
      %2363 = vrot.lane.b32.xlu0 %v2362, 96
      %v2364 = vpop.permute.xlu0 %2363
      %v2365 = vsel %vm793, %v2355, 0
      %v2367 = vsel %vm793, %v2364, 0
      %2369 = vmatprep.subr.mxu0 0.0
      %2370 = vmatpush1.xpose.msra.mxu0 0.0
      %2371 = vmatprep.subr.mxu0 0.0
      %2372 = vmatpush1.xpose.msra.mxu0 0.0
      %2373 = vmatprep.subr.mxu0 0.0
      %2374 = vmatpush1.xpose.msra.mxu0 0.0
      %2375 = vmatprep.subr.mxu0 0.0
      %2376 = vmatpush1.xpose.msra.mxu0 0.0
      %2377 = vmatprep.subr.mxu0 0.0
      %2378 = vmatpush1.xpose.msra.mxu0 0.0
      %2379 = vmatprep.subr.mxu0 0.0
      %2380 = vmatpush1.xpose.msra.mxu0 0.0
      %2381 = vmatprep.subr.mxu0 0.0
      %2382 = vmatpush1.xpose.msra.mxu0 0.0
      %2383 = vmatprep.subr.mxu0 0.0
      %2384 = vmatpush1.xpose.msra.mxu0 0.0
      %2385 = vmatprep.subr.mxu0 0.0
      %2386 = vmatpush1.xpose.msra.mxu0 0.0
      %2387 = vmatprep.subr.mxu0 0.0
      %2388 = vmatpush1.xpose.msra.mxu0 0.0
      %2389 = vmatprep.subr.mxu0 0.0
      %2390 = vmatpush1.xpose.msra.mxu0 0.0
      %2391 = vmatprep.subr.mxu0 0.0
      %2392 = vmatpush1.xpose.msra.mxu0 0.0
      %2393 = vmatprep.subr.mxu0 0.0
      %2394 = vmatpush1.xpose.msra.mxu0 0.0
      %2395 = vmatprep.subr.mxu0 0.0
      %2396 = vmatpush1.xpose.msra.mxu0 0.0
      %2397 = vmatprep.subr.mxu0 0.0
      %2398 = vmatpush1.xpose.msra.mxu0 0.0
      %2399 = vmatprep.subr.mxu0 0.0
      %2400 = vmatpush1.xpose.msra.mxu0 %v2367
      %2401 = vmatprep.subr.mxu0 0.0
      %2402 = vmatpush2.xpose.msra.mxu0 0.0
      %2403 = vmatprep.subr.mxu0 0.0
      %2404 = vmatpush2.xpose.msra.mxu0 0.0
      %2405 = vmatprep.subr.mxu0 0.0
      %2406 = vmatpush2.xpose.msra.mxu0 0.0
      %2407 = vmatprep.subr.mxu0 0.0
      %2408 = vmatpush2.xpose.msra.mxu0 0.0
      %2409 = vmatprep.subr.mxu0 0.0
      %2410 = vmatpush2.xpose.msra.mxu0 0.0
      %2411 = vmatprep.subr.mxu0 0.0
      %2412 = vmatpush2.xpose.msra.mxu0 0.0
      %2413 = vmatprep.subr.mxu0 0.0
      %2414 = vmatpush2.xpose.msra.mxu0 0.0
      %2415 = vmatprep.subr.mxu0 0.0
      %2416 = vmatpush2.xpose.msra.mxu0 0.0
      %2417 = vmatprep.subr.mxu0 0.0
      %2418 = vmatpush2.xpose.msra.mxu0 0.0
      %2419 = vmatprep.subr.mxu0 0.0
      %2420 = vmatpush2.xpose.msra.mxu0 0.0
      %2421 = vmatprep.subr.mxu0 0.0
      %2422 = vmatpush2.xpose.msra.mxu0 0.0
      %2423 = vmatprep.subr.mxu0 0.0
      %2424 = vmatpush2.xpose.msra.mxu0 0.0
      %2425 = vmatprep.subr.mxu0 0.0
      %2426 = vmatpush2.xpose.msra.mxu0 0.0
      %2427 = vmatprep.subr.mxu0 0.0
      %2428 = vmatpush2.xpose.msra.mxu0 0.0
      %2429 = vmatprep.subr.mxu0 0.0
      %2430 = vmatpush2.xpose.msra.mxu0 0.0
      %2431 = vmatprep.subr.mxu0 0.0
      %2432 = vmatpush2.xpose.msra.mxu0 0.0
      %2433 = vmatprep.mubr.f32.mxu0 0.0
      %2434 = vmatmul.mubr.f32.gmra.mxu0 %v2365
      %v2435 = vpop.f32.mrf.mxu0
      %v2436 = vadd.f32 0.0, %v2435
      %v2437 = vpop.f32.mrf.mxu0
      %2438 = vdwg.mxu0
      %v2440 = vunpack.c.l.s4 1983009808
      %v2441 = vunpack.c.0.s8 %v2440
      %v2442 = vlaneseq
      %v2443 = vshrl.u32 %v2442, 7
      %v2444 = vsub.s32 %v2441, %v2443
      %v2445 = vrot.slane %v740, %v2444
      %2446 = vrot.lane.b32.xlu0 %v2445, 96
      %v2447 = vpop.permute.xlu0 %2446
      %v2449 = vunpack.c.l.s4 1983009808
      %v2450 = vunpack.c.0.s8 %v2449
      %v2451 = vlaneseq
      %v2452 = vshrl.u32 %v2451, 7
      %v2453 = vsub.s32 %v2450, %v2452
      %v2454 = vrot.slane %v792, %v2453
      %2455 = vrot.lane.b32.xlu0 %v2454, 96
      %v2456 = vpop.permute.xlu0 %2455
      %v2457 = vsel %vm793, %v2447, 0
      %v2459 = vsel %vm793, %v2456, 0
      %2461 = vmatprep.subr.mxu0 0.0
      %2462 = vmatpush1.xpose.msra.mxu0 0.0
      %2463 = vmatprep.subr.mxu0 0.0
      %2464 = vmatpush1.xpose.msra.mxu0 0.0
      %2465 = vmatprep.subr.mxu0 0.0
      %2466 = vmatpush1.xpose.msra.mxu0 0.0
      %2467 = vmatprep.subr.mxu0 0.0
      %2468 = vmatpush1.xpose.msra.mxu0 0.0
      %2469 = vmatprep.subr.mxu0 0.0
      %2470 = vmatpush1.xpose.msra.mxu0 0.0
      %2471 = vmatprep.subr.mxu0 0.0
      %2472 = vmatpush1.xpose.msra.mxu0 0.0
      %2473 = vmatprep.subr.mxu0 0.0
      %2474 = vmatpush1.xpose.msra.mxu0 0.0
      %2475 = vmatprep.subr.mxu0 0.0
      %2476 = vmatpush1.xpose.msra.mxu0 0.0
      %2477 = vmatprep.subr.mxu0 0.0
      %2478 = vmatpush1.xpose.msra.mxu0 0.0
      %2479 = vmatprep.subr.mxu0 0.0
      %2480 = vmatpush1.xpose.msra.mxu0 0.0
      %2481 = vmatprep.subr.mxu0 0.0
      %2482 = vmatpush1.xpose.msra.mxu0 0.0
      %2483 = vmatprep.subr.mxu0 0.0
      %2484 = vmatpush1.xpose.msra.mxu0 0.0
      %2485 = vmatprep.subr.mxu0 0.0
      %2486 = vmatpush1.xpose.msra.mxu0 0.0
      %2487 = vmatprep.subr.mxu0 0.0
      %2488 = vmatpush1.xpose.msra.mxu0 0.0
      %2489 = vmatprep.subr.mxu0 0.0
      %2490 = vmatpush1.xpose.msra.mxu0 0.0
      %2491 = vmatprep.subr.mxu0 0.0
      %2492 = vmatpush1.xpose.msra.mxu0 %v2459
      %2493 = vmatprep.subr.mxu0 0.0
      %2494 = vmatpush2.xpose.msra.mxu0 0.0
      %2495 = vmatprep.subr.mxu0 0.0
      %2496 = vmatpush2.xpose.msra.mxu0 0.0
      %2497 = vmatprep.subr.mxu0 0.0
      %2498 = vmatpush2.xpose.msra.mxu0 0.0
      %2499 = vmatprep.subr.mxu0 0.0
      %2500 = vmatpush2.xpose.msra.mxu0 0.0
      %2501 = vmatprep.subr.mxu0 0.0
      %2502 = vmatpush2.xpose.msra.mxu0 0.0
      %2503 = vmatprep.subr.mxu0 0.0
      %2504 = vmatpush2.xpose.msra.mxu0 0.0
      %2505 = vmatprep.subr.mxu0 0.0
      %2506 = vmatpush2.xpose.msra.mxu0 0.0
      %2507 = vmatprep.subr.mxu0 0.0
      %2508 = vmatpush2.xpose.msra.mxu0 0.0
      %2509 = vmatprep.subr.mxu0 0.0
      %2510 = vmatpush2.xpose.msra.mxu0 0.0
      %2511 = vmatprep.subr.mxu0 0.0
      %2512 = vmatpush2.xpose.msra.mxu0 0.0
      %2513 = vmatprep.subr.mxu0 0.0
      %2514 = vmatpush2.xpose.msra.mxu0 0.0
      %2515 = vmatprep.subr.mxu0 0.0
      %2516 = vmatpush2.xpose.msra.mxu0 0.0
      %2517 = vmatprep.subr.mxu0 0.0
      %2518 = vmatpush2.xpose.msra.mxu0 0.0
      %2519 = vmatprep.subr.mxu0 0.0
      %2520 = vmatpush2.xpose.msra.mxu0 0.0
      %2521 = vmatprep.subr.mxu0 0.0
      %2522 = vmatpush2.xpose.msra.mxu0 0.0
      %2523 = vmatprep.subr.mxu0 0.0
      %2524 = vmatpush2.xpose.msra.mxu0 0.0
      %2525 = vmatprep.mubr.f32.mxu0 0.0
      %2526 = vmatmul.mubr.f32.gmra.mxu0 %v2457
      %v2527 = vpop.f32.mrf.mxu0
      %v2528 = vadd.f32 0.0, %v2527
      %v2529 = vpop.f32.mrf.mxu0
      %2530 = vdwg.mxu0
      %2531 = vrot.lane.b32.xlu0 %v1389, 96
      %v2532 = vpop.permute.xlu0 %2531
      %2533 = vrot.lane.b32.xlu0 %v1390, 96
      %v2534 = vpop.permute.xlu0 %2533
      %v2535 = vsel %vm793, %v2532, 0
      %v2537 = vsel %vm793, %v2534, 0
      %2539 = vmatprep.subr.mxu0 0.0
      %2540 = vmatpush1.xpose.msra.mxu0 0.0
      %2541 = vmatprep.subr.mxu0 0.0
      %2542 = vmatpush1.xpose.msra.mxu0 0.0
      %2543 = vmatprep.subr.mxu0 0.0
      %2544 = vmatpush1.xpose.msra.mxu0 0.0
      %2545 = vmatprep.subr.mxu0 0.0
      %2546 = vmatpush1.xpose.msra.mxu0 0.0
      %2547 = vmatprep.subr.mxu0 0.0
      %2548 = vmatpush1.xpose.msra.mxu0 0.0
      %2549 = vmatprep.subr.mxu0 0.0
      %2550 = vmatpush1.xpose.msra.mxu0 0.0
      %2551 = vmatprep.subr.mxu0 0.0
      %2552 = vmatpush1.xpose.msra.mxu0 0.0
      %2553 = vmatprep.subr.mxu0 0.0
      %2554 = vmatpush1.xpose.msra.mxu0 0.0
      %2555 = vmatprep.subr.mxu0 0.0
      %2556 = vmatpush1.xpose.msra.mxu0 0.0
      %2557 = vmatprep.subr.mxu0 0.0
      %2558 = vmatpush1.xpose.msra.mxu0 0.0
      %2559 = vmatprep.subr.mxu0 0.0
      %2560 = vmatpush1.xpose.msra.mxu0 0.0
      %2561 = vmatprep.subr.mxu0 0.0
      %2562 = vmatpush1.xpose.msra.mxu0 0.0
      %2563 = vmatprep.subr.mxu0 0.0
      %2564 = vmatpush1.xpose.msra.mxu0 0.0
      %2565 = vmatprep.subr.mxu0 0.0
      %2566 = vmatpush1.xpose.msra.mxu0 0.0
      %2567 = vmatprep.subr.mxu0 0.0
      %2568 = vmatpush1.xpose.msra.mxu0 0.0
      %2569 = vmatprep.subr.mxu0 0.0
      %2570 = vmatpush1.xpose.msra.mxu0 %v2537
      %2571 = vmatprep.subr.mxu0 0.0
      %2572 = vmatpush2.xpose.msra.mxu0 0.0
      %2573 = vmatprep.subr.mxu0 0.0
      %2574 = vmatpush2.xpose.msra.mxu0 0.0
      %2575 = vmatprep.subr.mxu0 0.0
      %2576 = vmatpush2.xpose.msra.mxu0 0.0
      %2577 = vmatprep.subr.mxu0 0.0
      %2578 = vmatpush2.xpose.msra.mxu0 0.0
      %2579 = vmatprep.subr.mxu0 0.0
      %2580 = vmatpush2.xpose.msra.mxu0 0.0
      %2581 = vmatprep.subr.mxu0 0.0
      %2582 = vmatpush2.xpose.msra.mxu0 0.0
      %2583 = vmatprep.subr.mxu0 0.0
      %2584 = vmatpush2.xpose.msra.mxu0 0.0
      %2585 = vmatprep.subr.mxu0 0.0
      %2586 = vmatpush2.xpose.msra.mxu0 0.0
      %2587 = vmatprep.subr.mxu0 0.0
      %2588 = vmatpush2.xpose.msra.mxu0 0.0
      %2589 = vmatprep.subr.mxu0 0.0
      %2590 = vmatpush2.xpose.msra.mxu0 0.0
      %2591 = vmatprep.subr.mxu0 0.0
      %2592 = vmatpush2.xpose.msra.mxu0 0.0
      %2593 = vmatprep.subr.mxu0 0.0
      %2594 = vmatpush2.xpose.msra.mxu0 0.0
      %2595 = vmatprep.subr.mxu0 0.0
      %2596 = vmatpush2.xpose.msra.mxu0 0.0
      %2597 = vmatprep.subr.mxu0 0.0
      %2598 = vmatpush2.xpose.msra.mxu0 0.0
      %2599 = vmatprep.subr.mxu0 0.0
      %2600 = vmatpush2.xpose.msra.mxu0 0.0
      %2601 = vmatprep.subr.mxu0 0.0
      %2602 = vmatpush2.xpose.msra.mxu0 0.0
      %2603 = vmatprep.mubr.f32.mxu0 0.0
      %2604 = vmatmul.mubr.f32.gmra.mxu0 %v2535
      %v2605 = vpop.f32.mrf.mxu0
      %v2606 = vadd.f32 0.0, %v2605
      %v2607 = vpop.f32.mrf.mxu0
      %2608 = vdwg.mxu0
      %2609 = vrot.lane.b32.xlu0 %v1467, 96
      %v2610 = vpop.permute.xlu0 %2609
      %2611 = vrot.lane.b32.xlu0 %v1468, 96
      %v2612 = vpop.permute.xlu0 %2611
      %v2613 = vsel %vm793, %v2610, 0
      %v2615 = vsel %vm793, %v2612, 0
      %2617 = vmatprep.subr.mxu0 0.0
      %2618 = vmatpush1.xpose.msra.mxu0 0.0
      %2619 = vmatprep.subr.mxu0 0.0
      %2620 = vmatpush1.xpose.msra.mxu0 0.0
      %2621 = vmatprep.subr.mxu0 0.0
      %2622 = vmatpush1.xpose.msra.mxu0 0.0
      %2623 = vmatprep.subr.mxu0 0.0
      %2624 = vmatpush1.xpose.msra.mxu0 0.0
      %2625 = vmatprep.subr.mxu0 0.0
      %2626 = vmatpush1.xpose.msra.mxu0 0.0
      %2627 = vmatprep.subr.mxu0 0.0
      %2628 = vmatpush1.xpose.msra.mxu0 0.0
      %2629 = vmatprep.subr.mxu0 0.0
      %2630 = vmatpush1.xpose.msra.mxu0 0.0
      %2631 = vmatprep.subr.mxu0 0.0
      %2632 = vmatpush1.xpose.msra.mxu0 0.0
      %2633 = vmatprep.subr.mxu0 0.0
      %2634 = vmatpush1.xpose.msra.mxu0 0.0
      %2635 = vmatprep.subr.mxu0 0.0
      %2636 = vmatpush1.xpose.msra.mxu0 0.0
      %2637 = vmatprep.subr.mxu0 0.0
      %2638 = vmatpush1.xpose.msra.mxu0 0.0
      %2639 = vmatprep.subr.mxu0 0.0
      %2640 = vmatpush1.xpose.msra.mxu0 0.0
      %2641 = vmatprep.subr.mxu0 0.0
      %2642 = vmatpush1.xpose.msra.mxu0 0.0
      %2643 = vmatprep.subr.mxu0 0.0
      %2644 = vmatpush1.xpose.msra.mxu0 0.0
      %2645 = vmatprep.subr.mxu0 0.0
      %2646 = vmatpush1.xpose.msra.mxu0 0.0
      %2647 = vmatprep.subr.mxu0 0.0
      %2648 = vmatpush1.xpose.msra.mxu0 %v2615
      %2649 = vmatprep.subr.mxu0 0.0
      %2650 = vmatpush2.xpose.msra.mxu0 0.0
      %2651 = vmatprep.subr.mxu0 0.0
      %2652 = vmatpush2.xpose.msra.mxu0 0.0
      %2653 = vmatprep.subr.mxu0 0.0
      %2654 = vmatpush2.xpose.msra.mxu0 0.0
      %2655 = vmatprep.subr.mxu0 0.0
      %2656 = vmatpush2.xpose.msra.mxu0 0.0
      %2657 = vmatprep.subr.mxu0 0.0
      %2658 = vmatpush2.xpose.msra.mxu0 0.0
      %2659 = vmatprep.subr.mxu0 0.0
      %2660 = vmatpush2.xpose.msra.mxu0 0.0
      %2661 = vmatprep.subr.mxu0 0.0
      %2662 = vmatpush2.xpose.msra.mxu0 0.0
      %2663 = vmatprep.subr.mxu0 0.0
      %2664 = vmatpush2.xpose.msra.mxu0 0.0
      %2665 = vmatprep.subr.mxu0 0.0
      %2666 = vmatpush2.xpose.msra.mxu0 0.0
      %2667 = vmatprep.subr.mxu0 0.0
      %2668 = vmatpush2.xpose.msra.mxu0 0.0
      %2669 = vmatprep.subr.mxu0 0.0
      %2670 = vmatpush2.xpose.msra.mxu0 0.0
      %2671 = vmatprep.subr.mxu0 0.0
      %2672 = vmatpush2.xpose.msra.mxu0 0.0
      %2673 = vmatprep.subr.mxu0 0.0
      %2674 = vmatpush2.xpose.msra.mxu0 0.0
      %2675 = vmatprep.subr.mxu0 0.0
      %2676 = vmatpush2.xpose.msra.mxu0 0.0
      %2677 = vmatprep.subr.mxu0 0.0
      %2678 = vmatpush2.xpose.msra.mxu0 0.0
      %2679 = vmatprep.subr.mxu0 0.0
      %2680 = vmatpush2.xpose.msra.mxu0 0.0
      %2681 = vmatprep.mubr.f32.mxu0 0.0
      %2682 = vmatmul.mubr.f32.gmra.mxu0 %v2613
      %v2683 = vpop.f32.mrf.mxu0
      %v2684 = vadd.f32 0.0, %v2683
      %v2685 = vpop.f32.mrf.mxu0
      %2686 = vdwg.mxu0
      %v2695 = vcombine.low %v1884, %v1976
      %v2696 = vcombine.low %v2068, %v2160
      %v2698 = vunpack.c.l.s4 1983009808
      %v2699 = vunpack.c.0.s8 %v2698
      %v2700 = vlaneseq
      %v2701 = vshrl.u32 %v2700, 7
      %v2702 = vsub.s32 %v2699, %v2701
      %v2703 = vrot.slane %v2695, %v2702
      %v2705 = vunpack.c.l.s4 1983009808
      %v2706 = vunpack.c.0.s8 %v2705
      %v2707 = vlaneseq
      %v2708 = vshrl.u32 %v2707, 7
      %v2709 = vsub.s32 %v2706, %v2708
      %v2710 = vrot.slane %v2696, %v2709
      %v2711 = vcombine.low %v2703, %v2710
      %v2712 = vcombine.low %v2252, %v2344
      %v2713 = vcombine.low %v2436, %v2528
      %v2715 = vunpack.c.l.s4 1983009808
      %v2716 = vunpack.c.0.s8 %v2715
      %v2717 = vlaneseq
      %v2718 = vshrl.u32 %v2717, 7
      %v2719 = vsub.s32 %v2716, %v2718
      %v2720 = vrot.slane %v2712, %v2719
      %v2722 = vunpack.c.l.s4 1983009808
      %v2723 = vunpack.c.0.s8 %v2722
      %v2724 = vlaneseq
      %v2725 = vshrl.u32 %v2724, 7
      %v2726 = vsub.s32 %v2723, %v2725
      %v2727 = vrot.slane %v2713, %v2726
      %v2728 = vcombine.low %v2720, %v2727
      %2733 = vrot.lane.b32.xlu0 %v2606, 2
      %v2734 = vpop.permute.xlu0 %2733
      %2735 = vrot.lane.b32.xlu0 %v2684, 2
      %v2736 = vpop.permute.xlu0 %2735
      %v2739 = vsel %vm1595, %v2711, %v2734
      %v2740 = vsel %vm1595, %v2728, %v2736
      %v2741 = vsel %vm1598, %v2739, -inf
      %2742 = vmax.xlane.f32.xlu0 %v2741
      %v2743 = vpop.xlane.xlu0 %2742
      %v2744 = vsel %vm1598, %v2740, -inf
      %2745 = vmax.xlane.f32.xlu0 %v2744
      %v2746 = vpop.xlane.xlu0 %2745
      %v2747 = vsub.f32 %v2739, %v2743
      %v2748 = vsub.f32 %v2740, %v2746
      %v2749 = vmul.f32 %v2747, 1.442695
      %v2750 = vpow.pop %v2749
      %v2751 = vmul.f32 %v2748, 1.442695
      %v2752 = vpow.pop %v2751
      %v2753 = vsel %vm1598, %v2750, 0.0
      %2754 = vadd.xlane.f32.xlu0 %v2753
      %v2755 = vpop.xlane.xlu0 %2754
      %v2756 = vsel %vm1598, %v2752, 0.0
      %2757 = vadd.xlane.f32.xlu0 %v2756
      %v2758 = vpop.xlane.xlu0 %2757
      %v2759 = vrcp.pop %v2755
      %v2760 = vmul.f32 %v2750, %v2759
      %v2761 = vrcp.pop %v2758
      %v2762 = vmul.f32 %v2752, %v2761
      %2763 = vrot.lane.b32.xlu0 %v685, 96
      %v2764 = vpop.permute.xlu0 %2763
      %2765 = vrot.lane.b32.xlu0 %v687, 96
      %v2766 = vpop.permute.xlu0 %2765
      %v2767 = vsel %vm793, %v2764, 0
      %v2769 = vsel %vm793, %v2766, 0
      %2771 = vmatprep.subr.mxu0 0.0
      %2772 = vmatpush1.xpose.msra.mxu0 0.0
      %2773 = vmatprep.subr.mxu0 0.0
      %2774 = vmatpush1.xpose.msra.mxu0 0.0
      %2775 = vmatprep.subr.mxu0 0.0
      %2776 = vmatpush1.xpose.msra.mxu0 0.0
      %2777 = vmatprep.subr.mxu0 0.0
      %2778 = vmatpush1.xpose.msra.mxu0 0.0
      %2779 = vmatprep.subr.mxu0 0.0
      %2780 = vmatpush1.xpose.msra.mxu0 0.0
      %2781 = vmatprep.subr.mxu0 0.0
      %2782 = vmatpush1.xpose.msra.mxu0 0.0
      %2783 = vmatprep.subr.mxu0 0.0
      %2784 = vmatpush1.xpose.msra.mxu0 0.0
      %2785 = vmatprep.subr.mxu0 0.0
      %2786 = vmatpush1.xpose.msra.mxu0 0.0
      %2787 = vmatprep.subr.mxu0 0.0
      %2788 = vmatpush1.xpose.msra.mxu0 0.0
      %2789 = vmatprep.subr.mxu0 0.0
      %2790 = vmatpush1.xpose.msra.mxu0 0.0
      %2791 = vmatprep.subr.mxu0 0.0
      %2792 = vmatpush1.xpose.msra.mxu0 0.0
      %2793 = vmatprep.subr.mxu0 0.0
      %2794 = vmatpush1.xpose.msra.mxu0 0.0
      %2795 = vmatprep.subr.mxu0 0.0
      %2796 = vmatpush1.xpose.msra.mxu0 0.0
      %2797 = vmatprep.subr.mxu0 0.0
      %2798 = vmatpush1.xpose.msra.mxu0 0.0
      %2799 = vmatprep.subr.mxu0 0.0
      %2800 = vmatpush1.xpose.msra.mxu0 0.0
      %2801 = vmatprep.subr.mxu0 0.0
      %2802 = vmatpush1.xpose.msra.mxu0 %v2769
      %2803 = vmatprep.subr.mxu0 0.0
      %2804 = vmatpush2.xpose.msra.mxu0 0.0
      %2805 = vmatprep.subr.mxu0 0.0
      %2806 = vmatpush2.xpose.msra.mxu0 0.0
      %2807 = vmatprep.subr.mxu0 0.0
      %2808 = vmatpush2.xpose.msra.mxu0 0.0
      %2809 = vmatprep.subr.mxu0 0.0
      %2810 = vmatpush2.xpose.msra.mxu0 0.0
      %2811 = vmatprep.subr.mxu0 0.0
      %2812 = vmatpush2.xpose.msra.mxu0 0.0
      %2813 = vmatprep.subr.mxu0 0.0
      %2814 = vmatpush2.xpose.msra.mxu0 0.0
      %2815 = vmatprep.subr.mxu0 0.0
      %2816 = vmatpush2.xpose.msra.mxu0 0.0
      %2817 = vmatprep.subr.mxu0 0.0
      %2818 = vmatpush2.xpose.msra.mxu0 0.0
      %2819 = vmatprep.subr.mxu0 0.0
      %2820 = vmatpush2.xpose.msra.mxu0 0.0
      %2821 = vmatprep.subr.mxu0 0.0
      %2822 = vmatpush2.xpose.msra.mxu0 0.0
      %2823 = vmatprep.subr.mxu0 0.0
      %2824 = vmatpush2.xpose.msra.mxu0 0.0
      %2825 = vmatprep.subr.mxu0 0.0
      %2826 = vmatpush2.xpose.msra.mxu0 0.0
      %2827 = vmatprep.subr.mxu0 0.0
      %2828 = vmatpush2.xpose.msra.mxu0 0.0
      %2829 = vmatprep.subr.mxu0 0.0
      %2830 = vmatpush2.xpose.msra.mxu0 0.0
      %2831 = vmatprep.subr.mxu0 0.0
      %2832 = vmatpush2.xpose.msra.mxu0 0.0
      %2833 = vmatprep.subr.mxu0 0.0
      %2834 = vmatpush2.xpose.msra.mxu0 0.0
      %2835 = vmatprep.mubr.f32.mxu0 0.0
      %2836 = vmatmul.mubr.f32.gmra.mxu0 %v2767
      %v2837 = vpop.f32.mrf.mxu0
      %v2838 = vadd.f32 0.0, %v2837
      %v2839 = vpop.f32.mrf.mxu0
      %2840 = vdwg.mxu0
      %2841 = vrot.lane.b32.xlu0 %v686, 96
      %v2842 = vpop.permute.xlu0 %2841
      %2843 = vrot.lane.b32.xlu0 %v688, 96
      %v2844 = vpop.permute.xlu0 %2843
      %v2845 = vsel %vm793, %v2842, 0
      %v2847 = vsel %vm793, %v2844, 0
      %2849 = vmatprep.subr.mxu0 0.0
      %2850 = vmatpush1.xpose.msra.mxu0 0.0
      %2851 = vmatprep.subr.mxu0 0.0
      %2852 = vmatpush1.xpose.msra.mxu0 0.0
      %2853 = vmatprep.subr.mxu0 0.0
      %2854 = vmatpush1.xpose.msra.mxu0 0.0
      %2855 = vmatprep.subr.mxu0 0.0
      %2856 = vmatpush1.xpose.msra.mxu0 0.0
      %2857 = vmatprep.subr.mxu0 0.0
      %2858 = vmatpush1.xpose.msra.mxu0 0.0
      %2859 = vmatprep.subr.mxu0 0.0
      %2860 = vmatpush1.xpose.msra.mxu0 0.0
      %2861 = vmatprep.subr.mxu0 0.0
      %2862 = vmatpush1.xpose.msra.mxu0 0.0
      %2863 = vmatprep.subr.mxu0 0.0
      %2864 = vmatpush1.xpose.msra.mxu0 0.0
      %2865 = vmatprep.subr.mxu0 0.0
      %2866 = vmatpush1.xpose.msra.mxu0 0.0
      %2867 = vmatprep.subr.mxu0 0.0
      %2868 = vmatpush1.xpose.msra.mxu0 0.0
      %2869 = vmatprep.subr.mxu0 0.0
      %2870 = vmatpush1.xpose.msra.mxu0 0.0
      %2871 = vmatprep.subr.mxu0 0.0
      %2872 = vmatpush1.xpose.msra.mxu0 0.0
      %2873 = vmatprep.subr.mxu0 0.0
      %2874 = vmatpush1.xpose.msra.mxu0 0.0
      %2875 = vmatprep.subr.mxu0 0.0
      %2876 = vmatpush1.xpose.msra.mxu0 0.0
      %2877 = vmatprep.subr.mxu0 0.0
      %2878 = vmatpush1.xpose.msra.mxu0 0.0
      %2879 = vmatprep.subr.mxu0 0.0
      %2880 = vmatpush1.xpose.msra.mxu0 %v2847
      %2881 = vmatprep.subr.mxu0 0.0
      %2882 = vmatpush2.xpose.msra.mxu0 0.0
      %2883 = vmatprep.subr.mxu0 0.0
      %2884 = vmatpush2.xpose.msra.mxu0 0.0
      %2885 = vmatprep.subr.mxu0 0.0
      %2886 = vmatpush2.xpose.msra.mxu0 0.0
      %2887 = vmatprep.subr.mxu0 0.0
      %2888 = vmatpush2.xpose.msra.mxu0 0.0
      %2889 = vmatprep.subr.mxu0 0.0
      %2890 = vmatpush2.xpose.msra.mxu0 0.0
      %2891 = vmatprep.subr.mxu0 0.0
      %2892 = vmatpush2.xpose.msra.mxu0 0.0
      %2893 = vmatprep.subr.mxu0 0.0
      %2894 = vmatpush2.xpose.msra.mxu0 0.0
      %2895 = vmatprep.subr.mxu0 0.0
      %2896 = vmatpush2.xpose.msra.mxu0 0.0
      %2897 = vmatprep.subr.mxu0 0.0
      %2898 = vmatpush2.xpose.msra.mxu0 0.0
      %2899 = vmatprep.subr.mxu0 0.0
      %2900 = vmatpush2.xpose.msra.mxu0 0.0
      %2901 = vmatprep.subr.mxu0 0.0
      %2902 = vmatpush2.xpose.msra.mxu0 0.0
      %2903 = vmatprep.subr.mxu0 0.0
      %2904 = vmatpush2.xpose.msra.mxu0 0.0
      %2905 = vmatprep.subr.mxu0 0.0
      %2906 = vmatpush2.xpose.msra.mxu0 0.0
      %2907 = vmatprep.subr.mxu0 0.0
      %2908 = vmatpush2.xpose.msra.mxu0 0.0
      %2909 = vmatprep.subr.mxu0 0.0
      %2910 = vmatpush2.xpose.msra.mxu0 0.0
      %2911 = vmatprep.subr.mxu0 0.0
      %2912 = vmatpush2.xpose.msra.mxu0 0.0
      %2913 = vmatprep.mubr.f32.mxu0 0.0
      %2914 = vmatmul.mubr.f32.gmra.mxu0 %v2845
      %v2915 = vpop.f32.mrf.mxu0
      %v2916 = vadd.f32 0.0, %v2915
      %v2917 = vpop.f32.mrf.mxu0
      %2918 = vdwg.mxu0
      %v2919 = vsel %vm1598, %v2838, -inf
      %2920 = vmax.xlane.f32.xlu0 %v2919
      %v2921 = vpop.xlane.xlu0 %2920
      %v2922 = vsel %vm1598, %v2916, -inf
      %2923 = vmax.xlane.f32.xlu0 %v2922
      %v2924 = vpop.xlane.xlu0 %2923
      %v2925 = vsub.f32 %v2838, %v2921
      %v2926 = vsub.f32 %v2916, %v2924
      %v2927 = vmul.f32 %v2925, 1.442695
      %v2928 = vpow.pop %v2927
      %v2929 = vmul.f32 %v2926, 1.442695
      %v2930 = vpow.pop %v2929
      %v2931 = vsel %vm1598, %v2928, 0.0
      %2932 = vadd.xlane.f32.xlu0 %v2931
      %v2933 = vpop.xlane.xlu0 %2932
      %v2934 = vsel %vm1598, %v2930, 0.0
      %2935 = vadd.xlane.f32.xlu0 %v2934
      %v2936 = vpop.xlane.xlu0 %2935
      %v2937 = vrcp.pop %v2933
      %v2938 = vmul.f32 %v2928, %v2937
      %v2939 = vrcp.pop %v2936
      %v2940 = vmul.f32 %v2930, %v2939
      %2941 = vrot.lane.b32.xlu0 %v1801, 64
      %v2942 = vpop.permute.xlu0 %2941
      %2943 = vrot.lane.b32.xlu0 %v1810, 64
      %v2944 = vpop.permute.xlu0 %2943
      %v2945 = vsel %vm793, %v2942, 0
      %v2947 = vsel %vm793, %v2944, 0
      %2949 = vmatprep.subr.mxu0 0.0
      %2950 = vmatpush1.xpose.msra.mxu0 0.0
      %2951 = vmatprep.subr.mxu0 0.0
      %2952 = vmatpush1.xpose.msra.mxu0 0.0
      %2953 = vmatprep.subr.mxu0 0.0
      %2954 = vmatpush1.xpose.msra.mxu0 0.0
      %2955 = vmatprep.subr.mxu0 0.0
      %2956 = vmatpush1.xpose.msra.mxu0 0.0
      %2957 = vmatprep.subr.mxu0 0.0
      %2958 = vmatpush1.xpose.msra.mxu0 0.0
      %2959 = vmatprep.subr.mxu0 0.0
      %2960 = vmatpush1.xpose.msra.mxu0 0.0
      %2961 = vmatprep.subr.mxu0 0.0
      %2962 = vmatpush1.xpose.msra.mxu0 0.0
      %2963 = vmatprep.subr.mxu0 0.0
      %2964 = vmatpush1.xpose.msra.mxu0 0.0
      %2965 = vmatprep.subr.mxu0 0.0
      %2966 = vmatpush1.xpose.msra.mxu0 0.0
      %2967 = vmatprep.subr.mxu0 0.0
      %2968 = vmatpush1.xpose.msra.mxu0 0.0
      %2969 = vmatprep.subr.mxu0 0.0
      %2970 = vmatpush1.xpose.msra.mxu0 0.0
      %2971 = vmatprep.subr.mxu0 0.0
      %2972 = vmatpush1.xpose.msra.mxu0 0.0
      %2973 = vmatprep.subr.mxu0 0.0
      %2974 = vmatpush1.xpose.msra.mxu0 0.0
      %2975 = vmatprep.subr.mxu0 0.0
      %2976 = vmatpush1.xpose.msra.mxu0 0.0
      %2977 = vmatprep.subr.mxu0 0.0
      %2978 = vmatpush1.xpose.msra.mxu0 0.0
      %2979 = vmatprep.subr.mxu0 0.0
      %2980 = vmatpush1.xpose.msra.mxu0 %v2947
      %2981 = vmatprep.subr.mxu0 0.0
      %2982 = vmatpush2.xpose.msra.mxu0 0.0
      %2983 = vmatprep.subr.mxu0 0.0
      %2984 = vmatpush2.xpose.msra.mxu0 0.0
      %2985 = vmatprep.subr.mxu0 0.0
      %2986 = vmatpush2.xpose.msra.mxu0 0.0
      %2987 = vmatprep.subr.mxu0 0.0
      %2988 = vmatpush2.xpose.msra.mxu0 0.0
      %2989 = vmatprep.subr.mxu0 0.0
      %2990 = vmatpush2.xpose.msra.mxu0 0.0
      %2991 = vmatprep.subr.mxu0 0.0
      %2992 = vmatpush2.xpose.msra.mxu0 0.0
      %2993 = vmatprep.subr.mxu0 0.0
      %2994 = vmatpush2.xpose.msra.mxu0 0.0
      %2995 = vmatprep.subr.mxu0 0.0
      %2996 = vmatpush2.xpose.msra.mxu0 0.0
      %2997 = vmatprep.subr.mxu0 0.0
      %2998 = vmatpush2.xpose.msra.mxu0 0.0
      %2999 = vmatprep.subr.mxu0 0.0
      %3000 = vmatpush2.xpose.msra.mxu0 0.0
      %3001 = vmatprep.subr.mxu0 0.0
      %3002 = vmatpush2.xpose.msra.mxu0 0.0
      %3003 = vmatprep.subr.mxu0 0.0
      %3004 = vmatpush2.xpose.msra.mxu0 0.0
      %3005 = vmatprep.subr.mxu0 0.0
      %3006 = vmatpush2.xpose.msra.mxu0 0.0
      %3007 = vmatprep.subr.mxu0 0.0
      %3008 = vmatpush2.xpose.msra.mxu0 0.0
      %3009 = vmatprep.subr.mxu0 0.0
      %3010 = vmatpush2.xpose.msra.mxu0 0.0
      %3011 = vmatprep.subr.mxu0 0.0
      %3012 = vmatpush2.xpose.msra.mxu0 0.0
      %3013 = vmatprep.mubr.f32.mxu0 0.0
      %3014 = vmatmul.mubr.f32.gmra.mxu0 %v2945
      %v3015 = vpop.f32.mrf.mxu0
      %v3016 = vadd.f32 0.0, %v3015
      %v3017 = vpop.f32.mrf.mxu0
      %3018 = vdwg.mxu0
      %3019 = vrot.lane.b32.xlu0 %v1893, 64
      %v3020 = vpop.permute.xlu0 %3019
      %3021 = vrot.lane.b32.xlu0 %v1902, 64
      %v3022 = vpop.permute.xlu0 %3021
      %v3023 = vsel %vm793, %v3020, 0
      %v3025 = vsel %vm793, %v3022, 0
      %3027 = vmatprep.subr.mxu0 0.0
      %3028 = vmatpush1.xpose.msra.mxu0 0.0
      %3029 = vmatprep.subr.mxu0 0.0
      %3030 = vmatpush1.xpose.msra.mxu0 0.0
      %3031 = vmatprep.subr.mxu0 0.0
      %3032 = vmatpush1.xpose.msra.mxu0 0.0
      %3033 = vmatprep.subr.mxu0 0.0
      %3034 = vmatpush1.xpose.msra.mxu0 0.0
      %3035 = vmatprep.subr.mxu0 0.0
      %3036 = vmatpush1.xpose.msra.mxu0 0.0
      %3037 = vmatprep.subr.mxu0 0.0
      %3038 = vmatpush1.xpose.msra.mxu0 0.0
      %3039 = vmatprep.subr.mxu0 0.0
      %3040 = vmatpush1.xpose.msra.mxu0 0.0
      %3041 = vmatprep.subr.mxu0 0.0
      %3042 = vmatpush1.xpose.msra.mxu0 0.0
      %3043 = vmatprep.subr.mxu0 0.0
      %3044 = vmatpush1.xpose.msra.mxu0 0.0
      %3045 = vmatprep.subr.mxu0 0.0
      %3046 = vmatpush1.xpose.msra.mxu0 0.0
      %3047 = vmatprep.subr.mxu0 0.0
      %3048 = vmatpush1.xpose.msra.mxu0 0.0
      %3049 = vmatprep.subr.mxu0 0.0
      %3050 = vmatpush1.xpose.msra.mxu0 0.0
      %3051 = vmatprep.subr.mxu0 0.0
      %3052 = vmatpush1.xpose.msra.mxu0 0.0
      %3053 = vmatprep.subr.mxu0 0.0
      %3054 = vmatpush1.xpose.msra.mxu0 0.0
      %3055 = vmatprep.subr.mxu0 0.0
      %3056 = vmatpush1.xpose.msra.mxu0 0.0
      %3057 = vmatprep.subr.mxu0 0.0
      %3058 = vmatpush1.xpose.msra.mxu0 %v3025
      %3059 = vmatprep.subr.mxu0 0.0
      %3060 = vmatpush2.xpose.msra.mxu0 0.0
      %3061 = vmatprep.subr.mxu0 0.0
      %3062 = vmatpush2.xpose.msra.mxu0 0.0
      %3063 = vmatprep.subr.mxu0 0.0
      %3064 = vmatpush2.xpose.msra.mxu0 0.0
      %3065 = vmatprep.subr.mxu0 0.0
      %3066 = vmatpush2.xpose.msra.mxu0 0.0
      %3067 = vmatprep.subr.mxu0 0.0
      %3068 = vmatpush2.xpose.msra.mxu0 0.0
      %3069 = vmatprep.subr.mxu0 0.0
      %3070 = vmatpush2.xpose.msra.mxu0 0.0
      %3071 = vmatprep.subr.mxu0 0.0
      %3072 = vmatpush2.xpose.msra.mxu0 0.0
      %3073 = vmatprep.subr.mxu0 0.0
      %3074 = vmatpush2.xpose.msra.mxu0 0.0
      %3075 = vmatprep.subr.mxu0 0.0
      %3076 = vmatpush2.xpose.msra.mxu0 0.0
      %3077 = vmatprep.subr.mxu0 0.0
      %3078 = vmatpush2.xpose.msra.mxu0 0.0
      %3079 = vmatprep.subr.mxu0 0.0
      %3080 = vmatpush2.xpose.msra.mxu0 0.0
      %3081 = vmatprep.subr.mxu0 0.0
      %3082 = vmatpush2.xpose.msra.mxu0 0.0
      %3083 = vmatprep.subr.mxu0 0.0
      %3084 = vmatpush2.xpose.msra.mxu0 0.0
      %3085 = vmatprep.subr.mxu0 0.0
      %3086 = vmatpush2.xpose.msra.mxu0 0.0
      %3087 = vmatprep.subr.mxu0 0.0
      %3088 = vmatpush2.xpose.msra.mxu0 0.0
      %3089 = vmatprep.subr.mxu0 0.0
      %3090 = vmatpush2.xpose.msra.mxu0 0.0
      %3091 = vmatprep.mubr.f32.mxu0 0.0
      %3092 = vmatmul.mubr.f32.gmra.mxu0 %v3023
      %v3093 = vpop.f32.mrf.mxu0
      %v3094 = vadd.f32 0.0, %v3093
      %v3095 = vpop.f32.mrf.mxu0
      %3096 = vdwg.mxu0
      %3097 = vrot.lane.b32.xlu0 %v1985, 64
      %v3098 = vpop.permute.xlu0 %3097
      %3099 = vrot.lane.b32.xlu0 %v1994, 64
      %v3100 = vpop.permute.xlu0 %3099
      %v3101 = vsel %vm793, %v3098, 0
      %v3103 = vsel %vm793, %v3100, 0
      %3105 = vmatprep.subr.mxu0 0.0
      %3106 = vmatpush1.xpose.msra.mxu0 0.0
      %3107 = vmatprep.subr.mxu0 0.0
      %3108 = vmatpush1.xpose.msra.mxu0 0.0
      %3109 = vmatprep.subr.mxu0 0.0
      %3110 = vmatpush1.xpose.msra.mxu0 0.0
      %3111 = vmatprep.subr.mxu0 0.0
      %3112 = vmatpush1.xpose.msra.mxu0 0.0
      %3113 = vmatprep.subr.mxu0 0.0
      %3114 = vmatpush1.xpose.msra.mxu0 0.0
      %3115 = vmatprep.subr.mxu0 0.0
      %3116 = vmatpush1.xpose.msra.mxu0 0.0
      %3117 = vmatprep.subr.mxu0 0.0
      %3118 = vmatpush1.xpose.msra.mxu0 0.0
      %3119 = vmatprep.subr.mxu0 0.0
      %3120 = vmatpush1.xpose.msra.mxu0 0.0
      %3121 = vmatprep.subr.mxu0 0.0
      %3122 = vmatpush1.xpose.msra.mxu0 0.0
      %3123 = vmatprep.subr.mxu0 0.0
      %3124 = vmatpush1.xpose.msra.mxu0 0.0
      %3125 = vmatprep.subr.mxu0 0.0
      %3126 = vmatpush1.xpose.msra.mxu0 0.0
      %3127 = vmatprep.subr.mxu0 0.0
      %3128 = vmatpush1.xpose.msra.mxu0 0.0
      %3129 = vmatprep.subr.mxu0 0.0
      %3130 = vmatpush1.xpose.msra.mxu0 0.0
      %3131 = vmatprep.subr.mxu0 0.0
      %3132 = vmatpush1.xpose.msra.mxu0 0.0
      %3133 = vmatprep.subr.mxu0 0.0
      %3134 = vmatpush1.xpose.msra.mxu0 0.0
      %3135 = vmatprep.subr.mxu0 0.0
      %3136 = vmatpush1.xpose.msra.mxu0 %v3103
      %3137 = vmatprep.subr.mxu0 0.0
      %3138 = vmatpush2.xpose.msra.mxu0 0.0
      %3139 = vmatprep.subr.mxu0 0.0
      %3140 = vmatpush2.xpose.msra.mxu0 0.0
      %3141 = vmatprep.subr.mxu0 0.0
      %3142 = vmatpush2.xpose.msra.mxu0 0.0
      %3143 = vmatprep.subr.mxu0 0.0
      %3144 = vmatpush2.xpose.msra.mxu0 0.0
      %3145 = vmatprep.subr.mxu0 0.0
      %3146 = vmatpush2.xpose.msra.mxu0 0.0
      %3147 = vmatprep.subr.mxu0 0.0
      %3148 = vmatpush2.xpose.msra.mxu0 0.0
      %3149 = vmatprep.subr.mxu0 0.0
      %3150 = vmatpush2.xpose.msra.mxu0 0.0
      %3151 = vmatprep.subr.mxu0 0.0
      %3152 = vmatpush2.xpose.msra.mxu0 0.0
      %3153 = vmatprep.subr.mxu0 0.0
      %3154 = vmatpush2.xpose.msra.mxu0 0.0
      %3155 = vmatprep.subr.mxu0 0.0
      %3156 = vmatpush2.xpose.msra.mxu0 0.0
      %3157 = vmatprep.subr.mxu0 0.0
      %3158 = vmatpush2.xpose.msra.mxu0 0.0
      %3159 = vmatprep.subr.mxu0 0.0
      %3160 = vmatpush2.xpose.msra.mxu0 0.0
      %3161 = vmatprep.subr.mxu0 0.0
      %3162 = vmatpush2.xpose.msra.mxu0 0.0
      %3163 = vmatprep.subr.mxu0 0.0
      %3164 = vmatpush2.xpose.msra.mxu0 0.0
      %3165 = vmatprep.subr.mxu0 0.0
      %3166 = vmatpush2.xpose.msra.mxu0 0.0
      %3167 = vmatprep.subr.mxu0 0.0
      %3168 = vmatpush2.xpose.msra.mxu0 0.0
      %3169 = vmatprep.mubr.f32.mxu0 0.0
      %3170 = vmatmul.mubr.f32.gmra.mxu0 %v3101
      %v3171 = vpop.f32.mrf.mxu0
      %v3172 = vadd.f32 0.0, %v3171
      %v3173 = vpop.f32.mrf.mxu0
      %3174 = vdwg.mxu0
      %3175 = vrot.lane.b32.xlu0 %v2077, 64
      %v3176 = vpop.permute.xlu0 %3175
      %3177 = vrot.lane.b32.xlu0 %v2086, 64
      %v3178 = vpop.permute.xlu0 %3177
      %v3179 = vsel %vm793, %v3176, 0
      %v3181 = vsel %vm793, %v3178, 0
      %3183 = vmatprep.subr.mxu0 0.0
      %3184 = vmatpush1.xpose.msra.mxu0 0.0
      %3185 = vmatprep.subr.mxu0 0.0
      %3186 = vmatpush1.xpose.msra.mxu0 0.0
      %3187 = vmatprep.subr.mxu0 0.0
      %3188 = vmatpush1.xpose.msra.mxu0 0.0
      %3189 = vmatprep.subr.mxu0 0.0
      %3190 = vmatpush1.xpose.msra.mxu0 0.0
      %3191 = vmatprep.subr.mxu0 0.0
      %3192 = vmatpush1.xpose.msra.mxu0 0.0
      %3193 = vmatprep.subr.mxu0 0.0
      %3194 = vmatpush1.xpose.msra.mxu0 0.0
      %3195 = vmatprep.subr.mxu0 0.0
      %3196 = vmatpush1.xpose.msra.mxu0 0.0
      %3197 = vmatprep.subr.mxu0 0.0
      %3198 = vmatpush1.xpose.msra.mxu0 0.0
      %3199 = vmatprep.subr.mxu0 0.0
      %3200 = vmatpush1.xpose.msra.mxu0 0.0
      %3201 = vmatprep.subr.mxu0 0.0
      %3202 = vmatpush1.xpose.msra.mxu0 0.0
      %3203 = vmatprep.subr.mxu0 0.0
      %3204 = vmatpush1.xpose.msra.mxu0 0.0
      %3205 = vmatprep.subr.mxu0 0.0
      %3206 = vmatpush1.xpose.msra.mxu0 0.0
      %3207 = vmatprep.subr.mxu0 0.0
      %3208 = vmatpush1.xpose.msra.mxu0 0.0
      %3209 = vmatprep.subr.mxu0 0.0
      %3210 = vmatpush1.xpose.msra.mxu0 0.0
      %3211 = vmatprep.subr.mxu0 0.0
      %3212 = vmatpush1.xpose.msra.mxu0 0.0
      %3213 = vmatprep.subr.mxu0 0.0
      %3214 = vmatpush1.xpose.msra.mxu0 %v3181
      %3215 = vmatprep.subr.mxu0 0.0
      %3216 = vmatpush2.xpose.msra.mxu0 0.0
      %3217 = vmatprep.subr.mxu0 0.0
      %3218 = vmatpush2.xpose.msra.mxu0 0.0
      %3219 = vmatprep.subr.mxu0 0.0
      %3220 = vmatpush2.xpose.msra.mxu0 0.0
      %3221 = vmatprep.subr.mxu0 0.0
      %3222 = vmatpush2.xpose.msra.mxu0 0.0
      %3223 = vmatprep.subr.mxu0 0.0
      %3224 = vmatpush2.xpose.msra.mxu0 0.0
      %3225 = vmatprep.subr.mxu0 0.0
      %3226 = vmatpush2.xpose.msra.mxu0 0.0
      %3227 = vmatprep.subr.mxu0 0.0
      %3228 = vmatpush2.xpose.msra.mxu0 0.0
      %3229 = vmatprep.subr.mxu0 0.0
      %3230 = vmatpush2.xpose.msra.mxu0 0.0
      %3231 = vmatprep.subr.mxu0 0.0
      %3232 = vmatpush2.xpose.msra.mxu0 0.0
      %3233 = vmatprep.subr.mxu0 0.0
      %3234 = vmatpush2.xpose.msra.mxu0 0.0
      %3235 = vmatprep.subr.mxu0 0.0
      %3236 = vmatpush2.xpose.msra.mxu0 0.0
      %3237 = vmatprep.subr.mxu0 0.0
      %3238 = vmatpush2.xpose.msra.mxu0 0.0
      %3239 = vmatprep.subr.mxu0 0.0
      %3240 = vmatpush2.xpose.msra.mxu0 0.0
      %3241 = vmatprep.subr.mxu0 0.0
      %3242 = vmatpush2.xpose.msra.mxu0 0.0
      %3243 = vmatprep.subr.mxu0 0.0
      %3244 = vmatpush2.xpose.msra.mxu0 0.0
      %3245 = vmatprep.subr.mxu0 0.0
      %3246 = vmatpush2.xpose.msra.mxu0 0.0
      %3247 = vmatprep.mubr.f32.mxu0 0.0
      %3248 = vmatmul.mubr.f32.gmra.mxu0 %v3179
      %v3249 = vpop.f32.mrf.mxu0
      %v3250 = vadd.f32 0.0, %v3249
      %v3251 = vpop.f32.mrf.mxu0
      %3252 = vdwg.mxu0
      %3253 = vrot.lane.b32.xlu0 %v2169, 64
      %v3254 = vpop.permute.xlu0 %3253
      %3255 = vrot.lane.b32.xlu0 %v2178, 64
      %v3256 = vpop.permute.xlu0 %3255
      %v3257 = vsel %vm793, %v3254, 0
      %v3259 = vsel %vm793, %v3256, 0
      %3261 = vmatprep.subr.mxu0 0.0
      %3262 = vmatpush1.xpose.msra.mxu0 0.0
      %3263 = vmatprep.subr.mxu0 0.0
      %3264 = vmatpush1.xpose.msra.mxu0 0.0
      %3265 = vmatprep.subr.mxu0 0.0
      %3266 = vmatpush1.xpose.msra.mxu0 0.0
      %3267 = vmatprep.subr.mxu0 0.0
      %3268 = vmatpush1.xpose.msra.mxu0 0.0
      %3269 = vmatprep.subr.mxu0 0.0
      %3270 = vmatpush1.xpose.msra.mxu0 0.0
      %3271 = vmatprep.subr.mxu0 0.0
      %3272 = vmatpush1.xpose.msra.mxu0 0.0
      %3273 = vmatprep.subr.mxu0 0.0
      %3274 = vmatpush1.xpose.msra.mxu0 0.0
      %3275 = vmatprep.subr.mxu0 0.0
      %3276 = vmatpush1.xpose.msra.mxu0 0.0
      %3277 = vmatprep.subr.mxu0 0.0
      %3278 = vmatpush1.xpose.msra.mxu0 0.0
      %3279 = vmatprep.subr.mxu0 0.0
      %3280 = vmatpush1.xpose.msra.mxu0 0.0
      %3281 = vmatprep.subr.mxu0 0.0
      %3282 = vmatpush1.xpose.msra.mxu0 0.0
      %3283 = vmatprep.subr.mxu0 0.0
      %3284 = vmatpush1.xpose.msra.mxu0 0.0
      %3285 = vmatprep.subr.mxu0 0.0
      %3286 = vmatpush1.xpose.msra.mxu0 0.0
      %3287 = vmatprep.subr.mxu0 0.0
      %3288 = vmatpush1.xpose.msra.mxu0 0.0
      %3289 = vmatprep.subr.mxu0 0.0
      %3290 = vmatpush1.xpose.msra.mxu0 0.0
      %3291 = vmatprep.subr.mxu0 0.0
      %3292 = vmatpush1.xpose.msra.mxu0 %v3259
      %3293 = vmatprep.subr.mxu0 0.0
      %3294 = vmatpush2.xpose.msra.mxu0 0.0
      %3295 = vmatprep.subr.mxu0 0.0
      %3296 = vmatpush2.xpose.msra.mxu0 0.0
      %3297 = vmatprep.subr.mxu0 0.0
      %3298 = vmatpush2.xpose.msra.mxu0 0.0
      %3299 = vmatprep.subr.mxu0 0.0
      %3300 = vmatpush2.xpose.msra.mxu0 0.0
      %3301 = vmatprep.subr.mxu0 0.0
      %3302 = vmatpush2.xpose.msra.mxu0 0.0
      %3303 = vmatprep.subr.mxu0 0.0
      %3304 = vmatpush2.xpose.msra.mxu0 0.0
      %3305 = vmatprep.subr.mxu0 0.0
      %3306 = vmatpush2.xpose.msra.mxu0 0.0
      %3307 = vmatprep.subr.mxu0 0.0
      %3308 = vmatpush2.xpose.msra.mxu0 0.0
      %3309 = vmatprep.subr.mxu0 0.0
      %3310 = vmatpush2.xpose.msra.mxu0 0.0
      %3311 = vmatprep.subr.mxu0 0.0
      %3312 = vmatpush2.xpose.msra.mxu0 0.0
      %3313 = vmatprep.subr.mxu0 0.0
      %3314 = vmatpush2.xpose.msra.mxu0 0.0
      %3315 = vmatprep.subr.mxu0 0.0
      %3316 = vmatpush2.xpose.msra.mxu0 0.0
      %3317 = vmatprep.subr.mxu0 0.0
      %3318 = vmatpush2.xpose.msra.mxu0 0.0
      %3319 = vmatprep.subr.mxu0 0.0
      %3320 = vmatpush2.xpose.msra.mxu0 0.0
      %3321 = vmatprep.subr.mxu0 0.0
      %3322 = vmatpush2.xpose.msra.mxu0 0.0
      %3323 = vmatprep.subr.mxu0 0.0
      %3324 = vmatpush2.xpose.msra.mxu0 0.0
      %3325 = vmatprep.mubr.f32.mxu0 0.0
      %3326 = vmatmul.mubr.f32.gmra.mxu0 %v3257
      %v3327 = vpop.f32.mrf.mxu0
      %v3328 = vadd.f32 0.0, %v3327
      %v3329 = vpop.f32.mrf.mxu0
      %3330 = vdwg.mxu0
      %3331 = vrot.lane.b32.xlu0 %v2261, 64
      %v3332 = vpop.permute.xlu0 %3331
      %3333 = vrot.lane.b32.xlu0 %v2270, 64
      %v3334 = vpop.permute.xlu0 %3333
      %v3335 = vsel %vm793, %v3332, 0
      %v3337 = vsel %vm793, %v3334, 0
      %3339 = vmatprep.subr.mxu0 0.0
      %3340 = vmatpush1.xpose.msra.mxu0 0.0
      %3341 = vmatprep.subr.mxu0 0.0
      %3342 = vmatpush1.xpose.msra.mxu0 0.0
      %3343 = vmatprep.subr.mxu0 0.0
      %3344 = vmatpush1.xpose.msra.mxu0 0.0
      %3345 = vmatprep.subr.mxu0 0.0
      %3346 = vmatpush1.xpose.msra.mxu0 0.0
      %3347 = vmatprep.subr.mxu0 0.0
      %3348 = vmatpush1.xpose.msra.mxu0 0.0
      %3349 = vmatprep.subr.mxu0 0.0
      %3350 = vmatpush1.xpose.msra.mxu0 0.0
      %3351 = vmatprep.subr.mxu0 0.0
      %3352 = vmatpush1.xpose.msra.mxu0 0.0
      %3353 = vmatprep.subr.mxu0 0.0
      %3354 = vmatpush1.xpose.msra.mxu0 0.0
      %3355 = vmatprep.subr.mxu0 0.0
      %3356 = vmatpush1.xpose.msra.mxu0 0.0
      %3357 = vmatprep.subr.mxu0 0.0
      %3358 = vmatpush1.xpose.msra.mxu0 0.0
      %3359 = vmatprep.subr.mxu0 0.0
      %3360 = vmatpush1.xpose.msra.mxu0 0.0
      %3361 = vmatprep.subr.mxu0 0.0
      %3362 = vmatpush1.xpose.msra.mxu0 0.0
      %3363 = vmatprep.subr.mxu0 0.0
      %3364 = vmatpush1.xpose.msra.mxu0 0.0
      %3365 = vmatprep.subr.mxu0 0.0
      %3366 = vmatpush1.xpose.msra.mxu0 0.0
      %3367 = vmatprep.subr.mxu0 0.0
      %3368 = vmatpush1.xpose.msra.mxu0 0.0
      %3369 = vmatprep.subr.mxu0 0.0
      %3370 = vmatpush1.xpose.msra.mxu0 %v3337
      %3371 = vmatprep.subr.mxu0 0.0
      %3372 = vmatpush2.xpose.msra.mxu0 0.0
      %3373 = vmatprep.subr.mxu0 0.0
      %3374 = vmatpush2.xpose.msra.mxu0 0.0
      %3375 = vmatprep.subr.mxu0 0.0
      %3376 = vmatpush2.xpose.msra.mxu0 0.0
      %3377 = vmatprep.subr.mxu0 0.0
      %3378 = vmatpush2.xpose.msra.mxu0 0.0
      %3379 = vmatprep.subr.mxu0 0.0
      %3380 = vmatpush2.xpose.msra.mxu0 0.0
      %3381 = vmatprep.subr.mxu0 0.0
      %3382 = vmatpush2.xpose.msra.mxu0 0.0
      %3383 = vmatprep.subr.mxu0 0.0
      %3384 = vmatpush2.xpose.msra.mxu0 0.0
      %3385 = vmatprep.subr.mxu0 0.0
      %3386 = vmatpush2.xpose.msra.mxu0 0.0
      %3387 = vmatprep.subr.mxu0 0.0
      %3388 = vmatpush2.xpose.msra.mxu0 0.0
      %3389 = vmatprep.subr.mxu0 0.0
      %3390 = vmatpush2.xpose.msra.mxu0 0.0
      %3391 = vmatprep.subr.mxu0 0.0
      %3392 = vmatpush2.xpose.msra.mxu0 0.0
      %3393 = vmatprep.subr.mxu0 0.0
      %3394 = vmatpush2.xpose.msra.mxu0 0.0
      %3395 = vmatprep.subr.mxu0 0.0
      %3396 = vmatpush2.xpose.msra.mxu0 0.0
      %3397 = vmatprep.subr.mxu0 0.0
      %3398 = vmatpush2.xpose.msra.mxu0 0.0
      %3399 = vmatprep.subr.mxu0 0.0
      %3400 = vmatpush2.xpose.msra.mxu0 0.0
      %3401 = vmatprep.subr.mxu0 0.0
      %3402 = vmatpush2.xpose.msra.mxu0 0.0
      %3403 = vmatprep.mubr.f32.mxu0 0.0
      %3404 = vmatmul.mubr.f32.gmra.mxu0 %v3335
      %v3405 = vpop.f32.mrf.mxu0
      %v3406 = vadd.f32 0.0, %v3405
      %v3407 = vpop.f32.mrf.mxu0
      %3408 = vdwg.mxu0
      %3409 = vrot.lane.b32.xlu0 %v2353, 64
      %v3410 = vpop.permute.xlu0 %3409
      %3411 = vrot.lane.b32.xlu0 %v2362, 64
      %v3412 = vpop.permute.xlu0 %3411
      %v3413 = vsel %vm793, %v3410, 0
      %v3415 = vsel %vm793, %v3412, 0
      %3417 = vmatprep.subr.mxu0 0.0
      %3418 = vmatpush1.xpose.msra.mxu0 0.0
      %3419 = vmatprep.subr.mxu0 0.0
      %3420 = vmatpush1.xpose.msra.mxu0 0.0
      %3421 = vmatprep.subr.mxu0 0.0
      %3422 = vmatpush1.xpose.msra.mxu0 0.0
      %3423 = vmatprep.subr.mxu0 0.0
      %3424 = vmatpush1.xpose.msra.mxu0 0.0
      %3425 = vmatprep.subr.mxu0 0.0
      %3426 = vmatpush1.xpose.msra.mxu0 0.0
      %3427 = vmatprep.subr.mxu0 0.0
      %3428 = vmatpush1.xpose.msra.mxu0 0.0
      %3429 = vmatprep.subr.mxu0 0.0
      %3430 = vmatpush1.xpose.msra.mxu0 0.0
      %3431 = vmatprep.subr.mxu0 0.0
      %3432 = vmatpush1.xpose.msra.mxu0 0.0
      %3433 = vmatprep.subr.mxu0 0.0
      %3434 = vmatpush1.xpose.msra.mxu0 0.0
      %3435 = vmatprep.subr.mxu0 0.0
      %3436 = vmatpush1.xpose.msra.mxu0 0.0
      %3437 = vmatprep.subr.mxu0 0.0
      %3438 = vmatpush1.xpose.msra.mxu0 0.0
      %3439 = vmatprep.subr.mxu0 0.0
      %3440 = vmatpush1.xpose.msra.mxu0 0.0
      %3441 = vmatprep.subr.mxu0 0.0
      %3442 = vmatpush1.xpose.msra.mxu0 0.0
      %3443 = vmatprep.subr.mxu0 0.0
      %3444 = vmatpush1.xpose.msra.mxu0 0.0
      %3445 = vmatprep.subr.mxu0 0.0
      %3446 = vmatpush1.xpose.msra.mxu0 0.0
      %3447 = vmatprep.subr.mxu0 0.0
      %3448 = vmatpush1.xpose.msra.mxu0 %v3415
      %3449 = vmatprep.subr.mxu0 0.0
      %3450 = vmatpush2.xpose.msra.mxu0 0.0
      %3451 = vmatprep.subr.mxu0 0.0
      %3452 = vmatpush2.xpose.msra.mxu0 0.0
      %3453 = vmatprep.subr.mxu0 0.0
      %3454 = vmatpush2.xpose.msra.mxu0 0.0
      %3455 = vmatprep.subr.mxu0 0.0
      %3456 = vmatpush2.xpose.msra.mxu0 0.0
      %3457 = vmatprep.subr.mxu0 0.0
      %3458 = vmatpush2.xpose.msra.mxu0 0.0
      %3459 = vmatprep.subr.mxu0 0.0
      %3460 = vmatpush2.xpose.msra.mxu0 0.0
      %3461 = vmatprep.subr.mxu0 0.0
      %3462 = vmatpush2.xpose.msra.mxu0 0.0
      %3463 = vmatprep.subr.mxu0 0.0
      %3464 = vmatpush2.xpose.msra.mxu0 0.0
      %3465 = vmatprep.subr.mxu0 0.0
      %3466 = vmatpush2.xpose.msra.mxu0 0.0
      %3467 = vmatprep.subr.mxu0 0.0
      %3468 = vmatpush2.xpose.msra.mxu0 0.0
      %3469 = vmatprep.subr.mxu0 0.0
      %3470 = vmatpush2.xpose.msra.mxu0 0.0
      %3471 = vmatprep.subr.mxu0 0.0
      %3472 = vmatpush2.xpose.msra.mxu0 0.0
      %3473 = vmatprep.subr.mxu0 0.0
      %3474 = vmatpush2.xpose.msra.mxu0 0.0
      %3475 = vmatprep.subr.mxu0 0.0
      %3476 = vmatpush2.xpose.msra.mxu0 0.0
      %3477 = vmatprep.subr.mxu0 0.0
      %3478 = vmatpush2.xpose.msra.mxu0 0.0
      %3479 = vmatprep.subr.mxu0 0.0
      %3480 = vmatpush2.xpose.msra.mxu0 0.0
      %3481 = vmatprep.mubr.f32.mxu0 0.0
      %3482 = vmatmul.mubr.f32.gmra.mxu0 %v3413
      %v3483 = vpop.f32.mrf.mxu0
      %v3484 = vadd.f32 0.0, %v3483
      %v3485 = vpop.f32.mrf.mxu0
      %3486 = vdwg.mxu0
      %3487 = vrot.lane.b32.xlu0 %v2445, 64
      %v3488 = vpop.permute.xlu0 %3487
      %3489 = vrot.lane.b32.xlu0 %v2454, 64
      %v3490 = vpop.permute.xlu0 %3489
      %v3491 = vsel %vm793, %v3488, 0
      %v3493 = vsel %vm793, %v3490, 0
      %3495 = vmatprep.subr.mxu0 0.0
      %3496 = vmatpush1.xpose.msra.mxu0 0.0
      %3497 = vmatprep.subr.mxu0 0.0
      %3498 = vmatpush1.xpose.msra.mxu0 0.0
      %3499 = vmatprep.subr.mxu0 0.0
      %3500 = vmatpush1.xpose.msra.mxu0 0.0
      %3501 = vmatprep.subr.mxu0 0.0
      %3502 = vmatpush1.xpose.msra.mxu0 0.0
      %3503 = vmatprep.subr.mxu0 0.0
      %3504 = vmatpush1.xpose.msra.mxu0 0.0
      %3505 = vmatprep.subr.mxu0 0.0
      %3506 = vmatpush1.xpose.msra.mxu0 0.0
      %3507 = vmatprep.subr.mxu0 0.0
      %3508 = vmatpush1.xpose.msra.mxu0 0.0
      %3509 = vmatprep.subr.mxu0 0.0
      %3510 = vmatpush1.xpose.msra.mxu0 0.0
      %3511 = vmatprep.subr.mxu0 0.0
      %3512 = vmatpush1.xpose.msra.mxu0 0.0
      %3513 = vmatprep.subr.mxu0 0.0
      %3514 = vmatpush1.xpose.msra.mxu0 0.0
      %3515 = vmatprep.subr.mxu0 0.0
      %3516 = vmatpush1.xpose.msra.mxu0 0.0
      %3517 = vmatprep.subr.mxu0 0.0
      %3518 = vmatpush1.xpose.msra.mxu0 0.0
      %3519 = vmatprep.subr.mxu0 0.0
      %3520 = vmatpush1.xpose.msra.mxu0 0.0
      %3521 = vmatprep.subr.mxu0 0.0
      %3522 = vmatpush1.xpose.msra.mxu0 0.0
      %3523 = vmatprep.subr.mxu0 0.0
      %3524 = vmatpush1.xpose.msra.mxu0 0.0
      %3525 = vmatprep.subr.mxu0 0.0
      %3526 = vmatpush1.xpose.msra.mxu0 %v3493
      %3527 = vmatprep.subr.mxu0 0.0
      %3528 = vmatpush2.xpose.msra.mxu0 0.0
      %3529 = vmatprep.subr.mxu0 0.0
      %3530 = vmatpush2.xpose.msra.mxu0 0.0
      %3531 = vmatprep.subr.mxu0 0.0
      %3532 = vmatpush2.xpose.msra.mxu0 0.0
      %3533 = vmatprep.subr.mxu0 0.0
      %3534 = vmatpush2.xpose.msra.mxu0 0.0
      %3535 = vmatprep.subr.mxu0 0.0
      %3536 = vmatpush2.xpose.msra.mxu0 0.0
      %3537 = vmatprep.subr.mxu0 0.0
      %3538 = vmatpush2.xpose.msra.mxu0 0.0
      %3539 = vmatprep.subr.mxu0 0.0
      %3540 = vmatpush2.xpose.msra.mxu0 0.0
      %3541 = vmatprep.subr.mxu0 0.0
      %3542 = vmatpush2.xpose.msra.mxu0 0.0
      %3543 = vmatprep.subr.mxu0 0.0
      %3544 = vmatpush2.xpose.msra.mxu0 0.0
      %3545 = vmatprep.subr.mxu0 0.0
      %3546 = vmatpush2.xpose.msra.mxu0 0.0
      %3547 = vmatprep.subr.mxu0 0.0
      %3548 = vmatpush2.xpose.msra.mxu0 0.0
      %3549 = vmatprep.subr.mxu0 0.0
      %3550 = vmatpush2.xpose.msra.mxu0 0.0
      %3551 = vmatprep.subr.mxu0 0.0
      %3552 = vmatpush2.xpose.msra.mxu0 0.0
      %3553 = vmatprep.subr.mxu0 0.0
      %3554 = vmatpush2.xpose.msra.mxu0 0.0
      %3555 = vmatprep.subr.mxu0 0.0
      %3556 = vmatpush2.xpose.msra.mxu0 0.0
      %3557 = vmatprep.subr.mxu0 0.0
      %3558 = vmatpush2.xpose.msra.mxu0 0.0
      %3559 = vmatprep.mubr.f32.mxu0 0.0
      %3560 = vmatmul.mubr.f32.gmra.mxu0 %v3491
      %v3561 = vpop.f32.mrf.mxu0
      %v3562 = vadd.f32 0.0, %v3561
      %v3563 = vpop.f32.mrf.mxu0
      %3564 = vdwg.mxu0
      %3565 = vrot.lane.b32.xlu0 %v1389, 64
      %v3566 = vpop.permute.xlu0 %3565
      %3567 = vrot.lane.b32.xlu0 %v1390, 64
      %v3568 = vpop.permute.xlu0 %3567
      %v3569 = vsel %vm793, %v3566, 0
      %v3571 = vsel %vm793, %v3568, 0
      %3573 = vmatprep.subr.mxu0 0.0
      %3574 = vmatpush1.xpose.msra.mxu0 0.0
      %3575 = vmatprep.subr.mxu0 0.0
      %3576 = vmatpush1.xpose.msra.mxu0 0.0
      %3577 = vmatprep.subr.mxu0 0.0
      %3578 = vmatpush1.xpose.msra.mxu0 0.0
      %3579 = vmatprep.subr.mxu0 0.0
      %3580 = vmatpush1.xpose.msra.mxu0 0.0
      %3581 = vmatprep.subr.mxu0 0.0
      %3582 = vmatpush1.xpose.msra.mxu0 0.0
      %3583 = vmatprep.subr.mxu0 0.0
      %3584 = vmatpush1.xpose.msra.mxu0 0.0
      %3585 = vmatprep.subr.mxu0 0.0
      %3586 = vmatpush1.xpose.msra.mxu0 0.0
      %3587 = vmatprep.subr.mxu0 0.0
      %3588 = vmatpush1.xpose.msra.mxu0 0.0
      %3589 = vmatprep.subr.mxu0 0.0
      %3590 = vmatpush1.xpose.msra.mxu0 0.0
      %3591 = vmatprep.subr.mxu0 0.0
      %3592 = vmatpush1.xpose.msra.mxu0 0.0
      %3593 = vmatprep.subr.mxu0 0.0
      %3594 = vmatpush1.xpose.msra.mxu0 0.0
      %3595 = vmatprep.subr.mxu0 0.0
      %3596 = vmatpush1.xpose.msra.mxu0 0.0
      %3597 = vmatprep.subr.mxu0 0.0
      %3598 = vmatpush1.xpose.msra.mxu0 0.0
      %3599 = vmatprep.subr.mxu0 0.0
      %3600 = vmatpush1.xpose.msra.mxu0 0.0
      %3601 = vmatprep.subr.mxu0 0.0
      %3602 = vmatpush1.xpose.msra.mxu0 0.0
      %3603 = vmatprep.subr.mxu0 0.0
      %3604 = vmatpush1.xpose.msra.mxu0 %v3571
      %3605 = vmatprep.subr.mxu0 0.0
      %3606 = vmatpush2.xpose.msra.mxu0 0.0
      %3607 = vmatprep.subr.mxu0 0.0
      %3608 = vmatpush2.xpose.msra.mxu0 0.0
      %3609 = vmatprep.subr.mxu0 0.0
      %3610 = vmatpush2.xpose.msra.mxu0 0.0
      %3611 = vmatprep.subr.mxu0 0.0
      %3612 = vmatpush2.xpose.msra.mxu0 0.0
      %3613 = vmatprep.subr.mxu0 0.0
      %3614 = vmatpush2.xpose.msra.mxu0 0.0
      %3615 = vmatprep.subr.mxu0 0.0
      %3616 = vmatpush2.xpose.msra.mxu0 0.0
      %3617 = vmatprep.subr.mxu0 0.0
      %3618 = vmatpush2.xpose.msra.mxu0 0.0
      %3619 = vmatprep.subr.mxu0 0.0
      %3620 = vmatpush2.xpose.msra.mxu0 0.0
      %3621 = vmatprep.subr.mxu0 0.0
      %3622 = vmatpush2.xpose.msra.mxu0 0.0
      %3623 = vmatprep.subr.mxu0 0.0
      %3624 = vmatpush2.xpose.msra.mxu0 0.0
      %3625 = vmatprep.subr.mxu0 0.0
      %3626 = vmatpush2.xpose.msra.mxu0 0.0
      %3627 = vmatprep.subr.mxu0 0.0
      %3628 = vmatpush2.xpose.msra.mxu0 0.0
      %3629 = vmatprep.subr.mxu0 0.0
      %3630 = vmatpush2.xpose.msra.mxu0 0.0
      %3631 = vmatprep.subr.mxu0 0.0
      %3632 = vmatpush2.xpose.msra.mxu0 0.0
      %3633 = vmatprep.subr.mxu0 0.0
      %3634 = vmatpush2.xpose.msra.mxu0 0.0
      %3635 = vmatprep.subr.mxu0 0.0
      %3636 = vmatpush2.xpose.msra.mxu0 0.0
      %3637 = vmatprep.mubr.f32.mxu0 0.0
      %3638 = vmatmul.mubr.f32.gmra.mxu0 %v3569
      %v3639 = vpop.f32.mrf.mxu0
      %v3640 = vadd.f32 0.0, %v3639
      %v3641 = vpop.f32.mrf.mxu0
      %3642 = vdwg.mxu0
      %3643 = vrot.lane.b32.xlu0 %v1467, 64
      %v3644 = vpop.permute.xlu0 %3643
      %3645 = vrot.lane.b32.xlu0 %v1468, 64
      %v3646 = vpop.permute.xlu0 %3645
      %v3647 = vsel %vm793, %v3644, 0
      %v3649 = vsel %vm793, %v3646, 0
      %3651 = vmatprep.subr.mxu0 0.0
      %3652 = vmatpush1.xpose.msra.mxu0 0.0
      %3653 = vmatprep.subr.mxu0 0.0
      %3654 = vmatpush1.xpose.msra.mxu0 0.0
      %3655 = vmatprep.subr.mxu0 0.0
      %3656 = vmatpush1.xpose.msra.mxu0 0.0
      %3657 = vmatprep.subr.mxu0 0.0
      %3658 = vmatpush1.xpose.msra.mxu0 0.0
      %3659 = vmatprep.subr.mxu0 0.0
      %3660 = vmatpush1.xpose.msra.mxu0 0.0
      %3661 = vmatprep.subr.mxu0 0.0
      %3662 = vmatpush1.xpose.msra.mxu0 0.0
      %3663 = vmatprep.subr.mxu0 0.0
      %3664 = vmatpush1.xpose.msra.mxu0 0.0
      %3665 = vmatprep.subr.mxu0 0.0
      %3666 = vmatpush1.xpose.msra.mxu0 0.0
      %3667 = vmatprep.subr.mxu0 0.0
      %3668 = vmatpush1.xpose.msra.mxu0 0.0
      %3669 = vmatprep.subr.mxu0 0.0
      %3670 = vmatpush1.xpose.msra.mxu0 0.0
      %3671 = vmatprep.subr.mxu0 0.0
      %3672 = vmatpush1.xpose.msra.mxu0 0.0
      %3673 = vmatprep.subr.mxu0 0.0
      %3674 = vmatpush1.xpose.msra.mxu0 0.0
      %3675 = vmatprep.subr.mxu0 0.0
      %3676 = vmatpush1.xpose.msra.mxu0 0.0
      %3677 = vmatprep.subr.mxu0 0.0
      %3678 = vmatpush1.xpose.msra.mxu0 0.0
      %3679 = vmatprep.subr.mxu0 0.0
      %3680 = vmatpush1.xpose.msra.mxu0 0.0
      %3681 = vmatprep.subr.mxu0 0.0
      %3682 = vmatpush1.xpose.msra.mxu0 %v3649
      %3683 = vmatprep.subr.mxu0 0.0
      %3684 = vmatpush2.xpose.msra.mxu0 0.0
      %3685 = vmatprep.subr.mxu0 0.0
      %3686 = vmatpush2.xpose.msra.mxu0 0.0
      %3687 = vmatprep.subr.mxu0 0.0
      %3688 = vmatpush2.xpose.msra.mxu0 0.0
      %3689 = vmatprep.subr.mxu0 0.0
      %3690 = vmatpush2.xpose.msra.mxu0 0.0
      %3691 = vmatprep.subr.mxu0 0.0
      %3692 = vmatpush2.xpose.msra.mxu0 0.0
      %3693 = vmatprep.subr.mxu0 0.0
      %3694 = vmatpush2.xpose.msra.mxu0 0.0
      %3695 = vmatprep.subr.mxu0 0.0
      %3696 = vmatpush2.xpose.msra.mxu0 0.0
      %3697 = vmatprep.subr.mxu0 0.0
      %3698 = vmatpush2.xpose.msra.mxu0 0.0
      %3699 = vmatprep.subr.mxu0 0.0
      %3700 = vmatpush2.xpose.msra.mxu0 0.0
      %3701 = vmatprep.subr.mxu0 0.0
      %3702 = vmatpush2.xpose.msra.mxu0 0.0
      %3703 = vmatprep.subr.mxu0 0.0
      %3704 = vmatpush2.xpose.msra.mxu0 0.0
      %3705 = vmatprep.subr.mxu0 0.0
      %3706 = vmatpush2.xpose.msra.mxu0 0.0
      %3707 = vmatprep.subr.mxu0 0.0
      %3708 = vmatpush2.xpose.msra.mxu0 0.0
      %3709 = vmatprep.subr.mxu0 0.0
      %3710 = vmatpush2.xpose.msra.mxu0 0.0
      %3711 = vmatprep.subr.mxu0 0.0
      %3712 = vmatpush2.xpose.msra.mxu0 0.0
      %3713 = vmatprep.subr.mxu0 0.0
      %3714 = vmatpush2.xpose.msra.mxu0 0.0
      %3715 = vmatprep.mubr.f32.mxu0 0.0
      %3716 = vmatmul.mubr.f32.gmra.mxu0 %v3647
      %v3717 = vpop.f32.mrf.mxu0
      %v3718 = vadd.f32 0.0, %v3717
      %v3719 = vpop.f32.mrf.mxu0
      %3720 = vdwg.mxu0
      %v3729 = vcombine.low %v3016, %v3094
      %v3730 = vcombine.low %v3172, %v3250
      %v3732 = vunpack.c.l.s4 1983009808
      %v3733 = vunpack.c.0.s8 %v3732
      %v3734 = vlaneseq
      %v3735 = vshrl.u32 %v3734, 7
      %v3736 = vsub.s32 %v3733, %v3735
      %v3737 = vrot.slane %v3729, %v3736
      %v3739 = vunpack.c.l.s4 1983009808
      %v3740 = vunpack.c.0.s8 %v3739
      %v3741 = vlaneseq
      %v3742 = vshrl.u32 %v3741, 7
      %v3743 = vsub.s32 %v3740, %v3742
      %v3744 = vrot.slane %v3730, %v3743
      %v3745 = vcombine.low %v3737, %v3744
      %v3746 = vcombine.low %v3328, %v3406
      %v3747 = vcombine.low %v3484, %v3562
      %v3749 = vunpack.c.l.s4 1983009808
      %v3750 = vunpack.c.0.s8 %v3749
      %v3751 = vlaneseq
      %v3752 = vshrl.u32 %v3751, 7
      %v3753 = vsub.s32 %v3750, %v3752
      %v3754 = vrot.slane %v3746, %v3753
      %v3756 = vunpack.c.l.s4 1983009808
      %v3757 = vunpack.c.0.s8 %v3756
      %v3758 = vlaneseq
      %v3759 = vshrl.u32 %v3758, 7
      %v3760 = vsub.s32 %v3757, %v3759
      %v3761 = vrot.slane %v3747, %v3760
      %v3762 = vcombine.low %v3754, %v3761
      %3767 = vrot.lane.b32.xlu0 %v3640, 2
      %v3768 = vpop.permute.xlu0 %3767
      %3769 = vrot.lane.b32.xlu0 %v3718, 2
      %v3770 = vpop.permute.xlu0 %3769
      %v3773 = vsel %vm1595, %v3745, %v3768
      %v3774 = vsel %vm1595, %v3762, %v3770
      %v3775 = vsel %vm1598, %v3773, -inf
      %3776 = vmax.xlane.f32.xlu0 %v3775
      %v3777 = vpop.xlane.xlu0 %3776
      %v3778 = vsel %vm1598, %v3774, -inf
      %3779 = vmax.xlane.f32.xlu0 %v3778
      %v3780 = vpop.xlane.xlu0 %3779
      %v3781 = vsub.f32 %v3773, %v3777
      %v3782 = vsub.f32 %v3774, %v3780
      %v3783 = vmul.f32 %v3781, 1.442695
      %v3784 = vpow.pop %v3783
      %v3785 = vmul.f32 %v3782, 1.442695
      %v3786 = vpow.pop %v3785
      %v3787 = vsel %vm1598, %v3784, 0.0
      %3788 = vadd.xlane.f32.xlu0 %v3787
      %v3789 = vpop.xlane.xlu0 %3788
      %v3790 = vsel %vm1598, %v3786, 0.0
      %3791 = vadd.xlane.f32.xlu0 %v3790
      %v3792 = vpop.xlane.xlu0 %3791
      %v3793 = vrcp.pop %v3789
      %v3794 = vmul.f32 %v3784, %v3793
      %v3795 = vrcp.pop %v3792
      %v3796 = vmul.f32 %v3786, %v3795
      %3797 = vrot.lane.b32.xlu0 %v685, 64
      %v3798 = vpop.permute.xlu0 %3797
      %3799 = vrot.lane.b32.xlu0 %v687, 64
      %v3800 = vpop.permute.xlu0 %3799
      %v3801 = vsel %vm793, %v3798, 0
      %v3803 = vsel %vm793, %v3800, 0
      %3805 = vmatprep.subr.mxu0 0.0
      %3806 = vmatpush1.xpose.msra.mxu0 0.0
      %3807 = vmatprep.subr.mxu0 0.0
      %3808 = vmatpush1.xpose.msra.mxu0 0.0
      %3809 = vmatprep.subr.mxu0 0.0
      %3810 = vmatpush1.xpose.msra.mxu0 0.0
      %3811 = vmatprep.subr.mxu0 0.0
      %3812 = vmatpush1.xpose.msra.mxu0 0.0
      %3813 = vmatprep.subr.mxu0 0.0
      %3814 = vmatpush1.xpose.msra.mxu0 0.0
      %3815 = vmatprep.subr.mxu0 0.0
      %3816 = vmatpush1.xpose.msra.mxu0 0.0
      %3817 = vmatprep.subr.mxu0 0.0
      %3818 = vmatpush1.xpose.msra.mxu0 0.0
      %3819 = vmatprep.subr.mxu0 0.0
      %3820 = vmatpush1.xpose.msra.mxu0 0.0
      %3821 = vmatprep.subr.mxu0 0.0
      %3822 = vmatpush1.xpose.msra.mxu0 0.0
      %3823 = vmatprep.subr.mxu0 0.0
      %3824 = vmatpush1.xpose.msra.mxu0 0.0
      %3825 = vmatprep.subr.mxu0 0.0
      %3826 = vmatpush1.xpose.msra.mxu0 0.0
      %3827 = vmatprep.subr.mxu0 0.0
      %3828 = vmatpush1.xpose.msra.mxu0 0.0
      %3829 = vmatprep.subr.mxu0 0.0
      %3830 = vmatpush1.xpose.msra.mxu0 0.0
      %3831 = vmatprep.subr.mxu0 0.0
      %3832 = vmatpush1.xpose.msra.mxu0 0.0
      %3833 = vmatprep.subr.mxu0 0.0
      %3834 = vmatpush1.xpose.msra.mxu0 0.0
      %3835 = vmatprep.subr.mxu0 0.0
      %3836 = vmatpush1.xpose.msra.mxu0 %v3803
      %3837 = vmatprep.subr.mxu0 0.0
      %3838 = vmatpush2.xpose.msra.mxu0 0.0
      %3839 = vmatprep.subr.mxu0 0.0
      %3840 = vmatpush2.xpose.msra.mxu0 0.0
      %3841 = vmatprep.subr.mxu0 0.0
      %3842 = vmatpush2.xpose.msra.mxu0 0.0
      %3843 = vmatprep.subr.mxu0 0.0
      %3844 = vmatpush2.xpose.msra.mxu0 0.0
      %3845 = vmatprep.subr.mxu0 0.0
      %3846 = vmatpush2.xpose.msra.mxu0 0.0
      %3847 = vmatprep.subr.mxu0 0.0
      %3848 = vmatpush2.xpose.msra.mxu0 0.0
      %3849 = vmatprep.subr.mxu0 0.0
      %3850 = vmatpush2.xpose.msra.mxu0 0.0
      %3851 = vmatprep.subr.mxu0 0.0
      %3852 = vmatpush2.xpose.msra.mxu0 0.0
      %3853 = vmatprep.subr.mxu0 0.0
      %3854 = vmatpush2.xpose.msra.mxu0 0.0
      %3855 = vmatprep.subr.mxu0 0.0
      %3856 = vmatpush2.xpose.msra.mxu0 0.0
      %3857 = vmatprep.subr.mxu0 0.0
      %3858 = vmatpush2.xpose.msra.mxu0 0.0
      %3859 = vmatprep.subr.mxu0 0.0
      %3860 = vmatpush2.xpose.msra.mxu0 0.0
      %3861 = vmatprep.subr.mxu0 0.0
      %3862 = vmatpush2.xpose.msra.mxu0 0.0
      %3863 = vmatprep.subr.mxu0 0.0
      %3864 = vmatpush2.xpose.msra.mxu0 0.0
      %3865 = vmatprep.subr.mxu0 0.0
      %3866 = vmatpush2.xpose.msra.mxu0 0.0
      %3867 = vmatprep.subr.mxu0 0.0
      %3868 = vmatpush2.xpose.msra.mxu0 0.0
      %3869 = vmatprep.mubr.f32.mxu0 0.0
      %3870 = vmatmul.mubr.f32.gmra.mxu0 %v3801
      %v3871 = vpop.f32.mrf.mxu0
      %v3872 = vadd.f32 0.0, %v3871
      %v3873 = vpop.f32.mrf.mxu0
      %3874 = vdwg.mxu0
      %3875 = vrot.lane.b32.xlu0 %v686, 64
      %v3876 = vpop.permute.xlu0 %3875
      %3877 = vrot.lane.b32.xlu0 %v688, 64
      %v3878 = vpop.permute.xlu0 %3877
      %v3879 = vsel %vm793, %v3876, 0
      %v3881 = vsel %vm793, %v3878, 0
      %3883 = vmatprep.subr.mxu0 0.0
      %3884 = vmatpush1.xpose.msra.mxu0 0.0
      %3885 = vmatprep.subr.mxu0 0.0
      %3886 = vmatpush1.xpose.msra.mxu0 0.0
      %3887 = vmatprep.subr.mxu0 0.0
      %3888 = vmatpush1.xpose.msra.mxu0 0.0
      %3889 = vmatprep.subr.mxu0 0.0
      %3890 = vmatpush1.xpose.msra.mxu0 0.0
      %3891 = vmatprep.subr.mxu0 0.0
      %3892 = vmatpush1.xpose.msra.mxu0 0.0
      %3893 = vmatprep.subr.mxu0 0.0
      %3894 = vmatpush1.xpose.msra.mxu0 0.0
      %3895 = vmatprep.subr.mxu0 0.0
      %3896 = vmatpush1.xpose.msra.mxu0 0.0
      %3897 = vmatprep.subr.mxu0 0.0
      %3898 = vmatpush1.xpose.msra.mxu0 0.0
      %3899 = vmatprep.subr.mxu0 0.0
      %3900 = vmatpush1.xpose.msra.mxu0 0.0
      %3901 = vmatprep.subr.mxu0 0.0
      %3902 = vmatpush1.xpose.msra.mxu0 0.0
      %3903 = vmatprep.subr.mxu0 0.0
      %3904 = vmatpush1.xpose.msra.mxu0 0.0
      %3905 = vmatprep.subr.mxu0 0.0
      %3906 = vmatpush1.xpose.msra.mxu0 0.0
      %3907 = vmatprep.subr.mxu0 0.0
      %3908 = vmatpush1.xpose.msra.mxu0 0.0
      %3909 = vmatprep.subr.mxu0 0.0
      %3910 = vmatpush1.xpose.msra.mxu0 0.0
      %3911 = vmatprep.subr.mxu0 0.0
      %3912 = vmatpush1.xpose.msra.mxu0 0.0
      %3913 = vmatprep.subr.mxu0 0.0
      %3914 = vmatpush1.xpose.msra.mxu0 %v3881
      %3915 = vmatprep.subr.mxu0 0.0
      %3916 = vmatpush2.xpose.msra.mxu0 0.0
      %3917 = vmatprep.subr.mxu0 0.0
      %3918 = vmatpush2.xpose.msra.mxu0 0.0
      %3919 = vmatprep.subr.mxu0 0.0
      %3920 = vmatpush2.xpose.msra.mxu0 0.0
      %3921 = vmatprep.subr.mxu0 0.0
      %3922 = vmatpush2.xpose.msra.mxu0 0.0
      %3923 = vmatprep.subr.mxu0 0.0
      %3924 = vmatpush2.xpose.msra.mxu0 0.0
      %3925 = vmatprep.subr.mxu0 0.0
      %3926 = vmatpush2.xpose.msra.mxu0 0.0
      %3927 = vmatprep.subr.mxu0 0.0
      %3928 = vmatpush2.xpose.msra.mxu0 0.0
      %3929 = vmatprep.subr.mxu0 0.0
      %3930 = vmatpush2.xpose.msra.mxu0 0.0
      %3931 = vmatprep.subr.mxu0 0.0
      %3932 = vmatpush2.xpose.msra.mxu0 0.0
      %3933 = vmatprep.subr.mxu0 0.0
      %3934 = vmatpush2.xpose.msra.mxu0 0.0
      %3935 = vmatprep.subr.mxu0 0.0
      %3936 = vmatpush2.xpose.msra.mxu0 0.0
      %3937 = vmatprep.subr.mxu0 0.0
      %3938 = vmatpush2.xpose.msra.mxu0 0.0
      %3939 = vmatprep.subr.mxu0 0.0
      %3940 = vmatpush2.xpose.msra.mxu0 0.0
      %3941 = vmatprep.subr.mxu0 0.0
      %3942 = vmatpush2.xpose.msra.mxu0 0.0
      %3943 = vmatprep.subr.mxu0 0.0
      %3944 = vmatpush2.xpose.msra.mxu0 0.0
      %3945 = vmatprep.subr.mxu0 0.0
      %3946 = vmatpush2.xpose.msra.mxu0 0.0
      %3947 = vmatprep.mubr.f32.mxu0 0.0
      %3948 = vmatmul.mubr.f32.gmra.mxu0 %v3879
      %v3949 = vpop.f32.mrf.mxu0
      %v3950 = vadd.f32 0.0, %v3949
      %v3951 = vpop.f32.mrf.mxu0
      %3952 = vdwg.mxu0
      %v3953 = vsel %vm1598, %v3872, -inf
      %3954 = vmax.xlane.f32.xlu0 %v3953
      %v3955 = vpop.xlane.xlu0 %3954
      %v3956 = vsel %vm1598, %v3950, -inf
      %3957 = vmax.xlane.f32.xlu0 %v3956
      %v3958 = vpop.xlane.xlu0 %3957
      %v3959 = vsub.f32 %v3872, %v3955
      %v3960 = vsub.f32 %v3950, %v3958
      %v3961 = vmul.f32 %v3959, 1.442695
      %v3962 = vpow.pop %v3961
      %v3963 = vmul.f32 %v3960, 1.442695
      %v3964 = vpow.pop %v3963
      %v3965 = vsel %vm1598, %v3962, 0.0
      %3966 = vadd.xlane.f32.xlu0 %v3965
      %v3967 = vpop.xlane.xlu0 %3966
      %v3968 = vsel %vm1598, %v3964, 0.0
      %3969 = vadd.xlane.f32.xlu0 %v3968
      %v3970 = vpop.xlane.xlu0 %3969
      %v3971 = vrcp.pop %v3967
      %v3972 = vmul.f32 %v3962, %v3971
      %v3973 = vrcp.pop %v3970
      %v3974 = vmul.f32 %v3964, %v3973
      %3975 = vrot.lane.b32.xlu0 %v1801, 32
      %v3976 = vpop.permute.xlu0 %3975
      %3977 = vrot.lane.b32.xlu0 %v1810, 32
      %v3978 = vpop.permute.xlu0 %3977
      %v3979 = vsel %vm793, %v3976, 0
      %v3981 = vsel %vm793, %v3978, 0
      %3983 = vmatprep.subr.mxu0 0.0
      %3984 = vmatpush1.xpose.msra.mxu0 0.0
      %3985 = vmatprep.subr.mxu0 0.0
      %3986 = vmatpush1.xpose.msra.mxu0 0.0
      %3987 = vmatprep.subr.mxu0 0.0
      %3988 = vmatpush1.xpose.msra.mxu0 0.0
      %3989 = vmatprep.subr.mxu0 0.0
      %3990 = vmatpush1.xpose.msra.mxu0 0.0
      %3991 = vmatprep.subr.mxu0 0.0
      %3992 = vmatpush1.xpose.msra.mxu0 0.0
      %3993 = vmatprep.subr.mxu0 0.0
      %3994 = vmatpush1.xpose.msra.mxu0 0.0
      %3995 = vmatprep.subr.mxu0 0.0
      %3996 = vmatpush1.xpose.msra.mxu0 0.0
      %3997 = vmatprep.subr.mxu0 0.0
      %3998 = vmatpush1.xpose.msra.mxu0 0.0
      %3999 = vmatprep.subr.mxu0 0.0
      %4000 = vmatpush1.xpose.msra.mxu0 0.0
      %4001 = vmatprep.subr.mxu0 0.0
      %4002 = vmatpush1.xpose.msra.mxu0 0.0
      %4003 = vmatprep.subr.mxu0 0.0
      %4004 = vmatpush1.xpose.msra.mxu0 0.0
      %4005 = vmatprep.subr.mxu0 0.0
      %4006 = vmatpush1.xpose.msra.mxu0 0.0
      %4007 = vmatprep.subr.mxu0 0.0
      %4008 = vmatpush1.xpose.msra.mxu0 0.0
      %4009 = vmatprep.subr.mxu0 0.0
      %4010 = vmatpush1.xpose.msra.mxu0 0.0
      %4011 = vmatprep.subr.mxu0 0.0
      %4012 = vmatpush1.xpose.msra.mxu0 0.0
      %4013 = vmatprep.subr.mxu0 0.0
      %4014 = vmatpush1.xpose.msra.mxu0 %v3981
      %4015 = vmatprep.subr.mxu0 0.0
      %4016 = vmatpush2.xpose.msra.mxu0 0.0
      %4017 = vmatprep.subr.mxu0 0.0
      %4018 = vmatpush2.xpose.msra.mxu0 0.0
      %4019 = vmatprep.subr.mxu0 0.0
      %4020 = vmatpush2.xpose.msra.mxu0 0.0
      %4021 = vmatprep.subr.mxu0 0.0
      %4022 = vmatpush2.xpose.msra.mxu0 0.0
      %4023 = vmatprep.subr.mxu0 0.0
      %4024 = vmatpush2.xpose.msra.mxu0 0.0
      %4025 = vmatprep.subr.mxu0 0.0
      %4026 = vmatpush2.xpose.msra.mxu0 0.0
      %4027 = vmatprep.subr.mxu0 0.0
      %4028 = vmatpush2.xpose.msra.mxu0 0.0
      %4029 = vmatprep.subr.mxu0 0.0
      %4030 = vmatpush2.xpose.msra.mxu0 0.0
      %4031 = vmatprep.subr.mxu0 0.0
      %4032 = vmatpush2.xpose.msra.mxu0 0.0
      %4033 = vmatprep.subr.mxu0 0.0
      %4034 = vmatpush2.xpose.msra.mxu0 0.0
      %4035 = vmatprep.subr.mxu0 0.0
      %4036 = vmatpush2.xpose.msra.mxu0 0.0
      %4037 = vmatprep.subr.mxu0 0.0
      %4038 = vmatpush2.xpose.msra.mxu0 0.0
      %4039 = vmatprep.subr.mxu0 0.0
      %4040 = vmatpush2.xpose.msra.mxu0 0.0
      %4041 = vmatprep.subr.mxu0 0.0
      %4042 = vmatpush2.xpose.msra.mxu0 0.0
      %4043 = vmatprep.subr.mxu0 0.0
      %4044 = vmatpush2.xpose.msra.mxu0 0.0
      %4045 = vmatprep.subr.mxu0 0.0
      %4046 = vmatpush2.xpose.msra.mxu0 0.0
      %4047 = vmatprep.mubr.f32.mxu0 0.0
      %4048 = vmatmul.mubr.f32.gmra.mxu0 %v3979
      %v4049 = vpop.f32.mrf.mxu0
      %v4050 = vadd.f32 0.0, %v4049
      %v4051 = vpop.f32.mrf.mxu0
      %4052 = vdwg.mxu0
      %4053 = vrot.lane.b32.xlu0 %v1893, 32
      %v4054 = vpop.permute.xlu0 %4053
      %4055 = vrot.lane.b32.xlu0 %v1902, 32
      %v4056 = vpop.permute.xlu0 %4055
      %v4057 = vsel %vm793, %v4054, 0
      %v4059 = vsel %vm793, %v4056, 0
      %4061 = vmatprep.subr.mxu0 0.0
      %4062 = vmatpush1.xpose.msra.mxu0 0.0
      %4063 = vmatprep.subr.mxu0 0.0
      %4064 = vmatpush1.xpose.msra.mxu0 0.0
      %4065 = vmatprep.subr.mxu0 0.0
      %4066 = vmatpush1.xpose.msra.mxu0 0.0
      %4067 = vmatprep.subr.mxu0 0.0
      %4068 = vmatpush1.xpose.msra.mxu0 0.0
      %4069 = vmatprep.subr.mxu0 0.0
      %4070 = vmatpush1.xpose.msra.mxu0 0.0
      %4071 = vmatprep.subr.mxu0 0.0
      %4072 = vmatpush1.xpose.msra.mxu0 0.0
      %4073 = vmatprep.subr.mxu0 0.0
      %4074 = vmatpush1.xpose.msra.mxu0 0.0
      %4075 = vmatprep.subr.mxu0 0.0
      %4076 = vmatpush1.xpose.msra.mxu0 0.0
      %4077 = vmatprep.subr.mxu0 0.0
      %4078 = vmatpush1.xpose.msra.mxu0 0.0
      %4079 = vmatprep.subr.mxu0 0.0
      %4080 = vmatpush1.xpose.msra.mxu0 0.0
      %4081 = vmatprep.subr.mxu0 0.0
      %4082 = vmatpush1.xpose.msra.mxu0 0.0
      %4083 = vmatprep.subr.mxu0 0.0
      %4084 = vmatpush1.xpose.msra.mxu0 0.0
      %4085 = vmatprep.subr.mxu0 0.0
      %4086 = vmatpush1.xpose.msra.mxu0 0.0
      %4087 = vmatprep.subr.mxu0 0.0
      %4088 = vmatpush1.xpose.msra.mxu0 0.0
      %4089 = vmatprep.subr.mxu0 0.0
      %4090 = vmatpush1.xpose.msra.mxu0 0.0
      %4091 = vmatprep.subr.mxu0 0.0
      %4092 = vmatpush1.xpose.msra.mxu0 %v4059
      %4093 = vmatprep.subr.mxu0 0.0
      %4094 = vmatpush2.xpose.msra.mxu0 0.0
      %4095 = vmatprep.subr.mxu0 0.0
      %4096 = vmatpush2.xpose.msra.mxu0 0.0
      %4097 = vmatprep.subr.mxu0 0.0
      %4098 = vmatpush2.xpose.msra.mxu0 0.0
      %4099 = vmatprep.subr.mxu0 0.0
      %4100 = vmatpush2.xpose.msra.mxu0 0.0
      %4101 = vmatprep.subr.mxu0 0.0
      %4102 = vmatpush2.xpose.msra.mxu0 0.0
      %4103 = vmatprep.subr.mxu0 0.0
      %4104 = vmatpush2.xpose.msra.mxu0 0.0
      %4105 = vmatprep.subr.mxu0 0.0
      %4106 = vmatpush2.xpose.msra.mxu0 0.0
      %4107 = vmatprep.subr.mxu0 0.0
      %4108 = vmatpush2.xpose.msra.mxu0 0.0
      %4109 = vmatprep.subr.mxu0 0.0
      %4110 = vmatpush2.xpose.msra.mxu0 0.0
      %4111 = vmatprep.subr.mxu0 0.0
      %4112 = vmatpush2.xpose.msra.mxu0 0.0
      %4113 = vmatprep.subr.mxu0 0.0
      %4114 = vmatpush2.xpose.msra.mxu0 0.0
      %4115 = vmatprep.subr.mxu0 0.0
      %4116 = vmatpush2.xpose.msra.mxu0 0.0
      %4117 = vmatprep.subr.mxu0 0.0
      %4118 = vmatpush2.xpose.msra.mxu0 0.0
      %4119 = vmatprep.subr.mxu0 0.0
      %4120 = vmatpush2.xpose.msra.mxu0 0.0
      %4121 = vmatprep.subr.mxu0 0.0
      %4122 = vmatpush2.xpose.msra.mxu0 0.0
      %4123 = vmatprep.subr.mxu0 0.0
      %4124 = vmatpush2.xpose.msra.mxu0 0.0
      %4125 = vmatprep.mubr.f32.mxu0 0.0
      %4126 = vmatmul.mubr.f32.gmra.mxu0 %v4057
      %v4127 = vpop.f32.mrf.mxu0
      %v4128 = vadd.f32 0.0, %v4127
      %v4129 = vpop.f32.mrf.mxu0
      %4130 = vdwg.mxu0
      %4131 = vrot.lane.b32.xlu0 %v1985, 32
      %v4132 = vpop.permute.xlu0 %4131
      %4133 = vrot.lane.b32.xlu0 %v1994, 32
      %v4134 = vpop.permute.xlu0 %4133
      %v4135 = vsel %vm793, %v4132, 0
      %v4137 = vsel %vm793, %v4134, 0
      %4139 = vmatprep.subr.mxu0 0.0
      %4140 = vmatpush1.xpose.msra.mxu0 0.0
      %4141 = vmatprep.subr.mxu0 0.0
      %4142 = vmatpush1.xpose.msra.mxu0 0.0
      %4143 = vmatprep.subr.mxu0 0.0
      %4144 = vmatpush1.xpose.msra.mxu0 0.0
      %4145 = vmatprep.subr.mxu0 0.0
      %4146 = vmatpush1.xpose.msra.mxu0 0.0
      %4147 = vmatprep.subr.mxu0 0.0
      %4148 = vmatpush1.xpose.msra.mxu0 0.0
      %4149 = vmatprep.subr.mxu0 0.0
      %4150 = vmatpush1.xpose.msra.mxu0 0.0
      %4151 = vmatprep.subr.mxu0 0.0
      %4152 = vmatpush1.xpose.msra.mxu0 0.0
      %4153 = vmatprep.subr.mxu0 0.0
      %4154 = vmatpush1.xpose.msra.mxu0 0.0
      %4155 = vmatprep.subr.mxu0 0.0
      %4156 = vmatpush1.xpose.msra.mxu0 0.0
      %4157 = vmatprep.subr.mxu0 0.0
      %4158 = vmatpush1.xpose.msra.mxu0 0.0
      %4159 = vmatprep.subr.mxu0 0.0
      %4160 = vmatpush1.xpose.msra.mxu0 0.0
      %4161 = vmatprep.subr.mxu0 0.0
      %4162 = vmatpush1.xpose.msra.mxu0 0.0
      %4163 = vmatprep.subr.mxu0 0.0
      %4164 = vmatpush1.xpose.msra.mxu0 0.0
      %4165 = vmatprep.subr.mxu0 0.0
      %4166 = vmatpush1.xpose.msra.mxu0 0.0
      %4167 = vmatprep.subr.mxu0 0.0
      %4168 = vmatpush1.xpose.msra.mxu0 0.0
      %4169 = vmatprep.subr.mxu0 0.0
      %4170 = vmatpush1.xpose.msra.mxu0 %v4137
      %4171 = vmatprep.subr.mxu0 0.0
      %4172 = vmatpush2.xpose.msra.mxu0 0.0
      %4173 = vmatprep.subr.mxu0 0.0
      %4174 = vmatpush2.xpose.msra.mxu0 0.0
      %4175 = vmatprep.subr.mxu0 0.0
      %4176 = vmatpush2.xpose.msra.mxu0 0.0
      %4177 = vmatprep.subr.mxu0 0.0
      %4178 = vmatpush2.xpose.msra.mxu0 0.0
      %4179 = vmatprep.subr.mxu0 0.0
      %4180 = vmatpush2.xpose.msra.mxu0 0.0
      %4181 = vmatprep.subr.mxu0 0.0
      %4182 = vmatpush2.xpose.msra.mxu0 0.0
      %4183 = vmatprep.subr.mxu0 0.0
      %4184 = vmatpush2.xpose.msra.mxu0 0.0
      %4185 = vmatprep.subr.mxu0 0.0
      %4186 = vmatpush2.xpose.msra.mxu0 0.0
      %4187 = vmatprep.subr.mxu0 0.0
      %4188 = vmatpush2.xpose.msra.mxu0 0.0
      %4189 = vmatprep.subr.mxu0 0.0
      %4190 = vmatpush2.xpose.msra.mxu0 0.0
      %4191 = vmatprep.subr.mxu0 0.0
      %4192 = vmatpush2.xpose.msra.mxu0 0.0
      %4193 = vmatprep.subr.mxu0 0.0
      %4194 = vmatpush2.xpose.msra.mxu0 0.0
      %4195 = vmatprep.subr.mxu0 0.0
      %4196 = vmatpush2.xpose.msra.mxu0 0.0
      %4197 = vmatprep.subr.mxu0 0.0
      %4198 = vmatpush2.xpose.msra.mxu0 0.0
      %4199 = vmatprep.subr.mxu0 0.0
      %4200 = vmatpush2.xpose.msra.mxu0 0.0
      %4201 = vmatprep.subr.mxu0 0.0
      %4202 = vmatpush2.xpose.msra.mxu0 0.0
      %4203 = vmatprep.mubr.f32.mxu0 0.0
      %4204 = vmatmul.mubr.f32.gmra.mxu0 %v4135
      %v4205 = vpop.f32.mrf.mxu0
      %v4206 = vadd.f32 0.0, %v4205
      %v4207 = vpop.f32.mrf.mxu0
      %4208 = vdwg.mxu0
      %4209 = vrot.lane.b32.xlu0 %v2077, 32
      %v4210 = vpop.permute.xlu0 %4209
      %4211 = vrot.lane.b32.xlu0 %v2086, 32
      %v4212 = vpop.permute.xlu0 %4211
      %v4213 = vsel %vm793, %v4210, 0
      %v4215 = vsel %vm793, %v4212, 0
      %4217 = vmatprep.subr.mxu0 0.0
      %4218 = vmatpush1.xpose.msra.mxu0 0.0
      %4219 = vmatprep.subr.mxu0 0.0
      %4220 = vmatpush1.xpose.msra.mxu0 0.0
      %4221 = vmatprep.subr.mxu0 0.0
      %4222 = vmatpush1.xpose.msra.mxu0 0.0
      %4223 = vmatprep.subr.mxu0 0.0
      %4224 = vmatpush1.xpose.msra.mxu0 0.0
      %4225 = vmatprep.subr.mxu0 0.0
      %4226 = vmatpush1.xpose.msra.mxu0 0.0
      %4227 = vmatprep.subr.mxu0 0.0
      %4228 = vmatpush1.xpose.msra.mxu0 0.0
      %4229 = vmatprep.subr.mxu0 0.0
      %4230 = vmatpush1.xpose.msra.mxu0 0.0
      %4231 = vmatprep.subr.mxu0 0.0
      %4232 = vmatpush1.xpose.msra.mxu0 0.0
      %4233 = vmatprep.subr.mxu0 0.0
      %4234 = vmatpush1.xpose.msra.mxu0 0.0
      %4235 = vmatprep.subr.mxu0 0.0
      %4236 = vmatpush1.xpose.msra.mxu0 0.0
      %4237 = vmatprep.subr.mxu0 0.0
      %4238 = vmatpush1.xpose.msra.mxu0 0.0
      %4239 = vmatprep.subr.mxu0 0.0
      %4240 = vmatpush1.xpose.msra.mxu0 0.0
      %4241 = vmatprep.subr.mxu0 0.0
      %4242 = vmatpush1.xpose.msra.mxu0 0.0
      %4243 = vmatprep.subr.mxu0 0.0
      %4244 = vmatpush1.xpose.msra.mxu0 0.0
      %4245 = vmatprep.subr.mxu0 0.0
      %4246 = vmatpush1.xpose.msra.mxu0 0.0
      %4247 = vmatprep.subr.mxu0 0.0
      %4248 = vmatpush1.xpose.msra.mxu0 %v4215
      %4249 = vmatprep.subr.mxu0 0.0
      %4250 = vmatpush2.xpose.msra.mxu0 0.0
      %4251 = vmatprep.subr.mxu0 0.0
      %4252 = vmatpush2.xpose.msra.mxu0 0.0
      %4253 = vmatprep.subr.mxu0 0.0
      %4254 = vmatpush2.xpose.msra.mxu0 0.0
      %4255 = vmatprep.subr.mxu0 0.0
      %4256 = vmatpush2.xpose.msra.mxu0 0.0
      %4257 = vmatprep.subr.mxu0 0.0
      %4258 = vmatpush2.xpose.msra.mxu0 0.0
      %4259 = vmatprep.subr.mxu0 0.0
      %4260 = vmatpush2.xpose.msra.mxu0 0.0
      %4261 = vmatprep.subr.mxu0 0.0
      %4262 = vmatpush2.xpose.msra.mxu0 0.0
      %4263 = vmatprep.subr.mxu0 0.0
      %4264 = vmatpush2.xpose.msra.mxu0 0.0
      %4265 = vmatprep.subr.mxu0 0.0
      %4266 = vmatpush2.xpose.msra.mxu0 0.0
      %4267 = vmatprep.subr.mxu0 0.0
      %4268 = vmatpush2.xpose.msra.mxu0 0.0
      %4269 = vmatprep.subr.mxu0 0.0
      %4270 = vmatpush2.xpose.msra.mxu0 0.0
      %4271 = vmatprep.subr.mxu0 0.0
      %4272 = vmatpush2.xpose.msra.mxu0 0.0
      %4273 = vmatprep.subr.mxu0 0.0
      %4274 = vmatpush2.xpose.msra.mxu0 0.0
      %4275 = vmatprep.subr.mxu0 0.0
      %4276 = vmatpush2.xpose.msra.mxu0 0.0
      %4277 = vmatprep.subr.mxu0 0.0
      %4278 = vmatpush2.xpose.msra.mxu0 0.0
      %4279 = vmatprep.subr.mxu0 0.0
      %4280 = vmatpush2.xpose.msra.mxu0 0.0
      %4281 = vmatprep.mubr.f32.mxu0 0.0
      %4282 = vmatmul.mubr.f32.gmra.mxu0 %v4213
      %v4283 = vpop.f32.mrf.mxu0
      %v4284 = vadd.f32 0.0, %v4283
      %v4285 = vpop.f32.mrf.mxu0
      %4286 = vdwg.mxu0
      %4287 = vrot.lane.b32.xlu0 %v2169, 32
      %v4288 = vpop.permute.xlu0 %4287
      %4289 = vrot.lane.b32.xlu0 %v2178, 32
      %v4290 = vpop.permute.xlu0 %4289
      %v4291 = vsel %vm793, %v4288, 0
      %v4293 = vsel %vm793, %v4290, 0
      %4295 = vmatprep.subr.mxu0 0.0
      %4296 = vmatpush1.xpose.msra.mxu0 0.0
      %4297 = vmatprep.subr.mxu0 0.0
      %4298 = vmatpush1.xpose.msra.mxu0 0.0
      %4299 = vmatprep.subr.mxu0 0.0
      %4300 = vmatpush1.xpose.msra.mxu0 0.0
      %4301 = vmatprep.subr.mxu0 0.0
      %4302 = vmatpush1.xpose.msra.mxu0 0.0
      %4303 = vmatprep.subr.mxu0 0.0
      %4304 = vmatpush1.xpose.msra.mxu0 0.0
      %4305 = vmatprep.subr.mxu0 0.0
      %4306 = vmatpush1.xpose.msra.mxu0 0.0
      %4307 = vmatprep.subr.mxu0 0.0
      %4308 = vmatpush1.xpose.msra.mxu0 0.0
      %4309 = vmatprep.subr.mxu0 0.0
      %4310 = vmatpush1.xpose.msra.mxu0 0.0
      %4311 = vmatprep.subr.mxu0 0.0
      %4312 = vmatpush1.xpose.msra.mxu0 0.0
      %4313 = vmatprep.subr.mxu0 0.0
      %4314 = vmatpush1.xpose.msra.mxu0 0.0
      %4315 = vmatprep.subr.mxu0 0.0
      %4316 = vmatpush1.xpose.msra.mxu0 0.0
      %4317 = vmatprep.subr.mxu0 0.0
      %4318 = vmatpush1.xpose.msra.mxu0 0.0
      %4319 = vmatprep.subr.mxu0 0.0
      %4320 = vmatpush1.xpose.msra.mxu0 0.0
      %4321 = vmatprep.subr.mxu0 0.0
      %4322 = vmatpush1.xpose.msra.mxu0 0.0
      %4323 = vmatprep.subr.mxu0 0.0
      %4324 = vmatpush1.xpose.msra.mxu0 0.0
      %4325 = vmatprep.subr.mxu0 0.0
      %4326 = vmatpush1.xpose.msra.mxu0 %v4293
      %4327 = vmatprep.subr.mxu0 0.0
      %4328 = vmatpush2.xpose.msra.mxu0 0.0
      %4329 = vmatprep.subr.mxu0 0.0
      %4330 = vmatpush2.xpose.msra.mxu0 0.0
      %4331 = vmatprep.subr.mxu0 0.0
      %4332 = vmatpush2.xpose.msra.mxu0 0.0
      %4333 = vmatprep.subr.mxu0 0.0
      %4334 = vmatpush2.xpose.msra.mxu0 0.0
      %4335 = vmatprep.subr.mxu0 0.0
      %4336 = vmatpush2.xpose.msra.mxu0 0.0
      %4337 = vmatprep.subr.mxu0 0.0
      %4338 = vmatpush2.xpose.msra.mxu0 0.0
      %4339 = vmatprep.subr.mxu0 0.0
      %4340 = vmatpush2.xpose.msra.mxu0 0.0
      %4341 = vmatprep.subr.mxu0 0.0
      %4342 = vmatpush2.xpose.msra.mxu0 0.0
      %4343 = vmatprep.subr.mxu0 0.0
      %4344 = vmatpush2.xpose.msra.mxu0 0.0
      %4345 = vmatprep.subr.mxu0 0.0
      %4346 = vmatpush2.xpose.msra.mxu0 0.0
      %4347 = vmatprep.subr.mxu0 0.0
      %4348 = vmatpush2.xpose.msra.mxu0 0.0
      %4349 = vmatprep.subr.mxu0 0.0
      %4350 = vmatpush2.xpose.msra.mxu0 0.0
      %4351 = vmatprep.subr.mxu0 0.0
      %4352 = vmatpush2.xpose.msra.mxu0 0.0
      %4353 = vmatprep.subr.mxu0 0.0
      %4354 = vmatpush2.xpose.msra.mxu0 0.0
      %4355 = vmatprep.subr.mxu0 0.0
      %4356 = vmatpush2.xpose.msra.mxu0 0.0
      %4357 = vmatprep.subr.mxu0 0.0
      %4358 = vmatpush2.xpose.msra.mxu0 0.0
      %4359 = vmatprep.mubr.f32.mxu0 0.0
      %4360 = vmatmul.mubr.f32.gmra.mxu0 %v4291
      %v4361 = vpop.f32.mrf.mxu0
      %v4362 = vadd.f32 0.0, %v4361
      %v4363 = vpop.f32.mrf.mxu0
      %4364 = vdwg.mxu0
      %4365 = vrot.lane.b32.xlu0 %v2261, 32
      %v4366 = vpop.permute.xlu0 %4365
      %4367 = vrot.lane.b32.xlu0 %v2270, 32
      %v4368 = vpop.permute.xlu0 %4367
      %v4369 = vsel %vm793, %v4366, 0
      %v4371 = vsel %vm793, %v4368, 0
      %4373 = vmatprep.subr.mxu0 0.0
      %4374 = vmatpush1.xpose.msra.mxu0 0.0
      %4375 = vmatprep.subr.mxu0 0.0
      %4376 = vmatpush1.xpose.msra.mxu0 0.0
      %4377 = vmatprep.subr.mxu0 0.0
      %4378 = vmatpush1.xpose.msra.mxu0 0.0
      %4379 = vmatprep.subr.mxu0 0.0
      %4380 = vmatpush1.xpose.msra.mxu0 0.0
      %4381 = vmatprep.subr.mxu0 0.0
      %4382 = vmatpush1.xpose.msra.mxu0 0.0
      %4383 = vmatprep.subr.mxu0 0.0
      %4384 = vmatpush1.xpose.msra.mxu0 0.0
      %4385 = vmatprep.subr.mxu0 0.0
      %4386 = vmatpush1.xpose.msra.mxu0 0.0
      %4387 = vmatprep.subr.mxu0 0.0
      %4388 = vmatpush1.xpose.msra.mxu0 0.0
      %4389 = vmatprep.subr.mxu0 0.0
      %4390 = vmatpush1.xpose.msra.mxu0 0.0
      %4391 = vmatprep.subr.mxu0 0.0
      %4392 = vmatpush1.xpose.msra.mxu0 0.0
      %4393 = vmatprep.subr.mxu0 0.0
      %4394 = vmatpush1.xpose.msra.mxu0 0.0
      %4395 = vmatprep.subr.mxu0 0.0
      %4396 = vmatpush1.xpose.msra.mxu0 0.0
      %4397 = vmatprep.subr.mxu0 0.0
      %4398 = vmatpush1.xpose.msra.mxu0 0.0
      %4399 = vmatprep.subr.mxu0 0.0
      %4400 = vmatpush1.xpose.msra.mxu0 0.0
      %4401 = vmatprep.subr.mxu0 0.0
      %4402 = vmatpush1.xpose.msra.mxu0 0.0
      %4403 = vmatprep.subr.mxu0 0.0
      %4404 = vmatpush1.xpose.msra.mxu0 %v4371
      %4405 = vmatprep.subr.mxu0 0.0
      %4406 = vmatpush2.xpose.msra.mxu0 0.0
      %4407 = vmatprep.subr.mxu0 0.0
      %4408 = vmatpush2.xpose.msra.mxu0 0.0
      %4409 = vmatprep.subr.mxu0 0.0
      %4410 = vmatpush2.xpose.msra.mxu0 0.0
      %4411 = vmatprep.subr.mxu0 0.0
      %4412 = vmatpush2.xpose.msra.mxu0 0.0
      %4413 = vmatprep.subr.mxu0 0.0
      %4414 = vmatpush2.xpose.msra.mxu0 0.0
      %4415 = vmatprep.subr.mxu0 0.0
      %4416 = vmatpush2.xpose.msra.mxu0 0.0
      %4417 = vmatprep.subr.mxu0 0.0
      %4418 = vmatpush2.xpose.msra.mxu0 0.0
      %4419 = vmatprep.subr.mxu0 0.0
      %4420 = vmatpush2.xpose.msra.mxu0 0.0
      %4421 = vmatprep.subr.mxu0 0.0
      %4422 = vmatpush2.xpose.msra.mxu0 0.0
      %4423 = vmatprep.subr.mxu0 0.0
      %4424 = vmatpush2.xpose.msra.mxu0 0.0
      %4425 = vmatprep.subr.mxu0 0.0
      %4426 = vmatpush2.xpose.msra.mxu0 0.0
      %4427 = vmatprep.subr.mxu0 0.0
      %4428 = vmatpush2.xpose.msra.mxu0 0.0
      %4429 = vmatprep.subr.mxu0 0.0
      %4430 = vmatpush2.xpose.msra.mxu0 0.0
      %4431 = vmatprep.subr.mxu0 0.0
      %4432 = vmatpush2.xpose.msra.mxu0 0.0
      %4433 = vmatprep.subr.mxu0 0.0
      %4434 = vmatpush2.xpose.msra.mxu0 0.0
      %4435 = vmatprep.subr.mxu0 0.0
      %4436 = vmatpush2.xpose.msra.mxu0 0.0
      %4437 = vmatprep.mubr.f32.mxu0 0.0
      %4438 = vmatmul.mubr.f32.gmra.mxu0 %v4369
      %v4439 = vpop.f32.mrf.mxu0
      %v4440 = vadd.f32 0.0, %v4439
      %v4441 = vpop.f32.mrf.mxu0
      %4442 = vdwg.mxu0
      %4443 = vrot.lane.b32.xlu0 %v2353, 32
      %v4444 = vpop.permute.xlu0 %4443
      %4445 = vrot.lane.b32.xlu0 %v2362, 32
      %v4446 = vpop.permute.xlu0 %4445
      %v4447 = vsel %vm793, %v4444, 0
      %v4449 = vsel %vm793, %v4446, 0
      %4451 = vmatprep.subr.mxu0 0.0
      %4452 = vmatpush1.xpose.msra.mxu0 0.0
      %4453 = vmatprep.subr.mxu0 0.0
      %4454 = vmatpush1.xpose.msra.mxu0 0.0
      %4455 = vmatprep.subr.mxu0 0.0
      %4456 = vmatpush1.xpose.msra.mxu0 0.0
      %4457 = vmatprep.subr.mxu0 0.0
      %4458 = vmatpush1.xpose.msra.mxu0 0.0
      %4459 = vmatprep.subr.mxu0 0.0
      %4460 = vmatpush1.xpose.msra.mxu0 0.0
      %4461 = vmatprep.subr.mxu0 0.0
      %4462 = vmatpush1.xpose.msra.mxu0 0.0
      %4463 = vmatprep.subr.mxu0 0.0
      %4464 = vmatpush1.xpose.msra.mxu0 0.0
      %4465 = vmatprep.subr.mxu0 0.0
      %4466 = vmatpush1.xpose.msra.mxu0 0.0
      %4467 = vmatprep.subr.mxu0 0.0
      %4468 = vmatpush1.xpose.msra.mxu0 0.0
      %4469 = vmatprep.subr.mxu0 0.0
      %4470 = vmatpush1.xpose.msra.mxu0 0.0
      %4471 = vmatprep.subr.mxu0 0.0
      %4472 = vmatpush1.xpose.msra.mxu0 0.0
      %4473 = vmatprep.subr.mxu0 0.0
      %4474 = vmatpush1.xpose.msra.mxu0 0.0
      %4475 = vmatprep.subr.mxu0 0.0
      %4476 = vmatpush1.xpose.msra.mxu0 0.0
      %4477 = vmatprep.subr.mxu0 0.0
      %4478 = vmatpush1.xpose.msra.mxu0 0.0
      %4479 = vmatprep.subr.mxu0 0.0
      %4480 = vmatpush1.xpose.msra.mxu0 0.0
      %4481 = vmatprep.subr.mxu0 0.0
      %4482 = vmatpush1.xpose.msra.mxu0 %v4449
      %4483 = vmatprep.subr.mxu0 0.0
      %4484 = vmatpush2.xpose.msra.mxu0 0.0
      %4485 = vmatprep.subr.mxu0 0.0
      %4486 = vmatpush2.xpose.msra.mxu0 0.0
      %4487 = vmatprep.subr.mxu0 0.0
      %4488 = vmatpush2.xpose.msra.mxu0 0.0
      %4489 = vmatprep.subr.mxu0 0.0
      %4490 = vmatpush2.xpose.msra.mxu0 0.0
      %4491 = vmatprep.subr.mxu0 0.0
      %4492 = vmatpush2.xpose.msra.mxu0 0.0
      %4493 = vmatprep.subr.mxu0 0.0
      %4494 = vmatpush2.xpose.msra.mxu0 0.0
      %4495 = vmatprep.subr.mxu0 0.0
      %4496 = vmatpush2.xpose.msra.mxu0 0.0
      %4497 = vmatprep.subr.mxu0 0.0
      %4498 = vmatpush2.xpose.msra.mxu0 0.0
      %4499 = vmatprep.subr.mxu0 0.0
      %4500 = vmatpush2.xpose.msra.mxu0 0.0
      %4501 = vmatprep.subr.mxu0 0.0
      %4502 = vmatpush2.xpose.msra.mxu0 0.0
      %4503 = vmatprep.subr.mxu0 0.0
      %4504 = vmatpush2.xpose.msra.mxu0 0.0
      %4505 = vmatprep.subr.mxu0 0.0
      %4506 = vmatpush2.xpose.msra.mxu0 0.0
      %4507 = vmatprep.subr.mxu0 0.0
      %4508 = vmatpush2.xpose.msra.mxu0 0.0
      %4509 = vmatprep.subr.mxu0 0.0
      %4510 = vmatpush2.xpose.msra.mxu0 0.0
      %4511 = vmatprep.subr.mxu0 0.0
      %4512 = vmatpush2.xpose.msra.mxu0 0.0
      %4513 = vmatprep.subr.mxu0 0.0
      %4514 = vmatpush2.xpose.msra.mxu0 0.0
      %4515 = vmatprep.mubr.f32.mxu0 0.0
      %4516 = vmatmul.mubr.f32.gmra.mxu0 %v4447
      %v4517 = vpop.f32.mrf.mxu0
      %v4518 = vadd.f32 0.0, %v4517
      %v4519 = vpop.f32.mrf.mxu0
      %4520 = vdwg.mxu0
      %4521 = vrot.lane.b32.xlu0 %v2445, 32
      %v4522 = vpop.permute.xlu0 %4521
      %4523 = vrot.lane.b32.xlu0 %v2454, 32
      %v4524 = vpop.permute.xlu0 %4523
      %v4525 = vsel %vm793, %v4522, 0
      %v4527 = vsel %vm793, %v4524, 0
      %4529 = vmatprep.subr.mxu0 0.0
      %4530 = vmatpush1.xpose.msra.mxu0 0.0
      %4531 = vmatprep.subr.mxu0 0.0
      %4532 = vmatpush1.xpose.msra.mxu0 0.0
      %4533 = vmatprep.subr.mxu0 0.0
      %4534 = vmatpush1.xpose.msra.mxu0 0.0
      %4535 = vmatprep.subr.mxu0 0.0
      %4536 = vmatpush1.xpose.msra.mxu0 0.0
      %4537 = vmatprep.subr.mxu0 0.0
      %4538 = vmatpush1.xpose.msra.mxu0 0.0
      %4539 = vmatprep.subr.mxu0 0.0
      %4540 = vmatpush1.xpose.msra.mxu0 0.0
      %4541 = vmatprep.subr.mxu0 0.0
      %4542 = vmatpush1.xpose.msra.mxu0 0.0
      %4543 = vmatprep.subr.mxu0 0.0
      %4544 = vmatpush1.xpose.msra.mxu0 0.0
      %4545 = vmatprep.subr.mxu0 0.0
      %4546 = vmatpush1.xpose.msra.mxu0 0.0
      %4547 = vmatprep.subr.mxu0 0.0
      %4548 = vmatpush1.xpose.msra.mxu0 0.0
      %4549 = vmatprep.subr.mxu0 0.0
      %4550 = vmatpush1.xpose.msra.mxu0 0.0
      %4551 = vmatprep.subr.mxu0 0.0
      %4552 = vmatpush1.xpose.msra.mxu0 0.0
      %4553 = vmatprep.subr.mxu0 0.0
      %4554 = vmatpush1.xpose.msra.mxu0 0.0
      %4555 = vmatprep.subr.mxu0 0.0
      %4556 = vmatpush1.xpose.msra.mxu0 0.0
      %4557 = vmatprep.subr.mxu0 0.0
      %4558 = vmatpush1.xpose.msra.mxu0 0.0
      %4559 = vmatprep.subr.mxu0 0.0
      %4560 = vmatpush1.xpose.msra.mxu0 %v4527
      %4561 = vmatprep.subr.mxu0 0.0
      %4562 = vmatpush2.xpose.msra.mxu0 0.0
      %4563 = vmatprep.subr.mxu0 0.0
      %4564 = vmatpush2.xpose.msra.mxu0 0.0
      %4565 = vmatprep.subr.mxu0 0.0
      %4566 = vmatpush2.xpose.msra.mxu0 0.0
      %4567 = vmatprep.subr.mxu0 0.0
      %4568 = vmatpush2.xpose.msra.mxu0 0.0
      %4569 = vmatprep.subr.mxu0 0.0
      %4570 = vmatpush2.xpose.msra.mxu0 0.0
      %4571 = vmatprep.subr.mxu0 0.0
      %4572 = vmatpush2.xpose.msra.mxu0 0.0
      %4573 = vmatprep.subr.mxu0 0.0
      %4574 = vmatpush2.xpose.msra.mxu0 0.0
      %4575 = vmatprep.subr.mxu0 0.0
      %4576 = vmatpush2.xpose.msra.mxu0 0.0
      %4577 = vmatprep.subr.mxu0 0.0
      %4578 = vmatpush2.xpose.msra.mxu0 0.0
      %4579 = vmatprep.subr.mxu0 0.0
      %4580 = vmatpush2.xpose.msra.mxu0 0.0
      %4581 = vmatprep.subr.mxu0 0.0
      %4582 = vmatpush2.xpose.msra.mxu0 0.0
      %4583 = vmatprep.subr.mxu0 0.0
      %4584 = vmatpush2.xpose.msra.mxu0 0.0
      %4585 = vmatprep.subr.mxu0 0.0
      %4586 = vmatpush2.xpose.msra.mxu0 0.0
      %4587 = vmatprep.subr.mxu0 0.0
      %4588 = vmatpush2.xpose.msra.mxu0 0.0
      %4589 = vmatprep.subr.mxu0 0.0
      %4590 = vmatpush2.xpose.msra.mxu0 0.0
      %4591 = vmatprep.subr.mxu0 0.0
      %4592 = vmatpush2.xpose.msra.mxu0 0.0
      %4593 = vmatprep.mubr.f32.mxu0 0.0
      %4594 = vmatmul.mubr.f32.gmra.mxu0 %v4525
      %v4595 = vpop.f32.mrf.mxu0
      %v4596 = vadd.f32 0.0, %v4595
      %v4597 = vpop.f32.mrf.mxu0
      %4598 = vdwg.mxu0
      %4599 = vrot.lane.b32.xlu0 %v1389, 32
      %v4600 = vpop.permute.xlu0 %4599
      %4601 = vrot.lane.b32.xlu0 %v1390, 32
      %v4602 = vpop.permute.xlu0 %4601
      %v4603 = vsel %vm793, %v4600, 0
      %v4605 = vsel %vm793, %v4602, 0
      %4607 = vmatprep.subr.mxu0 0.0
      %4608 = vmatpush1.xpose.msra.mxu0 0.0
      %4609 = vmatprep.subr.mxu0 0.0
      %4610 = vmatpush1.xpose.msra.mxu0 0.0
      %4611 = vmatprep.subr.mxu0 0.0
      %4612 = vmatpush1.xpose.msra.mxu0 0.0
      %4613 = vmatprep.subr.mxu0 0.0
      %4614 = vmatpush1.xpose.msra.mxu0 0.0
      %4615 = vmatprep.subr.mxu0 0.0
      %4616 = vmatpush1.xpose.msra.mxu0 0.0
      %4617 = vmatprep.subr.mxu0 0.0
      %4618 = vmatpush1.xpose.msra.mxu0 0.0
      %4619 = vmatprep.subr.mxu0 0.0
      %4620 = vmatpush1.xpose.msra.mxu0 0.0
      %4621 = vmatprep.subr.mxu0 0.0
      %4622 = vmatpush1.xpose.msra.mxu0 0.0
      %4623 = vmatprep.subr.mxu0 0.0
      %4624 = vmatpush1.xpose.msra.mxu0 0.0
      %4625 = vmatprep.subr.mxu0 0.0
      %4626 = vmatpush1.xpose.msra.mxu0 0.0
      %4627 = vmatprep.subr.mxu0 0.0
      %4628 = vmatpush1.xpose.msra.mxu0 0.0
      %4629 = vmatprep.subr.mxu0 0.0
      %4630 = vmatpush1.xpose.msra.mxu0 0.0
      %4631 = vmatprep.subr.mxu0 0.0
      %4632 = vmatpush1.xpose.msra.mxu0 0.0
      %4633 = vmatprep.subr.mxu0 0.0
      %4634 = vmatpush1.xpose.msra.mxu0 0.0
      %4635 = vmatprep.subr.mxu0 0.0
      %4636 = vmatpush1.xpose.msra.mxu0 0.0
      %4637 = vmatprep.subr.mxu0 0.0
      %4638 = vmatpush1.xpose.msra.mxu0 %v4605
      %4639 = vmatprep.subr.mxu0 0.0
      %4640 = vmatpush2.xpose.msra.mxu0 0.0
      %4641 = vmatprep.subr.mxu0 0.0
      %4642 = vmatpush2.xpose.msra.mxu0 0.0
      %4643 = vmatprep.subr.mxu0 0.0
      %4644 = vmatpush2.xpose.msra.mxu0 0.0
      %4645 = vmatprep.subr.mxu0 0.0
      %4646 = vmatpush2.xpose.msra.mxu0 0.0
      %4647 = vmatprep.subr.mxu0 0.0
      %4648 = vmatpush2.xpose.msra.mxu0 0.0
      %4649 = vmatprep.subr.mxu0 0.0
      %4650 = vmatpush2.xpose.msra.mxu0 0.0
      %4651 = vmatprep.subr.mxu0 0.0
      %4652 = vmatpush2.xpose.msra.mxu0 0.0
      %4653 = vmatprep.subr.mxu0 0.0
      %4654 = vmatpush2.xpose.msra.mxu0 0.0
      %4655 = vmatprep.subr.mxu0 0.0
      %4656 = vmatpush2.xpose.msra.mxu0 0.0
      %4657 = vmatprep.subr.mxu0 0.0
      %4658 = vmatpush2.xpose.msra.mxu0 0.0
      %4659 = vmatprep.subr.mxu0 0.0
      %4660 = vmatpush2.xpose.msra.mxu0 0.0
      %4661 = vmatprep.subr.mxu0 0.0
      %4662 = vmatpush2.xpose.msra.mxu0 0.0
      %4663 = vmatprep.subr.mxu0 0.0
      %4664 = vmatpush2.xpose.msra.mxu0 0.0
      %4665 = vmatprep.subr.mxu0 0.0
      %4666 = vmatpush2.xpose.msra.mxu0 0.0
      %4667 = vmatprep.subr.mxu0 0.0
      %4668 = vmatpush2.xpose.msra.mxu0 0.0
      %4669 = vmatprep.subr.mxu0 0.0
      %4670 = vmatpush2.xpose.msra.mxu0 0.0
      %4671 = vmatprep.mubr.f32.mxu0 0.0
      %4672 = vmatmul.mubr.f32.gmra.mxu0 %v4603
      %v4673 = vpop.f32.mrf.mxu0
      %v4674 = vadd.f32 0.0, %v4673
      %v4675 = vpop.f32.mrf.mxu0
      %4676 = vdwg.mxu0
      %4677 = vrot.lane.b32.xlu0 %v1467, 32
      %v4678 = vpop.permute.xlu0 %4677
      %4679 = vrot.lane.b32.xlu0 %v1468, 32
      %v4680 = vpop.permute.xlu0 %4679
      %v4681 = vsel %vm793, %v4678, 0
      %v4683 = vsel %vm793, %v4680, 0
      %4685 = vmatprep.subr.mxu0 0.0
      %4686 = vmatpush1.xpose.msra.mxu0 0.0
      %4687 = vmatprep.subr.mxu0 0.0
      %4688 = vmatpush1.xpose.msra.mxu0 0.0
      %4689 = vmatprep.subr.mxu0 0.0
      %4690 = vmatpush1.xpose.msra.mxu0 0.0
      %4691 = vmatprep.subr.mxu0 0.0
      %4692 = vmatpush1.xpose.msra.mxu0 0.0
      %4693 = vmatprep.subr.mxu0 0.0
      %4694 = vmatpush1.xpose.msra.mxu0 0.0
      %4695 = vmatprep.subr.mxu0 0.0
      %4696 = vmatpush1.xpose.msra.mxu0 0.0
      %4697 = vmatprep.subr.mxu0 0.0
      %4698 = vmatpush1.xpose.msra.mxu0 0.0
      %4699 = vmatprep.subr.mxu0 0.0
      %4700 = vmatpush1.xpose.msra.mxu0 0.0
      %4701 = vmatprep.subr.mxu0 0.0
      %4702 = vmatpush1.xpose.msra.mxu0 0.0
      %4703 = vmatprep.subr.mxu0 0.0
      %4704 = vmatpush1.xpose.msra.mxu0 0.0
      %4705 = vmatprep.subr.mxu0 0.0
      %4706 = vmatpush1.xpose.msra.mxu0 0.0
      %4707 = vmatprep.subr.mxu0 0.0
      %4708 = vmatpush1.xpose.msra.mxu0 0.0
      %4709 = vmatprep.subr.mxu0 0.0
      %4710 = vmatpush1.xpose.msra.mxu0 0.0
      %4711 = vmatprep.subr.mxu0 0.0
      %4712 = vmatpush1.xpose.msra.mxu0 0.0
      %4713 = vmatprep.subr.mxu0 0.0
      %4714 = vmatpush1.xpose.msra.mxu0 0.0
      %4715 = vmatprep.subr.mxu0 0.0
      %4716 = vmatpush1.xpose.msra.mxu0 %v4683
      %4717 = vmatprep.subr.mxu0 0.0
      %4718 = vmatpush2.xpose.msra.mxu0 0.0
      %4719 = vmatprep.subr.mxu0 0.0
      %4720 = vmatpush2.xpose.msra.mxu0 0.0
      %4721 = vmatprep.subr.mxu0 0.0
      %4722 = vmatpush2.xpose.msra.mxu0 0.0
      %4723 = vmatprep.subr.mxu0 0.0
      %4724 = vmatpush2.xpose.msra.mxu0 0.0
      %4725 = vmatprep.subr.mxu0 0.0
      %4726 = vmatpush2.xpose.msra.mxu0 0.0
      %4727 = vmatprep.subr.mxu0 0.0
      %4728 = vmatpush2.xpose.msra.mxu0 0.0
      %4729 = vmatprep.subr.mxu0 0.0
      %4730 = vmatpush2.xpose.msra.mxu0 0.0
      %4731 = vmatprep.subr.mxu0 0.0
      %4732 = vmatpush2.xpose.msra.mxu0 0.0
      %4733 = vmatprep.subr.mxu0 0.0
      %4734 = vmatpush2.xpose.msra.mxu0 0.0
      %4735 = vmatprep.subr.mxu0 0.0
      %4736 = vmatpush2.xpose.msra.mxu0 0.0
      %4737 = vmatprep.subr.mxu0 0.0
      %4738 = vmatpush2.xpose.msra.mxu0 0.0
      %4739 = vmatprep.subr.mxu0 0.0
      %4740 = vmatpush2.xpose.msra.mxu0 0.0
      %4741 = vmatprep.subr.mxu0 0.0
      %4742 = vmatpush2.xpose.msra.mxu0 0.0
      %4743 = vmatprep.subr.mxu0 0.0
      %4744 = vmatpush2.xpose.msra.mxu0 0.0
      %4745 = vmatprep.subr.mxu0 0.0
      %4746 = vmatpush2.xpose.msra.mxu0 0.0
      %4747 = vmatprep.subr.mxu0 0.0
      %4748 = vmatpush2.xpose.msra.mxu0 0.0
      %4749 = vmatprep.mubr.f32.mxu0 0.0
      %4750 = vmatmul.mubr.f32.gmra.mxu0 %v4681
      %v4751 = vpop.f32.mrf.mxu0
      %v4752 = vadd.f32 0.0, %v4751
      %v4753 = vpop.f32.mrf.mxu0
      %4754 = vdwg.mxu0
      %v4763 = vcombine.low %v4050, %v4128
      %v4764 = vcombine.low %v4206, %v4284
      %v4766 = vunpack.c.l.s4 1983009808
      %v4767 = vunpack.c.0.s8 %v4766
      %v4768 = vlaneseq
      %v4769 = vshrl.u32 %v4768, 7
      %v4770 = vsub.s32 %v4767, %v4769
      %v4771 = vrot.slane %v4763, %v4770
      %v4773 = vunpack.c.l.s4 1983009808
      %v4774 = vunpack.c.0.s8 %v4773
      %v4775 = vlaneseq
      %v4776 = vshrl.u32 %v4775, 7
      %v4777 = vsub.s32 %v4774, %v4776
      %v4778 = vrot.slane %v4764, %v4777
      %v4779 = vcombine.low %v4771, %v4778
      %v4780 = vcombine.low %v4362, %v4440
      %v4781 = vcombine.low %v4518, %v4596
      %v4783 = vunpack.c.l.s4 1983009808
      %v4784 = vunpack.c.0.s8 %v4783
      %v4785 = vlaneseq
      %v4786 = vshrl.u32 %v4785, 7
      %v4787 = vsub.s32 %v4784, %v4786
      %v4788 = vrot.slane %v4780, %v4787
      %v4790 = vunpack.c.l.s4 1983009808
      %v4791 = vunpack.c.0.s8 %v4790
      %v4792 = vlaneseq
      %v4793 = vshrl.u32 %v4792, 7
      %v4794 = vsub.s32 %v4791, %v4793
      %v4795 = vrot.slane %v4781, %v4794
      %v4796 = vcombine.low %v4788, %v4795
      %4801 = vrot.lane.b32.xlu0 %v4674, 2
      %v4802 = vpop.permute.xlu0 %4801
      %4803 = vrot.lane.b32.xlu0 %v4752, 2
      %v4804 = vpop.permute.xlu0 %4803
      %v4807 = vsel %vm1595, %v4779, %v4802
      %v4808 = vsel %vm1595, %v4796, %v4804
      %v4809 = vsel %vm1598, %v4807, -inf
      %4810 = vmax.xlane.f32.xlu0 %v4809
      %v4811 = vpop.xlane.xlu0 %4810
      %v4812 = vsel %vm1598, %v4808, -inf
      %4813 = vmax.xlane.f32.xlu0 %v4812
      %v4814 = vpop.xlane.xlu0 %4813
      %v4815 = vsub.f32 %v4807, %v4811
      %v4816 = vsub.f32 %v4808, %v4814
      %v4817 = vmul.f32 %v4815, 1.442695
      %v4818 = vpow.pop %v4817
      %v4819 = vmul.f32 %v4816, 1.442695
      %v4820 = vpow.pop %v4819
      %v4821 = vsel %vm1598, %v4818, 0.0
      %4822 = vadd.xlane.f32.xlu0 %v4821
      %v4823 = vpop.xlane.xlu0 %4822
      %v4824 = vsel %vm1598, %v4820, 0.0
      %4825 = vadd.xlane.f32.xlu0 %v4824
      %v4826 = vpop.xlane.xlu0 %4825
      %v4827 = vrcp.pop %v4823
      %v4828 = vmul.f32 %v4818, %v4827
      %v4829 = vrcp.pop %v4826
      %v4830 = vmul.f32 %v4820, %v4829
      %4831 = vrot.lane.b32.xlu0 %v685, 32
      %v4832 = vpop.permute.xlu0 %4831
      %4833 = vrot.lane.b32.xlu0 %v687, 32
      %v4834 = vpop.permute.xlu0 %4833
      %v4835 = vsel %vm793, %v4832, 0
      %v4837 = vsel %vm793, %v4834, 0
      %4839 = vmatprep.subr.mxu0 0.0
      %4840 = vmatpush1.xpose.msra.mxu0 0.0
      %4841 = vmatprep.subr.mxu0 0.0
      %4842 = vmatpush1.xpose.msra.mxu0 0.0
      %4843 = vmatprep.subr.mxu0 0.0
      %4844 = vmatpush1.xpose.msra.mxu0 0.0
      %4845 = vmatprep.subr.mxu0 0.0
      %4846 = vmatpush1.xpose.msra.mxu0 0.0
      %4847 = vmatprep.subr.mxu0 0.0
      %4848 = vmatpush1.xpose.msra.mxu0 0.0
      %4849 = vmatprep.subr.mxu0 0.0
      %4850 = vmatpush1.xpose.msra.mxu0 0.0
      %4851 = vmatprep.subr.mxu0 0.0
      %4852 = vmatpush1.xpose.msra.mxu0 0.0
      %4853 = vmatprep.subr.mxu0 0.0
      %4854 = vmatpush1.xpose.msra.mxu0 0.0
      %4855 = vmatprep.subr.mxu0 0.0
      %4856 = vmatpush1.xpose.msra.mxu0 0.0
      %4857 = vmatprep.subr.mxu0 0.0
      %4858 = vmatpush1.xpose.msra.mxu0 0.0
      %4859 = vmatprep.subr.mxu0 0.0
      %4860 = vmatpush1.xpose.msra.mxu0 0.0
      %4861 = vmatprep.subr.mxu0 0.0
      %4862 = vmatpush1.xpose.msra.mxu0 0.0
      %4863 = vmatprep.subr.mxu0 0.0
      %4864 = vmatpush1.xpose.msra.mxu0 0.0
      %4865 = vmatprep.subr.mxu0 0.0
      %4866 = vmatpush1.xpose.msra.mxu0 0.0
      %4867 = vmatprep.subr.mxu0 0.0
      %4868 = vmatpush1.xpose.msra.mxu0 0.0
      %4869 = vmatprep.subr.mxu0 0.0
      %4870 = vmatpush1.xpose.msra.mxu0 %v4837
      %4871 = vmatprep.subr.mxu0 0.0
      %4872 = vmatpush2.xpose.msra.mxu0 0.0
      %4873 = vmatprep.subr.mxu0 0.0
      %4874 = vmatpush2.xpose.msra.mxu0 0.0
      %4875 = vmatprep.subr.mxu0 0.0
      %4876 = vmatpush2.xpose.msra.mxu0 0.0
      %4877 = vmatprep.subr.mxu0 0.0
      %4878 = vmatpush2.xpose.msra.mxu0 0.0
      %4879 = vmatprep.subr.mxu0 0.0
      %4880 = vmatpush2.xpose.msra.mxu0 0.0
      %4881 = vmatprep.subr.mxu0 0.0
      %4882 = vmatpush2.xpose.msra.mxu0 0.0
      %4883 = vmatprep.subr.mxu0 0.0
      %4884 = vmatpush2.xpose.msra.mxu0 0.0
      %4885 = vmatprep.subr.mxu0 0.0
      %4886 = vmatpush2.xpose.msra.mxu0 0.0
      %4887 = vmatprep.subr.mxu0 0.0
      %4888 = vmatpush2.xpose.msra.mxu0 0.0
      %4889 = vmatprep.subr.mxu0 0.0
      %4890 = vmatpush2.xpose.msra.mxu0 0.0
      %4891 = vmatprep.subr.mxu0 0.0
      %4892 = vmatpush2.xpose.msra.mxu0 0.0
      %4893 = vmatprep.subr.mxu0 0.0
      %4894 = vmatpush2.xpose.msra.mxu0 0.0
      %4895 = vmatprep.subr.mxu0 0.0
      %4896 = vmatpush2.xpose.msra.mxu0 0.0
      %4897 = vmatprep.subr.mxu0 0.0
      %4898 = vmatpush2.xpose.msra.mxu0 0.0
      %4899 = vmatprep.subr.mxu0 0.0
      %4900 = vmatpush2.xpose.msra.mxu0 0.0
      %4901 = vmatprep.subr.mxu0 0.0
      %4902 = vmatpush2.xpose.msra.mxu0 0.0
      %4903 = vmatprep.mubr.f32.mxu0 0.0
      %4904 = vmatmul.mubr.f32.gmra.mxu0 %v4835
      %v4905 = vpop.f32.mrf.mxu0
      %v4906 = vadd.f32 0.0, %v4905
      %v4907 = vpop.f32.mrf.mxu0
      %4908 = vdwg.mxu0
      %4909 = vrot.lane.b32.xlu0 %v686, 32
      %v4910 = vpop.permute.xlu0 %4909
      %4911 = vrot.lane.b32.xlu0 %v688, 32
      %v4912 = vpop.permute.xlu0 %4911
      %v4913 = vsel %vm793, %v4910, 0
      %v4915 = vsel %vm793, %v4912, 0
      %4917 = vmatprep.subr.mxu0 0.0
      %4918 = vmatpush1.xpose.msra.mxu0 0.0
      %4919 = vmatprep.subr.mxu0 0.0
      %4920 = vmatpush1.xpose.msra.mxu0 0.0
      %4921 = vmatprep.subr.mxu0 0.0
      %4922 = vmatpush1.xpose.msra.mxu0 0.0
      %4923 = vmatprep.subr.mxu0 0.0
      %4924 = vmatpush1.xpose.msra.mxu0 0.0
      %4925 = vmatprep.subr.mxu0 0.0
      %4926 = vmatpush1.xpose.msra.mxu0 0.0
      %4927 = vmatprep.subr.mxu0 0.0
      %4928 = vmatpush1.xpose.msra.mxu0 0.0
      %4929 = vmatprep.subr.mxu0 0.0
      %4930 = vmatpush1.xpose.msra.mxu0 0.0
      %4931 = vmatprep.subr.mxu0 0.0
      %4932 = vmatpush1.xpose.msra.mxu0 0.0
      %4933 = vmatprep.subr.mxu0 0.0
      %4934 = vmatpush1.xpose.msra.mxu0 0.0
      %4935 = vmatprep.subr.mxu0 0.0
      %4936 = vmatpush1.xpose.msra.mxu0 0.0
      %4937 = vmatprep.subr.mxu0 0.0
      %4938 = vmatpush1.xpose.msra.mxu0 0.0
      %4939 = vmatprep.subr.mxu0 0.0
      %4940 = vmatpush1.xpose.msra.mxu0 0.0
      %4941 = vmatprep.subr.mxu0 0.0
      %4942 = vmatpush1.xpose.msra.mxu0 0.0
      %4943 = vmatprep.subr.mxu0 0.0
      %4944 = vmatpush1.xpose.msra.mxu0 0.0
      %4945 = vmatprep.subr.mxu0 0.0
      %4946 = vmatpush1.xpose.msra.mxu0 0.0
      %4947 = vmatprep.subr.mxu0 0.0
      %4948 = vmatpush1.xpose.msra.mxu0 %v4915
      %4949 = vmatprep.subr.mxu0 0.0
      %4950 = vmatpush2.xpose.msra.mxu0 0.0
      %4951 = vmatprep.subr.mxu0 0.0
      %4952 = vmatpush2.xpose.msra.mxu0 0.0
      %4953 = vmatprep.subr.mxu0 0.0
      %4954 = vmatpush2.xpose.msra.mxu0 0.0
      %4955 = vmatprep.subr.mxu0 0.0
      %4956 = vmatpush2.xpose.msra.mxu0 0.0
      %4957 = vmatprep.subr.mxu0 0.0
      %4958 = vmatpush2.xpose.msra.mxu0 0.0
      %4959 = vmatprep.subr.mxu0 0.0
      %4960 = vmatpush2.xpose.msra.mxu0 0.0
      %4961 = vmatprep.subr.mxu0 0.0
      %4962 = vmatpush2.xpose.msra.mxu0 0.0
      %4963 = vmatprep.subr.mxu0 0.0
      %4964 = vmatpush2.xpose.msra.mxu0 0.0
      %4965 = vmatprep.subr.mxu0 0.0
      %4966 = vmatpush2.xpose.msra.mxu0 0.0
      %4967 = vmatprep.subr.mxu0 0.0
      %4968 = vmatpush2.xpose.msra.mxu0 0.0
      %4969 = vmatprep.subr.mxu0 0.0
      %4970 = vmatpush2.xpose.msra.mxu0 0.0
      %4971 = vmatprep.subr.mxu0 0.0
      %4972 = vmatpush2.xpose.msra.mxu0 0.0
      %4973 = vmatprep.subr.mxu0 0.0
      %4974 = vmatpush2.xpose.msra.mxu0 0.0
      %4975 = vmatprep.subr.mxu0 0.0
      %4976 = vmatpush2.xpose.msra.mxu0 0.0
      %4977 = vmatprep.subr.mxu0 0.0
      %4978 = vmatpush2.xpose.msra.mxu0 0.0
      %4979 = vmatprep.subr.mxu0 0.0
      %4980 = vmatpush2.xpose.msra.mxu0 0.0
      %4981 = vmatprep.mubr.f32.mxu0 0.0
      %4982 = vmatmul.mubr.f32.gmra.mxu0 %v4913
      %v4983 = vpop.f32.mrf.mxu0
      %v4984 = vadd.f32 0.0, %v4983
      %v4985 = vpop.f32.mrf.mxu0
      %4986 = vdwg.mxu0
      %v4987 = vsel %vm1598, %v4906, -inf
      %4988 = vmax.xlane.f32.xlu0 %v4987
      %v4989 = vpop.xlane.xlu0 %4988
      %v4990 = vsel %vm1598, %v4984, -inf
      %4991 = vmax.xlane.f32.xlu0 %v4990
      %v4992 = vpop.xlane.xlu0 %4991
      %v4993 = vsub.f32 %v4906, %v4989
      %v4994 = vsub.f32 %v4984, %v4992
      %v4995 = vmul.f32 %v4993, 1.442695
      %v4996 = vpow.pop %v4995
      %v4997 = vmul.f32 %v4994, 1.442695
      %v4998 = vpow.pop %v4997
      %v4999 = vsel %vm1598, %v4996, 0.0
      %5000 = vadd.xlane.f32.xlu0 %v4999
      %v5001 = vpop.xlane.xlu0 %5000
      %v5002 = vsel %vm1598, %v4998, 0.0
      %5003 = vadd.xlane.f32.xlu0 %v5002
      %v5004 = vpop.xlane.xlu0 %5003
      %v5005 = vrcp.pop %v5001
      %v5006 = vmul.f32 %v4996, %v5005
      %v5007 = vrcp.pop %v5004
      %v5008 = vmul.f32 %v4998, %v5007
      %5011 = vrot.lane.b32.xlu0 %v2760, 8
      %v5012 = vpop.permute.xlu0 %5011
      %5013 = vrot.lane.b32.xlu0 %v2762, 8
      %v5014 = vpop.permute.xlu0 %5013
      %5019 = vrot.lane.b32.xlu0 %v3794, 16
      %v5020 = vpop.permute.xlu0 %5019
      %5021 = vrot.lane.b32.xlu0 %v3796, 16
      %v5022 = vpop.permute.xlu0 %5021
      %5027 = vrot.lane.b32.xlu0 %v4828, 24
      %v5028 = vpop.permute.xlu0 %5027
      %5029 = vrot.lane.b32.xlu0 %v4830, 24
      %v5030 = vpop.permute.xlu0 %5029
      %v5033 = vsel %vm1598, %v1618, %v5012
      %v5034 = vsel %vm1598, %v1620, %v5014
      %vm5035 = vcmask 130048
      %v5036 = vsel %vm5035, %v5033, %v5020
      %v5037 = vsel %vm5035, %v5034, %v5022
      %vm5038 = vcmask 195584
      %v5039 = vsel %vm5038, %v5036, %v5028
      %v5040 = vsel %vm5038, %v5037, %v5030
      %5041 = vst.msk [vmem:[%s508] sm:$0xff] %vm793, %v5039
      %5042 = vst.msk [vmem:[%s508 + $0x8] sm:$0xff] %vm793, %v5040
      %5045 = vrot.lane.b32.xlu0 %v2938, 8
      %v5046 = vpop.permute.xlu0 %5045
      %5047 = vrot.lane.b32.xlu0 %v2940, 8
      %v5048 = vpop.permute.xlu0 %5047
      %5053 = vrot.lane.b32.xlu0 %v3972, 16
      %v5054 = vpop.permute.xlu0 %5053
      %5055 = vrot.lane.b32.xlu0 %v3974, 16
      %v5056 = vpop.permute.xlu0 %5055
      %5061 = vrot.lane.b32.xlu0 %v5006, 24
      %v5062 = vpop.permute.xlu0 %5061
      %5063 = vrot.lane.b32.xlu0 %v5008, 24
      %v5064 = vpop.permute.xlu0 %5063
      %v5067 = vsel %vm1598, %v1792, %v5046
      %v5068 = vsel %vm1598, %v1794, %v5048
      %v5069 = vsel %vm5035, %v5067, %v5054
      %v5070 = vsel %vm5035, %v5068, %v5056
      %v5071 = vsel %vm5038, %v5069, %v5062
      %v5072 = vsel %vm5038, %v5070, %v5064
      %5073 = vst.msk [vmem:[%s514] sm:$0xff] %vm793, %v5071
      %5074 = vst.msk [vmem:[%s514 + $0x8] sm:$0xff] %vm793, %v5072
      %v5075 = vadd.f32 %v517, %v517
      %v5076 = vadd.f32 %v518, %v518
      %v5077 = vadd.f32 %v519, %v519
      %v5078 = vadd.f32 %v520, %v520
      %5079 = vadd.xlane.f32.xlu0 %v5075
      %v5080 = vpop.xlane.xlu0 %5079
      %5081 = vadd.xlane.f32.xlu0 %v5076
      %v5082 = vpop.xlane.xlu0 %5081
      %5083 = vadd.xlane.f32.xlu0 %v5077
      %v5084 = vpop.xlane.xlu0 %5083
      %5085 = vadd.xlane.f32.xlu0 %v5078
      %v5086 = vpop.xlane.xlu0 %5085
      %v5087 = vrcp.pop 128.0
      %v5088 = vmul.f32 %v5080, %v5087
      %v5089 = vmul.f32 %v5082, %v5087
      %v5090 = vmul.f32 %v5084, %v5087
      %v5091 = vmul.f32 %v5086, %v5087
      %v5092 = vsub.f32 %v5075, %v5088
      %v5093 = vsub.f32 %v5076, %v5089
      %v5094 = vsub.f32 %v5077, %v5090
      %v5095 = vsub.f32 %v5078, %v5091
      %v5096 = vmul.f32 %v5092, %v5092
      %v5097 = vmul.f32 %v5093, %v5093
      %v5098 = vmul.f32 %v5094, %v5094
      %v5099 = vmul.f32 %v5095, %v5095
      %5100 = vadd.xlane.f32.xlu0 %v5096
      %v5101 = vpop.xlane.xlu0 %5100
      %5102 = vadd.xlane.f32.xlu0 %v5097
      %v5103 = vpop.xlane.xlu0 %5102
      %5104 = vadd.xlane.f32.xlu0 %v5098
      %v5105 = vpop.xlane.xlu0 %5104
      %5106 = vadd.xlane.f32.xlu0 %v5099
      %v5107 = vpop.xlane.xlu0 %5106
      %v5108 = vmul.f32 %v5101, %v5087
      %v5109 = vmul.f32 %v5103, %v5087
      %v5110 = vmul.f32 %v5105, %v5087
      %v5111 = vmul.f32 %v5107, %v5087
      %v5112 = vadd.f32 %v5108, 1e-05
      %v5113 = vadd.f32 %v5109, 1e-05
      %v5114 = vadd.f32 %v5110, 1e-05
      %v5115 = vadd.f32 %v5111, 1e-05
      %v5116 = vrsqrt.pop %v5112
      %v5117 = vrsqrt.pop %v5113
      %v5118 = vrsqrt.pop %v5114
      %v5119 = vrsqrt.pop %v5115
      %v5120 = vmul.f32 %v5092, %v5116
      %v5121 = vmul.f32 %v5093, %v5117
      %v5122 = vmul.f32 %v5094, %v5118
      %v5123 = vmul.f32 %v5095, %v5119
      %v5124 = vld [vmem:[%s7] sm:$0x1]
      %v5126 = vlaneseq
      %v5127 = vshrl.u32 %v5126, 7
      %v5128 = vsub.s32 0, %v5127
      %v5129 = vrot.slane %v5124, %v5128
      %v5131 = vmul.f32 %v5120, %v5129
      %v5132 = vmul.f32 %v5121, %v5129
      %v5133 = vmul.f32 %v5122, %v5129
      %v5134 = vmul.f32 %v5123, %v5129
      %v5135 = vld [vmem:[%s8] sm:$0x1]
      %v5137 = vlaneseq
      %v5138 = vshrl.u32 %v5137, 7
      %v5139 = vsub.s32 0, %v5138
      %v5140 = vrot.slane %v5135, %v5139
      %v5142 = vadd.f32 %v5131, %v5140
      %v5143 = vadd.f32 %v5132, %v5140
      %v5144 = vadd.f32 %v5133, %v5140
      %v5145 = vadd.f32 %v5134, %v5140
      %v5146 = vpack.c.bf16 %v5143, %v5142
      %v5147 = vpack.c.bf16 %v5145, %v5144
      %v5148 = vld [vmem:[%s3] sm:$0xff]
      %v5149 = vld [vmem:[%s3 + $0x8] sm:$0xff]
      %v5150 = vld [vmem:[%s3 + $0x10] sm:$0xff]
      %v5151 = vld [vmem:[%s3 + $0x18] sm:$0xff]
      %v5152 = vld [vmem:[%s3 + $0x20] sm:$0xff]
      %v5153 = vld [vmem:[%s3 + $0x28] sm:$0xff]
      %v5154 = vld [vmem:[%s3 + $0x30] sm:$0xff]
      %v5155 = vld [vmem:[%s3 + $0x38] sm:$0xff]
      %v5156 = vld [vmem:[%s3 + $0x40] sm:$0xff]
      %v5157 = vld [vmem:[%s3 + $0x48] sm:$0xff]
      %v5158 = vld [vmem:[%s3 + $0x50] sm:$0xff]
      %v5159 = vld [vmem:[%s3 + $0x58] sm:$0xff]
      %v5160 = vld [vmem:[%s3 + $0x60] sm:$0xff]
      %v5161 = vld [vmem:[%s3 + $0x68] sm:$0xff]
      %v5162 = vld [vmem:[%s3 + $0x70] sm:$0xff]
      %v5163 = vld [vmem:[%s3 + $0x78] sm:$0xff]
      %v5164 = vld [vmem:[%s4] sm:$0x3]
      %v5166 = vlaneseq
      %v5167 = vshrl.u32 %v5166, 7
      %v5168 = vsub.s32 0, %v5167
      %v5169 = vrot.slane %v5164, %v5168
      %v5170 = vlaneseq
      %v5171 = vshrl.u32 %v5170, 7
      %v5172 = vsub.s32 1, %v5171
      %v5173 = vrot.slane %v5164, %v5172
      %v5192 = vunpack.c.l.b16 %v5148
      %v5193 = vunpack.c.h.b16 %v5148
      %v5194 = vunpack.c.l.b16 %v5149
      %v5195 = vunpack.c.h.b16 %v5149
      %v5196 = vunpack.c.l.b16 %v5150
      %v5197 = vunpack.c.h.b16 %v5150
      %v5198 = vunpack.c.l.b16 %v5151
      %v5199 = vunpack.c.h.b16 %v5151
      %v5200 = vunpack.c.l.b16 %v5152
      %v5201 = vunpack.c.h.b16 %v5152
      %v5202 = vunpack.c.l.b16 %v5153
      %v5203 = vunpack.c.h.b16 %v5153
      %v5204 = vunpack.c.l.b16 %v5154
      %v5205 = vunpack.c.h.b16 %v5154
      %v5206 = vunpack.c.l.b16 %v5155
      %v5207 = vunpack.c.h.b16 %v5155
      %v5208 = vunpack.c.l.b16 %v5156
      %v5209 = vunpack.c.h.b16 %v5156
      %v5210 = vunpack.c.l.b16 %v5157
      %v5211 = vunpack.c.h.b16 %v5157
      %v5212 = vunpack.c.l.b16 %v5158
      %v5213 = vunpack.c.h.b16 %v5158
      %v5214 = vunpack.c.l.b16 %v5159
      %v5215 = vunpack.c.h.b16 %v5159
      %v5216 = vunpack.c.l.b16 %v5160
      %v5217 = vunpack.c.h.b16 %v5160
      %v5218 = vunpack.c.l.b16 %v5161
      %v5219 = vunpack.c.h.b16 %v5161
      %v5220 = vunpack.c.l.b16 %v5162
      %v5221 = vunpack.c.h.b16 %v5162
      %v5222 = vunpack.c.l.b16 %v5163
      %v5223 = vunpack.c.h.b16 %v5163
      %v5224 = vpack.c.b16 %v5194, %v5192
      %v5225 = vpack.c.b16 %v5195, %v5193
      %v5226 = vpack.c.b16 %v5198, %v5196
      %v5227 = vpack.c.b16 %v5199, %v5197
      %v5228 = vpack.c.b16 %v5202, %v5200
      %v5229 = vpack.c.b16 %v5203, %v5201
      %v5230 = vpack.c.b16 %v5206, %v5204
      %v5231 = vpack.c.b16 %v5207, %v5205
      %v5232 = vpack.c.b16 %v5210, %v5208
      %v5233 = vpack.c.b16 %v5211, %v5209
      %v5234 = vpack.c.b16 %v5214, %v5212
      %v5235 = vpack.c.b16 %v5215, %v5213
      %v5236 = vpack.c.b16 %v5218, %v5216
      %v5237 = vpack.c.b16 %v5219, %v5217
      %v5238 = vpack.c.b16 %v5222, %v5220
      %v5239 = vpack.c.b16 %v5223, %v5221
      %5256 = vmatprep.subr.bf16.mxu0 %v5239
      %5257 = vmatpush1.bf16.msra.mxu0 %v5238
      %5258 = vmatprep.subr.bf16.mxu0 %v5237
      %5259 = vmatpush1.bf16.msra.mxu0 %v5236
      %5260 = vmatprep.subr.bf16.mxu0 %v5235
      %5261 = vmatpush1.bf16.msra.mxu0 %v5234
      %5262 = vmatprep.subr.bf16.mxu0 %v5233
      %5263 = vmatpush1.bf16.msra.mxu0 %v5232
      %5264 = vmatprep.subr.bf16.mxu0 %v5231
      %5265 = vmatpush1.bf16.msra.mxu0 %v5230
      %5266 = vmatprep.subr.bf16.mxu0 %v5229
      %5267 = vmatpush1.bf16.msra.mxu0 %v5228
      %5268 = vmatprep.subr.bf16.mxu0 %v5227
      %5269 = vmatpush1.bf16.msra.mxu0 %v5226
      %5270 = vmatprep.subr.bf16.mxu0 %v5225
      %5271 = vmatpush1.bf16.msra.mxu0 %v5224
      %5272 = vmatprep.subr.bf16.mxu0 0
      %5273 = vmatpush2.bf16.msra.mxu0 0
      %5274 = vmatprep.subr.bf16.mxu0 0
      %5275 = vmatpush2.bf16.msra.mxu0 0
      %5276 = vmatprep.subr.bf16.mxu0 0
      %5277 = vmatpush2.bf16.msra.mxu0 0
      %5278 = vmatprep.subr.bf16.mxu0 0
      %5279 = vmatpush2.bf16.msra.mxu0 0
      %5280 = vmatprep.subr.bf16.mxu0 0
      %5281 = vmatpush2.bf16.msra.mxu0 0
      %5282 = vmatprep.subr.bf16.mxu0 0
      %5283 = vmatpush2.bf16.msra.mxu0 0
      %5284 = vmatprep.subr.bf16.mxu0 0
      %5285 = vmatpush2.bf16.msra.mxu0 0
      %5286 = vmatprep.subr.bf16.mxu0 0
      %5287 = vmatpush2.bf16.msra.mxu0 0
      %5288 = vmatprep.mubr.bf16.mxu0 0
      %5289 = vmatmul.mubr.bf16.gmra.mxu0 %v5146
      %v5290 = vpop.f32.mrf.mxu0
      %v5291 = vadd.f32 %v5169, %v5290
      %v5292 = vpop.f32.mrf.mxu0
      %v5293 = vadd.f32 %v5173, %v5292
      %v5294 = vpop.f32.mrf.mxu0
      %v5295 = vadd.f32 %v5169, %v5294
      %v5296 = vpop.f32.mrf.mxu0
      %v5297 = vadd.f32 %v5173, %v5296
      %5298 = vmatprep.mubr.bf16.mxu0 0
      %5299 = vmatmul.mubr.bf16.gmra.mxu0 %v5147
      %v5300 = vpop.f32.mrf.mxu0
      %v5301 = vadd.f32 %v5169, %v5300
      %v5302 = vpop.f32.mrf.mxu0
      %v5303 = vadd.f32 %v5173, %v5302
      %v5304 = vpop.f32.mrf.mxu0
      %v5305 = vadd.f32 %v5169, %v5304
      %v5306 = vpop.f32.mrf.mxu0
      %v5307 = vadd.f32 %v5173, %v5306
      %5308 = vdwg.mxu0
      %v5309 = vmax.f32 %v5291, 0.0
      %v5310 = vmax.f32 %v5293, 0.0
      %v5311 = vmax.f32 %v5295, 0.0
      %v5312 = vmax.f32 %v5297, 0.0
      %v5313 = vmax.f32 %v5301, 0.0
      %v5314 = vmax.f32 %v5303, 0.0
      %v5315 = vmax.f32 %v5305, 0.0
      %v5316 = vmax.f32 %v5307, 0.0
      %v5317 = vpack.c.bf16 %v5311, %v5309
      %v5318 = vpack.c.bf16 %v5312, %v5310
      %v5319 = vpack.c.bf16 %v5315, %v5313
      %v5320 = vpack.c.bf16 %v5316, %v5314
      %v5321 = vld [vmem:[%s5] sm:$0xf]
      %v5322 = vld [vmem:[%s5 + $0x4] sm:$0xf]
      %v5323 = vld [vmem:[%s5 + $0x8] sm:$0xf]
      %v5324 = vld [vmem:[%s5 + $0xc] sm:$0xf]
      %v5325 = vld [vmem:[%s5 + $0x10] sm:$0xf]
      %v5326 = vld [vmem:[%s5 + $0x14] sm:$0xf]
      %v5327 = vld [vmem:[%s5 + $0x18] sm:$0xf]
      %v5328 = vld [vmem:[%s5 + $0x1c] sm:$0xf]
      %v5329 = vld [vmem:[%s5 + $0x20] sm:$0xf]
      %v5330 = vld [vmem:[%s5 + $0x24] sm:$0xf]
      %v5331 = vld [vmem:[%s5 + $0x28] sm:$0xf]
      %v5332 = vld [vmem:[%s5 + $0x2c] sm:$0xf]
      %v5333 = vld [vmem:[%s5 + $0x30] sm:$0xf]
      %v5334 = vld [vmem:[%s5 + $0x34] sm:$0xf]
      %v5335 = vld [vmem:[%s5 + $0x38] sm:$0xf]
      %v5336 = vld [vmem:[%s5 + $0x3c] sm:$0xf]
      %v5337 = vld [vmem:[%s5 + $0x40] sm:$0xf]
      %v5338 = vld [vmem:[%s5 + $0x44] sm:$0xf]
      %v5339 = vld [vmem:[%s5 + $0x48] sm:$0xf]
      %v5340 = vld [vmem:[%s5 + $0x4c] sm:$0xf]
      %v5341 = vld [vmem:[%s5 + $0x50] sm:$0xf]
      %v5342 = vld [vmem:[%s5 + $0x54] sm:$0xf]
      %v5343 = vld [vmem:[%s5 + $0x58] sm:$0xf]
      %v5344 = vld [vmem:[%s5 + $0x5c] sm:$0xf]
      %v5345 = vld [vmem:[%s5 + $0x60] sm:$0xf]
      %v5346 = vld [vmem:[%s5 + $0x64] sm:$0xf]
      %v5347 = vld [vmem:[%s5 + $0x68] sm:$0xf]
      %v5348 = vld [vmem:[%s5 + $0x6c] sm:$0xf]
      %v5349 = vld [vmem:[%s5 + $0x70] sm:$0xf]
      %v5350 = vld [vmem:[%s5 + $0x74] sm:$0xf]
      %v5351 = vld [vmem:[%s5 + $0x78] sm:$0xf]
      %v5352 = vld [vmem:[%s5 + $0x7c] sm:$0xf]
      %v5353 = vld [vmem:[%s6] sm:$0x1]
      %v5355 = vlaneseq
      %v5356 = vshrl.u32 %v5355, 7
      %v5357 = vsub.s32 0, %v5356
      %v5358 = vrot.slane %v5353, %v5357
      %v5392 = vunpack.c.l.b16 %v5321
      %v5393 = vunpack.c.l.b16 %v5322
      %v5394 = vunpack.c.l.b16 %v5323
      %v5395 = vunpack.c.l.b16 %v5324
      %v5396 = vunpack.c.l.b16 %v5325
      %v5397 = vunpack.c.l.b16 %v5326
      %v5398 = vunpack.c.l.b16 %v5327
      %v5399 = vunpack.c.l.b16 %v5328
      %v5400 = vunpack.c.l.b16 %v5329
      %v5401 = vunpack.c.l.b16 %v5330
      %v5402 = vunpack.c.l.b16 %v5331
      %v5403 = vunpack.c.l.b16 %v5332
      %v5404 = vunpack.c.l.b16 %v5333
      %v5405 = vunpack.c.l.b16 %v5334
      %v5406 = vunpack.c.l.b16 %v5335
      %v5407 = vunpack.c.l.b16 %v5336
      %v5408 = vunpack.c.l.b16 %v5337
      %v5409 = vunpack.c.l.b16 %v5338
      %v5410 = vunpack.c.l.b16 %v5339
      %v5411 = vunpack.c.l.b16 %v5340
      %v5412 = vunpack.c.l.b16 %v5341
      %v5413 = vunpack.c.l.b16 %v5342
      %v5414 = vunpack.c.l.b16 %v5343
      %v5415 = vunpack.c.l.b16 %v5344
      %v5416 = vunpack.c.l.b16 %v5345
      %v5417 = vunpack.c.l.b16 %v5346
      %v5418 = vunpack.c.l.b16 %v5347
      %v5419 = vunpack.c.l.b16 %v5348
      %v5420 = vunpack.c.l.b16 %v5349
      %v5421 = vunpack.c.l.b16 %v5350
      %v5422 = vunpack.c.l.b16 %v5351
      %v5423 = vunpack.c.l.b16 %v5352
      %v5424 = vpack.c.b16 %v5393, %v5392
      %v5425 = vpack.c.b16 %v5395, %v5394
      %v5426 = vpack.c.b16 %v5397, %v5396
      %v5427 = vpack.c.b16 %v5399, %v5398
      %v5428 = vpack.c.b16 %v5401, %v5400
      %v5429 = vpack.c.b16 %v5403, %v5402
      %v5430 = vpack.c.b16 %v5405, %v5404
      %v5431 = vpack.c.b16 %v5407, %v5406
      %v5432 = vpack.c.b16 %v5409, %v5408
      %v5433 = vpack.c.b16 %v5411, %v5410
      %v5434 = vpack.c.b16 %v5413, %v5412
      %v5435 = vpack.c.b16 %v5415, %v5414
      %v5436 = vpack.c.b16 %v5417, %v5416
      %v5437 = vpack.c.b16 %v5419, %v5418
      %v5438 = vpack.c.b16 %v5421, %v5420
      %v5439 = vpack.c.b16 %v5423, %v5422
      %5456 = vmatprep.subr.bf16.mxu0 0
      %5457 = vmatpush1.bf16.msra.mxu0 %v5431
      %5458 = vmatprep.subr.bf16.mxu0 0
      %5459 = vmatpush1.bf16.msra.mxu0 %v5430
      %5460 = vmatprep.subr.bf16.mxu0 0
      %5461 = vmatpush1.bf16.msra.mxu0 %v5429
      %5462 = vmatprep.subr.bf16.mxu0 0
      %5463 = vmatpush1.bf16.msra.mxu0 %v5428
      %5464 = vmatprep.subr.bf16.mxu0 0
      %5465 = vmatpush1.bf16.msra.mxu0 %v5427
      %5466 = vmatprep.subr.bf16.mxu0 0
      %5467 = vmatpush1.bf16.msra.mxu0 %v5426
      %5468 = vmatprep.subr.bf16.mxu0 0
      %5469 = vmatpush1.bf16.msra.mxu0 %v5425
      %5470 = vmatprep.subr.bf16.mxu0 0
      %5471 = vmatpush1.bf16.msra.mxu0 %v5424
      %5472 = vmatprep.subr.bf16.mxu0 0
      %5473 = vmatpush2.bf16.msra.mxu0 %v5439
      %5474 = vmatprep.subr.bf16.mxu0 0
      %5475 = vmatpush2.bf16.msra.mxu0 %v5438
      %5476 = vmatprep.subr.bf16.mxu0 0
      %5477 = vmatpush2.bf16.msra.mxu0 %v5437
      %5478 = vmatprep.subr.bf16.mxu0 0
      %5479 = vmatpush2.bf16.msra.mxu0 %v5436
      %5480 = vmatprep.subr.bf16.mxu0 0
      %5481 = vmatpush2.bf16.msra.mxu0 %v5435
      %5482 = vmatprep.subr.bf16.mxu0 0
      %5483 = vmatpush2.bf16.msra.mxu0 %v5434
      %5484 = vmatprep.subr.bf16.mxu0 0
      %5485 = vmatpush2.bf16.msra.mxu0 %v5433
      %5486 = vmatprep.subr.bf16.mxu0 0
      %5487 = vmatpush2.bf16.msra.mxu0 %v5432
      %5488 = vmatprep.mubr.bf16.mxu0 %v5318
      %5489 = vmatmul.mubr.bf16.gmra.mxu0 %v5317
      %v5490 = vpop.f32.mrf.mxu0
      %v5491 = vadd.f32 %v5358, %v5490
      %v5492 = vpop.f32.mrf.mxu0
      %v5493 = vpop.f32.mrf.mxu0
      %v5494 = vadd.f32 %v5358, %v5493
      %v5495 = vpop.f32.mrf.mxu0
      %5496 = vmatprep.mubr.bf16.mxu0 %v5320
      %5497 = vmatmul.mubr.bf16.gmra.mxu0 %v5319
      %v5498 = vpop.f32.mrf.mxu0
      %v5499 = vadd.f32 %v5358, %v5498
      %v5500 = vpop.f32.mrf.mxu0
      %v5501 = vpop.f32.mrf.mxu0
      %v5502 = vadd.f32 %v5358, %v5501
      %v5503 = vpop.f32.mrf.mxu0
      %5504 = vdwg.mxu0
      %v5505 = vadd.f32 %v5142, %v5491
      %v5506 = vadd.f32 %v5143, %v5494
      %v5507 = vadd.f32 %v5144, %v5499
      %v5508 = vadd.f32 %v5145, %v5502
      %5509 = vadd.xlane.f32.xlu0 %v5505
      %v5510 = vpop.xlane.xlu0 %5509
      %5511 = vadd.xlane.f32.xlu0 %v5506
      %v5512 = vpop.xlane.xlu0 %5511
      %5513 = vadd.xlane.f32.xlu0 %v5507
      %v5514 = vpop.xlane.xlu0 %5513
      %5515 = vadd.xlane.f32.xlu0 %v5508
      %v5516 = vpop.xlane.xlu0 %5515
      %v5517 = vmul.f32 %v5510, %v5087
      %v5518 = vmul.f32 %v5512, %v5087
      %v5519 = vmul.f32 %v5514, %v5087
      %v5520 = vmul.f32 %v5516, %v5087
      %v5521 = vsub.f32 %v5505, %v5517
      %v5522 = vsub.f32 %v5506, %v5518
      %v5523 = vsub.f32 %v5507, %v5519
      %v5524 = vsub.f32 %v5508, %v5520
      %v5525 = vmul.f32 %v5521, %v5521
      %v5526 = vmul.f32 %v5522, %v5522
      %v5527 = vmul.f32 %v5523, %v5523
      %v5528 = vmul.f32 %v5524, %v5524
      %5529 = vadd.xlane.f32.xlu0 %v5525
      %v5530 = vpop.xlane.xlu0 %5529
      %5531 = vadd.xlane.f32.xlu0 %v5526
      %v5532 = vpop.xlane.xlu0 %5531
      %5533 = vadd.xlane.f32.xlu0 %v5527
      %v5534 = vpop.xlane.xlu0 %5533
      %5535 = vadd.xlane.f32.xlu0 %v5528
      %v5536 = vpop.xlane.xlu0 %5535
      %v5537 = vmul.f32 %v5530, %v5087
      %v5538 = vmul.f32 %v5532, %v5087
      %v5539 = vmul.f32 %v5534, %v5087
      %v5540 = vmul.f32 %v5536, %v5087
      %v5541 = vadd.f32 %v5537, 1e-05
      %v5542 = vadd.f32 %v5538, 1e-05
      %v5543 = vadd.f32 %v5539, 1e-05
      %v5544 = vadd.f32 %v5540, 1e-05
      %v5545 = vrsqrt.pop %v5541
      %v5546 = vrsqrt.pop %v5542
      %v5547 = vrsqrt.pop %v5543
      %v5548 = vrsqrt.pop %v5544
      %v5549 = vmul.f32 %v5521, %v5545
      %v5550 = vmul.f32 %v5522, %v5546
      %v5551 = vmul.f32 %v5523, %v5547
      %v5552 = vmul.f32 %v5524, %v5548
      %v5553 = vld [vmem:[%s9] sm:$0x1]
      %v5555 = vlaneseq
      %v5556 = vshrl.u32 %v5555, 7
      %v5557 = vsub.s32 0, %v5556
      %v5558 = vrot.slane %v5553, %v5557
      %v5560 = vmul.f32 %v5549, %v5558
      %v5561 = vmul.f32 %v5550, %v5558
      %v5562 = vmul.f32 %v5551, %v5558
      %v5563 = vmul.f32 %v5552, %v5558
      %v5564 = vld [vmem:[%s10] sm:$0x1]
      %v5566 = vlaneseq
      %v5567 = vshrl.u32 %v5566, 7
      %v5568 = vsub.s32 0, %v5567
      %v5569 = vrot.slane %v5564, %v5568
      %v5571 = vadd.f32 %v5560, %v5569
      %v5572 = vadd.f32 %v5561, %v5569
      %v5573 = vadd.f32 %v5562, %v5569
      %v5574 = vadd.f32 %v5563, %v5569
      %5575 = vst [vmem:[%s496] sm:$0xff] %v5571
      %5576 = vst [vmem:[%s496 + $0x8] sm:$0x3] %v5572
      %5577 = vst [vmem:[%s496 + $0x10] sm:$0xff] %v5573
      %5578 = vst [vmem:[%s496 + $0x18] sm:$0x3] %v5574
      %5579 = vst [vmem:[%s502 - $0x2] sm:$0xfc] %v5572
      %5580 = vst [vmem:[%s502 + $0x6] sm:$0xfc] %v5574
      %s5581 = smul.u32 2, %s26
      %p5582 = scmp.lt.s32.totalorder %s5581, 3
      %s5583 = scalar_select %p5582, %s5581, 3
      %s5584 = smul.addr %s5583, 2
      %s5585 = smul.addr %s5584, 8
      %s5586 = scalar_lea.vmem %s11, %s5585
      %s5587 = smul.u32 2, %s26
      %p5588 = scmp.lt.s32.totalorder %s5587, 3
      %s5589 = scalar_select %p5588, %s5587, 3
      %s5590 = smul.addr %s5589, 8
      %s5591 = scalar_lea.vmem %s12, %s5590
      %s5592 = smul.u32 2, %s26
      %p5593 = scmp.lt.s32.totalorder %s5592, 3
      %s5594 = scalar_select %p5593, %s5592, 3
      %s5595 = smul.addr %s5594, 8
      %s5596 = scalar_lea.vmem %s13, %s5595
      %s5597 = smul.u32 2, %s26
      %p5598 = scmp.lt.s32.totalorder %s5597, 3
      %s5599 = scalar_select %p5598, %s5597, 3
      %s5600 = smul.addr %s5599, 8
      %s5601 = scalar_lea.vmem %s14, %s5600
      // Predicated region
      $region65: #{block_encoder_layer.1} parent=63 // pred_check
        %p5602 = pneg %p280
      $region66: #{block_encoder_layer.1} parent=63 // pred_check_branch
        %5604 = sbr.rel (%p5602) target = $region68
      $region67: #{block_encoder_layer.1} parent=63 // pred_region
        %s5605 = smul.u32 2, %s26
      $region68: #{block_encoder_layer.1} parent=63 // pred_fallthru
        _
      // Predicated region
      $region69: #{block_encoder_layer.1} parent=63 // pred_check
        %p5606 = pneg %p306
      $region70: #{block_encoder_layer.1} parent=63 // pred_check_branch
        %5608 = sbr.rel (%p5606) target = $region72
      $region71: #{block_encoder_layer.1} parent=63 // pred_region
        %s5609 = smul.u32 2, %s26
      $region72: #{block_encoder_layer.1} parent=63 // pred_fallthru
        _
      // Predicated region
      $region73: #{block_encoder_layer.1} parent=63 // pred_check
        %p5610 = pneg %p332
      $region74: #{block_encoder_layer.1} parent=63 // pred_check_branch
        %5612 = sbr.rel (%p5610) target = $region76
      $region75: #{block_encoder_layer.1} parent=63 // pred_region
        %s5613 = smul.u32 2, %s26
      $region76: #{block_encoder_layer.1} parent=63 // pred_fallthru
        _
      // Predicated region
      $region77: #{block_encoder_layer.1} parent=63 // pred_check
        %p5614 = pneg %p358
      $region78: #{block_encoder_layer.1} parent=63 // pred_check_branch
        %5616 = sbr.rel (%p5614) target = $region80
      $region79: #{block_encoder_layer.1} parent=63 // pred_region
        %s5617 = smul.u32 2, %s26
      $region80: #{block_encoder_layer.1} parent=63 // pred_fallthru
        _
    $region64: #{block_encoder_layer.1} parent=5 // pred_fallthru
      _
    %p5618 = scmp.le.s32.totalorder 2, %s21
    // Predicated region
    $region81: #{block_encoder_layer.1} parent=5 // pred_check
      %p5619 = pneg %p5618
    $region82: #{block_encoder_layer.1} parent=5 // pred_check_branch
      %5621 = sbr.rel (%p5619) target = $region84
    $region83: #{block_encoder_layer.1} parent=5 // pred_region
      %s5622 = ssub.s32 %s21, 2
      // Predicated region
      $region85: #{block_encoder_layer.1} parent=83 // pred_check
        %p5623 = pneg %p286
      $region86: #{block_encoder_layer.1} parent=83 // pred_check_branch
        %5625 = sbr.rel (%p5623) target = $region88
      $region87: #{block_encoder_layer.1} parent=83 // pred_region
        %s5626 = smul.u32 2, %s27
        %p5627 = scmp.lt.s32.totalorder %s5626, 3
        %s5628 = scalar_select %p5627, %s5626, 3
        %s5629 = smul.addr %s5628, 2
        %s5630 = smul.addr %s5629, 8
        %s5631 = scalar_lea.vmem %s11, %s5630
      $region88: #{block_encoder_layer.1} parent=83 // pred_fallthru
        _
      // Predicated region
      $region89: #{block_encoder_layer.1} parent=83 // pred_check
        %p5632 = pneg %p312
      $region90: #{block_encoder_layer.1} parent=83 // pred_check_branch
        %5634 = sbr.rel (%p5632) target = $region92
      $region91: #{block_encoder_layer.1} parent=83 // pred_region
        %s5635 = smul.u32 2, %s27
        %p5636 = scmp.lt.s32.totalorder %s5635, 3
        %s5637 = scalar_select %p5636, %s5635, 3
        %s5638 = smul.addr %s5637, 8
        %s5639 = scalar_lea.vmem %s12, %s5638
      $region92: #{block_encoder_layer.1} parent=83 // pred_fallthru
        _
      // Predicated region
      $region93: #{block_encoder_layer.1} parent=83 // pred_check
        %p5640 = pneg %p338
      $region94: #{block_encoder_layer.1} parent=83 // pred_check_branch
        %5642 = sbr.rel (%p5640) target = $region96
      $region95: #{block_encoder_layer.1} parent=83 // pred_region
        %s5643 = smul.u32 2, %s27
        %p5644 = scmp.lt.s32.totalorder %s5643, 3
        %s5645 = scalar_select %p5644, %s5643, 3
        %s5646 = smul.addr %s5645, 8
        %s5647 = scalar_lea.vmem %s13, %s5646
      $region96: #{block_encoder_layer.1} parent=83 // pred_fallthru
        _
      // Predicated region
      $region97: #{block_encoder_layer.1} parent=83 // pred_check
        %p5648 = pneg %p364
      $region98: #{block_encoder_layer.1} parent=83 // pred_check_branch
        %5650 = sbr.rel (%p5648) target = $region100
      $region99: #{block_encoder_layer.1} parent=83 // pred_region
        %s5651 = smul.u32 2, %s27
        %p5652 = scmp.lt.s32.totalorder %s5651, 3
        %s5653 = scalar_select %p5652, %s5651, 3
        %s5654 = smul.addr %s5653, 8
        %s5655 = scalar_lea.vmem %s14, %s5654
      $region100: #{block_encoder_layer.1} parent=83 // pred_fallthru
        _
    $region84: #{block_encoder_layer.1} parent=5 // pred_fallthru
      _
  $region6: #{block_encoder_layer.1} parent=0 // loop_footer
    %s25 = sadd.s32 1, %s21
  $region7: #{block_encoder_layer.1} parent=0 // loop_footer_branch
    %20 = sbr.rel target = $region3
  $region8: #{block_encoder_layer.1} parent=0 // loop_exit
    _

</llo_original>
